<compile_context>
chip_gen: v7x
topology: tpu7x:2x2x1
jax: 0.10.0
libtpu: 0.0.40
codegen_flags: <defaults>
</compile_context>

<pallas_src>
import jax
import jax.numpy as jnp
from jax import lax
from jax.experimental import pallas as pl
from jax.experimental.pallas import tpu as pltpu

LANE = 128


def _round_up(x, m):
    return ((x + m - 1) // m) * m


# ---------------------------------------------------------------------------
# Fused kernel: BN1 -> ReLU1 -> 1x1 conv -> BN2 -> ReLU2 -> 3x3 conv (SAME).
# One grid step = one image; everything intermediate stays in VMEM.
# ---------------------------------------------------------------------------
def _make_fused_kernel(n_in, seg_channels, H, W, cmid_pad, cout):
    seg_off = [0]
    for c in seg_channels:
        seg_off.append(seg_off[-1] + c)
    n_pix = H * W

    def kernel(*refs):
        x_refs = refs[:n_in]
        (scale1_ref, bias1_ref, w1_ref,
         scale2_ref, bias2_ref, w2_ref) = refs[n_in:n_in + 6]
        o_ref = refs[n_in + 6]
        pad_ref = refs[n_in + 7]          # VMEM scratch (H+2, W+2, cmid_pad) f32

        # ---- BN1 -> ReLU1 -> 1x1 conv, concat fused as per-segment matmuls ----
        y1 = jnp.zeros((n_pix, cmid_pad), jnp.float32)
        for i in range(n_in):
            lo, c = seg_off[i], seg_channels[i]
            xi = x_refs[i][0].reshape(n_pix, c)
            a = jnp.maximum(
                xi * scale1_ref[0, lo:lo + c] + bias1_ref[0, lo:lo + c], 0.0)
            y1 = y1 + jnp.dot(a.astype(jnp.bfloat16), w1_ref[lo:lo + c, :],
                              preferred_element_type=jnp.float32)

        # ---- BN2 -> ReLU2, write into padded VMEM tile --------------------
        a2 = jnp.maximum(y1 * scale2_ref[...] + bias2_ref[...], 0.0)
        # Only the 1-pixel border needs zeroing each step; interior is fully
        # overwritten below (much cheaper than zeroing the whole scratch).
        zrow = jnp.zeros((1, W + 2, cmid_pad), jnp.float32)
        zcol = jnp.zeros((H, 1, cmid_pad), jnp.float32)
        pad_ref[0:1, :, :] = zrow
        pad_ref[H + 1:H + 2, :, :] = zrow
        pad_ref[1:H + 1, 0:1, :] = zcol
        pad_ref[1:H + 1, W + 1:W + 2, :] = zcol
        pad_ref[1:H + 1, 1:W + 1, :] = a2.reshape(H, W, cmid_pad)

        # ---- 3x3 conv (stride 1, pad 1): 9 shifted matmuls, f32 accumulate ----
        acc = jnp.zeros((n_pix, cout), jnp.float32)
        for tap in range(9):
            dy, dx = tap // 3, tap % 3
            patch = pad_ref[dy:dy + H, dx:dx + W, :].reshape(n_pix, cmid_pad)
            acc = acc + jnp.dot(patch.astype(jnp.bfloat16), w2_ref[tap],
                                preferred_element_type=jnp.float32)
        o_ref[...] = acc.reshape(1, H, W, cout).astype(o_ref.dtype)

    return kernel


# ---------------------------------------------------------------------------
# DenseLayer forward (inference).
# ---------------------------------------------------------------------------
def dense_layer_forward(inputs, params):
    xs = list(inputs) if isinstance(inputs, (list, tuple)) else [inputs]
    n_in = len(xs)
    B, H, W, _ = xs[0].shape
    seg_channels = [int(x.shape[-1]) for x in xs]
    cin = sum(seg_channels)
    cmid_pad = params["w1"].shape[1]
    cout = params["w2"].shape[-1]

    kernel = _make_fused_kernel(n_in, seg_channels, H, W, cmid_pad, cout)

    in_specs = [pl.BlockSpec((1, H, W, c), lambda b: (b, 0, 0, 0))
                for c in seg_channels]
    in_specs += [
        pl.BlockSpec((1, cin), lambda b: (0, 0)),            # scale1
        pl.BlockSpec((1, cin), lambda b: (0, 0)),            # bias1
        pl.BlockSpec((cin, cmid_pad), lambda b: (0, 0)),      # w1
        pl.BlockSpec((1, cmid_pad), lambda b: (0, 0)),        # scale2
        pl.BlockSpec((1, cmid_pad), lambda b: (0, 0)),        # bias2
        pl.BlockSpec((9, cmid_pad, cout), lambda b: (0, 0, 0)),  # w2
    ]

    out = pl.pallas_call(
        kernel,
        out_shape=jax.ShapeDtypeStruct((B, H, W, cout), jnp.float32),
        grid_spec=pltpu.PrefetchScalarGridSpec(
            num_scalar_prefetch=0,
            grid=(B,),
            in_specs=in_specs,
            out_specs=pl.BlockSpec((1, H, W, cout), lambda b: (b, 0, 0, 0)),
            scratch_shapes=[pltpu.VMEM((H + 2, W + 2, cmid_pad), jnp.float32)],
        ),
        compiler_params=pltpu.CompilerParams(
            dimension_semantics=("parallel",),
            vmem_limit_bytes=32 * 1024 * 1024,
        ),
    )(*xs,
      params["scale1"][None, :], params["bias1"][None, :], params["w1"],
      params["scale2"][None, :], params["bias2"][None, :], params["w2"])

    # Dropout: identity in eval mode (drop_rate == 0.0 here).
    # TODO(synk): training-mode stochastic dropout (pltpu.prng_*) not implemented.
    return out


# ---------------------------------------------------------------------------
# Parameter preparation (folds eval-mode BN, pads Cmid to a lane multiple,
# stores conv weights as bf16).
# ---------------------------------------------------------------------------
def make_params(in_channels, out_channels, bn_size, eps=1e-5):
    cmid = out_channels * bn_size
    cmid_pad = _round_up(cmid, LANE)
    keys = jax.random.split(jax.random.PRNGKey(0), 10)

    gamma1 = 1.0 + 0.1 * jax.random.normal(keys[0], (in_channels,), jnp.float32)
    beta1 = 0.1 * jax.random.normal(keys[1], (in_channels,), jnp.float32)
    mean1 = 0.1 * jax.random.normal(keys[2], (in_channels,), jnp.float32)
    var1 = jnp.abs(jax.random.normal(keys[3], (in_channels,), jnp.float32)) + 0.5

    gamma2 = 1.0 + 0.1 * jax.random.normal(keys[4], (cmid,), jnp.float32)
    beta2 = 0.1 * jax.random.normal(keys[5], (cmid,), jnp.float32)
    mean2 = 0.1 * jax.random.normal(keys[6], (cmid,), jnp.float32)
    var2 = jnp.abs(jax.random.normal(keys[7], (cmid,), jnp.float32)) + 0.5

    # torch conv1.weight: (Cmid, Cin, 1, 1); conv2.weight: (Cout, Cmid, 3, 3)
    w1_t = 0.1 * jax.random.normal(keys[8], (cmid, in_channels), jnp.float32)
    w2_t = 0.1 * jax.random.normal(keys[9], (out_channels, cmid, 3, 3),
                                   jnp.float32)

    scale1 = gamma1 / jnp.sqrt(var1 + eps)
    bias1 = beta1 - mean1 * scale1
    scale2_raw = gamma2 / jnp.sqrt(var2 + eps)
    bias2_raw = beta2 - mean2 * scale2_raw

    # zero-pad the bottleneck channel dim so matmul lanes are 128-dense;
    # padded channels carry exact zeros end-to-end.
    scale2 = jnp.zeros((cmid_pad,), jnp.float32).at[:cmid].set(scale2_raw)
    bias2 = jnp.zeros((cmid_pad,), jnp.float32).at[:cmid].set(bias2_raw)

    w1 = (jnp.zeros((in_channels, cmid_pad), jnp.float32)
          .at[:, :cmid].set(w1_t.T)).astype(jnp.bfloat16)
    w2_hwio = jnp.transpose(w2_t, (2, 3, 1, 0))               # (3,3,Cmid,Cout)
    w2 = (jnp.zeros((3, 3, cmid_pad, out_channels), jnp.float32)
          .at[:, :, :cmid, :].set(w2_hwio)
          ).reshape(9, cmid_pad, out_channels).astype(jnp.bfloat16)

    return dict(scale1=scale1, bias1=bias1, w1=w1,
                scale2=scale2, bias2=bias2, w2=w2)


def ref_forward(inputs, params):
    """Pure-JAX reference (same bf16 operand rounding, f32 accumulation)."""
    xs = list(inputs) if isinstance(inputs, (list, tuple)) else [inputs]
    x = jnp.concatenate(xs, axis=-1)
    a1 = jnp.maximum(x * params["scale1"] + params["bias1"], 0.0)
    y1 = jnp.einsum("bhwc,cd->bhwd", a1.astype(jnp.bfloat16), params["w1"],
                    preferred_element_type=jnp.float32)
    a2 = jnp.maximum(y1 * params["scale2"] + params["bias2"], 0.0)
    cmid_pad = params["w1"].shape[1]
    w_hwio = params["w2"].reshape(3, 3, cmid_pad, -1)
    return lax.conv_general_dilated(
        a2.astype(jnp.bfloat16), w_hwio, window_strides=(1, 1), padding="SAME",
        dimension_numbers=("NHWC", "HWIO", "NHWC"),
        preferred_element_type=jnp.float32)


if __name__ == "__main__":
    # Two input feature maps of 4 channels each (DenseNet-style list input),
    # concatenated -> in_channels = 8; out_channels = 4, bn_size = 4 -> Cmid = 16.
    B, H, W = 2, 16, 16
    out_channels, bn_size = 4, 4
    k = jax.random.PRNGKey(0)
    ka, kb = jax.random.split(k)
    x0 = jax.random.normal(ka, (B, H, W, 4), jnp.float32)   # NHWC (== NCHW [2,4,16,16])
    x1 = jax.random.normal(kb, (B, H, W, 4), jnp.float32)
    params = make_params(in_channels=8, out_channels=out_channels,
                         bn_size=bn_size)

    y = dense_layer_forward([x0, x1], params)
    y = jax.block_until_ready(y)

    y_ref = ref_forward([x0, x1], params)
    assert y.shape == (B, H, W, out_channels), y.shape
    err = float(jnp.max(jnp.abs(y - y_ref)))
    assert err < 1e-3, err
    print("KERNEL_OK")
</pallas_src>

<mosaic_0001>
module attributes {stable_mosaic.version = 11 : i64} {
  func.func @kernel(%arg0: i32, %arg1: memref<1x16x16x4xf32, #tpu.memory_space<vmem>>, %arg2: memref<1x16x16x4xf32, #tpu.memory_space<vmem>>, %arg3: memref<1x8xf32, #tpu.memory_space<vmem>>, %arg4: memref<1x8xf32, #tpu.memory_space<vmem>>, %arg5: memref<8x128xbf16, #tpu.memory_space<vmem>>, %arg6: memref<1x128xf32, #tpu.memory_space<vmem>>, %arg7: memref<1x128xf32, #tpu.memory_space<vmem>>, %arg8: memref<9x128x4xbf16, #tpu.memory_space<vmem>>, %arg9: memref<1x16x16x4xf32, #tpu.memory_space<vmem>>, %arg10: memref<18x18x128xf32, #tpu.memory_space<vmem>>) attributes {dimension_semantics = [#tpu.dimension_semantics<parallel>], iteration_bounds = array<i64: 2>, scalar_prefetch = 0 : i64, scratch_operands = 1 : i64, tpu.core_type = #tpu.core_type<tc>, window_params = [{transform_indices = @transform_0, window_bounds = array<i64: 1, 16, 16, 4>}, {transform_indices = @transform_1, window_bounds = array<i64: 1, 16, 16, 4>}, {pipeline_mode = #tpu.pipeline_mode<synchronous>, transform_indices = @transform_2, window_bounds = array<i64: 1, 8>}, {pipeline_mode = #tpu.pipeline_mode<synchronous>, transform_indices = @transform_3, window_bounds = array<i64: 1, 8>}, {pipeline_mode = #tpu.pipeline_mode<synchronous>, transform_indices = @transform_4, window_bounds = array<i64: 8, 128>}, {pipeline_mode = #tpu.pipeline_mode<synchronous>, transform_indices = @transform_5, window_bounds = array<i64: 1, 128>}, {pipeline_mode = #tpu.pipeline_mode<synchronous>, transform_indices = @transform_6, window_bounds = array<i64: 1, 128>}, {pipeline_mode = #tpu.pipeline_mode<synchronous>, transform_indices = @transform_7, window_bounds = array<i64: 9, 128, 4>}, {transform_indices = @transform_8, window_bounds = array<i64: 1, 16, 16, 4>}]} {
    %cst = arith.constant 0.000000e+00 : f32
    %0 = vector.broadcast %cst : f32 to vector<256x128xf32>
    %c0 = arith.constant 0 : index
    %c0_0 = arith.constant 0 : index
    %c0_1 = arith.constant 0 : index
    %c0_2 = arith.constant 0 : index
    %1 = vector.load %arg1[%c0, %c0_0, %c0_1, %c0_2] : memref<1x16x16x4xf32, #tpu.memory_space<vmem>>, vector<1x16x16x4xf32>
    %2 = vector.shape_cast %1 : vector<1x16x16x4xf32> to vector<16x16x4xf32>
    %3 = vector.shape_cast %2 : vector<16x16x4xf32> to vector<256x4xf32>
    %c0_3 = arith.constant 0 : index
    %c0_4 = arith.constant 0 : index
    %4 = vector.load %arg3[%c0_3, %c0_4] : memref<1x8xf32, #tpu.memory_space<vmem>>, vector<1x4xf32>
    %5 = vector.shape_cast %4 : vector<1x4xf32> to vector<4xf32>
    %6 = vector.shape_cast %5 : vector<4xf32> to vector<1x4xf32>
    %7 = vector.broadcast %6 : vector<1x4xf32> to vector<256x4xf32>
    %8 = arith.mulf %3, %7 : vector<256x4xf32>
    %c0_5 = arith.constant 0 : index
    %c0_6 = arith.constant 0 : index
    %9 = vector.load %arg4[%c0_5, %c0_6] : memref<1x8xf32, #tpu.memory_space<vmem>>, vector<1x4xf32>
    %10 = vector.shape_cast %9 : vector<1x4xf32> to vector<4xf32>
    %11 = vector.shape_cast %10 : vector<4xf32> to vector<1x4xf32>
    %12 = vector.broadcast %11 : vector<1x4xf32> to vector<256x4xf32>
    %13 = arith.addf %8, %12 : vector<256x4xf32>
    %cst_7 = arith.constant 0.000000e+00 : f32
    %14 = vector.broadcast %cst_7 : f32 to vector<256x4xf32>
    %15 = arith.maximumf %13, %14 : vector<256x4xf32>
    %16 = arith.truncf %15 : vector<256x4xf32> to vector<256x4xbf16>
    %c0_8 = arith.constant 0 : index
    %c0_9 = arith.constant 0 : index
    %17 = vector.load %arg5[%c0_8, %c0_9] : memref<8x128xbf16, #tpu.memory_space<vmem>>, vector<4x128xbf16>
    %cst_10 = arith.constant dense<0.000000e+00> : vector<256x128xf32>
    %18 = tpu.matmul %16, %17, %cst_10 {dimension_numbers = #tpu.dot_dimension_numbers<[1], [0], [0], [1], [0, 0, 1, 1], [], []>} : vector<256x4xbf16>, vector<4x128xbf16>, vector<256x128xf32> -> vector<256x128xf32>
    %19 = arith.addf %0, %18 : vector<256x128xf32>
    %c0_11 = arith.constant 0 : index
    %c0_12 = arith.constant 0 : index
    %c0_13 = arith.constant 0 : index
    %c0_14 = arith.constant 0 : index
    %20 = vector.load %arg2[%c0_11, %c0_12, %c0_13, %c0_14] : memref<1x16x16x4xf32, #tpu.memory_space<vmem>>, vector<1x16x16x4xf32>
    %21 = vector.shape_cast %20 : vector<1x16x16x4xf32> to vector<16x16x4xf32>
    %22 = vector.shape_cast %21 : vector<16x16x4xf32> to vector<256x4xf32>
    %c0_15 = arith.constant 0 : index
    %c4 = arith.constant 4 : index
    %23 = vector.load %arg3[%c0_15, %c4] : memref<1x8xf32, #tpu.memory_space<vmem>>, vector<1x4xf32>
    %24 = vector.shape_cast %23 : vector<1x4xf32> to vector<4xf32>
    %25 = vector.shape_cast %24 : vector<4xf32> to vector<1x4xf32>
    %26 = vector.broadcast %25 : vector<1x4xf32> to vector<256x4xf32>
    %27 = arith.mulf %22, %26 : vector<256x4xf32>
    %c0_16 = arith.constant 0 : index
    %c4_17 = arith.constant 4 : index
    %28 = vector.load %arg4[%c0_16, %c4_17] : memref<1x8xf32, #tpu.memory_space<vmem>>, vector<1x4xf32>
    %29 = vector.shape_cast %28 : vector<1x4xf32> to vector<4xf32>
    %30 = vector.shape_cast %29 : vector<4xf32> to vector<1x4xf32>
    %31 = vector.broadcast %30 : vector<1x4xf32> to vector<256x4xf32>
    %32 = arith.addf %27, %31 : vector<256x4xf32>
    %cst_18 = arith.constant 0.000000e+00 : f32
    %33 = vector.broadcast %cst_18 : f32 to vector<256x4xf32>
    %34 = arith.maximumf %32, %33 : vector<256x4xf32>
    %35 = arith.truncf %34 : vector<256x4xf32> to vector<256x4xbf16>
    %c4_19 = arith.constant 4 : index
    %c0_20 = arith.constant 0 : index
    %36 = vector.load %arg5[%c4_19, %c0_20] : memref<8x128xbf16, #tpu.memory_space<vmem>>, vector<4x128xbf16>
    %cst_21 = arith.constant dense<0.000000e+00> : vector<256x128xf32>
    %37 = tpu.matmul %35, %36, %cst_21 {dimension_numbers = #tpu.dot_dimension_numbers<[1], [0], [0], [1], [0, 0, 1, 1], [], []>} : vector<256x4xbf16>, vector<4x128xbf16>, vector<256x128xf32> -> vector<256x128xf32>
    %38 = arith.addf %19, %37 : vector<256x128xf32>
    %c0_22 = arith.constant 0 : index
    %c0_23 = arith.constant 0 : index
    %39 = vector.load %arg6[%c0_22, %c0_23] : memref<1x128xf32, #tpu.memory_space<vmem>>, vector<1x128xf32>
    %40 = vector.broadcast %39 : vector<1x128xf32> to vector<256x128xf32>
    %41 = arith.mulf %38, %40 : vector<256x128xf32>
    %c0_24 = arith.constant 0 : index
    %c0_25 = arith.constant 0 : index
    %42 = vector.load %arg7[%c0_24, %c0_25] : memref<1x128xf32, #tpu.memory_space<vmem>>, vector<1x128xf32>
    %43 = vector.broadcast %42 : vector<1x128xf32> to vector<256x128xf32>
    %44 = arith.addf %41, %43 : vector<256x128xf32>
    %cst_26 = arith.constant 0.000000e+00 : f32
    %45 = vector.broadcast %cst_26 : f32 to vector<256x128xf32>
    %46 = arith.maximumf %44, %45 : vector<256x128xf32>
    %cst_27 = arith.constant 0.000000e+00 : f32
    %47 = vector.broadcast %cst_27 : f32 to vector<1x18x128xf32>
    %cst_28 = arith.constant 0.000000e+00 : f32
    %48 = vector.broadcast %cst_28 : f32 to vector<16x1x128xf32>
    %c0_29 = arith.constant 0 : index
    %c0_30 = arith.constant 0 : index
    %c0_31 = arith.constant 0 : index
    %49 = vector.load %arg10[%c0_29, %c0_30, %c0_31] : memref<18x18x128xf32, #tpu.memory_space<vmem>>, vector<1x18x128xf32>
    tpu.vector_store %arg10[%c0_29, %c0_30, %c0_31], %47 {strides = array<i32>} : memref<18x18x128xf32, #tpu.memory_space<vmem>>, vector<1x18x128xf32>,
    %c17 = arith.constant 17 : index
    %c0_32 = arith.constant 0 : index
    %c0_33 = arith.constant 0 : index
    %50 = vector.load %arg10[%c17, %c0_32, %c0_33] : memref<18x18x128xf32, #tpu.memory_space<vmem>>, vector<1x18x128xf32>
    tpu.vector_store %arg10[%c17, %c0_32, %c0_33], %47 {strides = array<i32>} : memref<18x18x128xf32, #tpu.memory_space<vmem>>, vector<1x18x128xf32>,
    %c1 = arith.constant 1 : index
    %c0_34 = arith.constant 0 : index
    %c0_35 = arith.constant 0 : index
    %51 = vector.load %arg10[%c1, %c0_34, %c0_35] : memref<18x18x128xf32, #tpu.memory_space<vmem>>, vector<16x1x128xf32>
    tpu.vector_store %arg10[%c1, %c0_34, %c0_35], %48 {strides = array<i32>} : memref<18x18x128xf32, #tpu.memory_space<vmem>>, vector<16x1x128xf32>,
    %c1_36 = arith.constant 1 : index
    %c17_37 = arith.constant 17 : index
    %c0_38 = arith.constant 0 : index
    %52 = vector.load %arg10[%c1_36, %c17_37, %c0_38] : memref<18x18x128xf32, #tpu.memory_space<vmem>>, vector<16x1x128xf32>
    tpu.vector_store %arg10[%c1_36, %c17_37, %c0_38], %48 {strides = array<i32>} : memref<18x18x128xf32, #tpu.memory_space<vmem>>, vector<16x1x128xf32>,
    %53 = vector.shape_cast %46 : vector<256x128xf32> to vector<16x16x128xf32>
    %c1_39 = arith.constant 1 : index
    %c1_40 = arith.constant 1 : index
    %c0_41 = arith.constant 0 : index
    %54 = vector.load %arg10[%c1_39, %c1_40, %c0_41] : memref<18x18x128xf32, #tpu.memory_space<vmem>>, vector<16x16x128xf32>
    tpu.vector_store %arg10[%c1_39, %c1_40, %c0_41], %53 {strides = array<i32>} : memref<18x18x128xf32, #tpu.memory_space<vmem>>, vector<16x16x128xf32>,
    %cst_42 = arith.constant 0.000000e+00 : f32
    %55 = vector.broadcast %cst_42 : f32 to vector<256x4xf32>
    %c0_43 = arith.constant 0 : index
    %c0_44 = arith.constant 0 : index
    %c0_45 = arith.constant 0 : index
    %56 = vector.load %arg10[%c0_43, %c0_44, %c0_45] : memref<18x18x128xf32, #tpu.memory_space<vmem>>, vector<16x16x128xf32>
    %57 = vector.shape_cast %56 : vector<16x16x128xf32> to vector<256x128xf32>
    %58 = arith.truncf %57 : vector<256x128xf32> to vector<256x128xbf16>
    %c0_46 = arith.constant 0 : index
    %c0_47 = arith.constant 0 : index
    %c0_48 = arith.constant 0 : index
    %59 = vector.load %arg8[%c0_46, %c0_47, %c0_48] : memref<9x128x4xbf16, #tpu.memory_space<vmem>>, vector<1x128x4xbf16>
    %60 = vector.shape_cast %59 : vector<1x128x4xbf16> to vector<128x4xbf16>
    %cst_49 = arith.constant dense<0.000000e+00> : vector<256x4xf32>
    %61 = tpu.matmul %58, %60, %cst_49 {dimension_numbers = #tpu.dot_dimension_numbers<[1], [0], [0], [1], [0, 0, 1, 1], [], []>} : vector<256x128xbf16>, vector<128x4xbf16>, vector<256x4xf32> -> vector<256x4xf32>
    %62 = arith.addf %55, %61 : vector<256x4xf32>
    %c0_50 = arith.constant 0 : index
    %c1_51 = arith.constant 1 : index
    %c0_52 = arith.constant 0 : index
    %63 = vector.load %arg10[%c0_50, %c1_51, %c0_52] : memref<18x18x128xf32, #tpu.memory_space<vmem>>, vector<16x16x128xf32>
    %64 = vector.shape_cast %63 : vector<16x16x128xf32> to vector<256x128xf32>
    %65 = arith.truncf %64 : vector<256x128xf32> to vector<256x128xbf16>
    %c1_53 = arith.constant 1 : index
    %c0_54 = arith.constant 0 : index
    %c0_55 = arith.constant 0 : index
    %66 = vector.load %arg8[%c1_53, %c0_54, %c0_55] : memref<9x128x4xbf16, #tpu.memory_space<vmem>>, vector<1x128x4xbf16>
    %67 = vector.shape_cast %66 : vector<1x128x4xbf16> to vector<128x4xbf16>
    %cst_56 = arith.constant dense<0.000000e+00> : vector<256x4xf32>
    %68 = tpu.matmul %65, %67, %cst_56 {dimension_numbers = #tpu.dot_dimension_numbers<[1], [0], [0], [1], [0, 0, 1, 1], [], []>} : vector<256x128xbf16>, vector<128x4xbf16>, vector<256x4xf32> -> vector<256x4xf32>
    %69 = arith.addf %62, %68 : vector<256x4xf32>
    %c0_57 = arith.constant 0 : index
    %c2 = arith.constant 2 : index
    %c0_58 = arith.constant 0 : index
    %70 = vector.load %arg10[%c0_57, %c2, %c0_58] : memref<18x18x128xf32, #tpu.memory_space<vmem>>, vector<16x16x128xf32>
    %71 = vector.shape_cast %70 : vector<16x16x128xf32> to vector<256x128xf32>
    %72 = arith.truncf %71 : vector<256x128xf32> to vector<256x128xbf16>
    %c2_59 = arith.constant 2 : index
    %c0_60 = arith.constant 0 : index
    %c0_61 = arith.constant 0 : index
    %73 = vector.load %arg8[%c2_59, %c0_60, %c0_61] : memref<9x128x4xbf16, #tpu.memory_space<vmem>>, vector<1x128x4xbf16>
    %74 = vector.shape_cast %73 : vector<1x128x4xbf16> to vector<128x4xbf16>
    %cst_62 = arith.constant dense<0.000000e+00> : vector<256x4xf32>
    %75 = tpu.matmul %72, %74, %cst_62 {dimension_numbers = #tpu.dot_dimension_numbers<[1], [0], [0], [1], [0, 0, 1, 1], [], []>} : vector<256x128xbf16>, vector<128x4xbf16>, vector<256x4xf32> -> vector<256x4xf32>
    %76 = arith.addf %69, %75 : vector<256x4xf32>
    %c1_63 = arith.constant 1 : index
    %c0_64 = arith.constant 0 : index
    %c0_65 = arith.constant 0 : index
    %77 = vector.load %arg10[%c1_63, %c0_64, %c0_65] : memref<18x18x128xf32, #tpu.memory_space<vmem>>, vector<16x16x128xf32>
    %78 = vector.shape_cast %77 : vector<16x16x128xf32> to vector<256x128xf32>
    %79 = arith.truncf %78 : vector<256x128xf32> to vector<256x128xbf16>
    %c3 = arith.constant 3 : index
    %c0_66 = arith.constant 0 : index
    %c0_67 = arith.constant 0 : index
    %80 = vector.load %arg8[%c3, %c0_66, %c0_67] : memref<9x128x4xbf16, #tpu.memory_space<vmem>>, vector<1x128x4xbf16>
    %81 = vector.shape_cast %80 : vector<1x128x4xbf16> to vector<128x4xbf16>
    %cst_68 = arith.constant dense<0.000000e+00> : vector<256x4xf32>
    %82 = tpu.matmul %79, %81, %cst_68 {dimension_numbers = #tpu.dot_dimension_numbers<[1], [0], [0], [1], [0, 0, 1, 1], [], []>} : vector<256x128xbf16>, vector<128x4xbf16>, vector<256x4xf32> -> vector<256x4xf32>
    %83 = arith.addf %76, %82 : vector<256x4xf32>
    %c1_69 = arith.constant 1 : index
    %c1_70 = arith.constant 1 : index
    %c0_71 = arith.constant 0 : index
    %84 = vector.load %arg10[%c1_69, %c1_70, %c0_71] : memref<18x18x128xf32, #tpu.memory_space<vmem>>, vector<16x16x128xf32>
    %85 = vector.shape_cast %84 : vector<16x16x128xf32> to vector<256x128xf32>
    %86 = arith.truncf %85 : vector<256x128xf32> to vector<256x128xbf16>
    %c4_72 = arith.constant 4 : index
    %c0_73 = arith.constant 0 : index
    %c0_74 = arith.constant 0 : index
    %87 = vector.load %arg8[%c4_72, %c0_73, %c0_74] : memref<9x128x4xbf16, #tpu.memory_space<vmem>>, vector<1x128x4xbf16>
    %88 = vector.shape_cast %87 : vector<1x128x4xbf16> to vector<128x4xbf16>
    %cst_75 = arith.constant dense<0.000000e+00> : vector<256x4xf32>
    %89 = tpu.matmul %86, %88, %cst_75 {dimension_numbers = #tpu.dot_dimension_numbers<[1], [0], [0], [1], [0, 0, 1, 1], [], []>} : vector<256x128xbf16>, vector<128x4xbf16>, vector<256x4xf32> -> vector<256x4xf32>
    %90 = arith.addf %83, %89 : vector<256x4xf32>
    %c1_76 = arith.constant 1 : index
    %c2_77 = arith.constant 2 : index
    %c0_78 = arith.constant 0 : index
    %91 = vector.load %arg10[%c1_76, %c2_77, %c0_78] : memref<18x18x128xf32, #tpu.memory_space<vmem>>, vector<16x16x128xf32>
    %92 = vector.shape_cast %91 : vector<16x16x128xf32> to vector<256x128xf32>
    %93 = arith.truncf %92 : vector<256x128xf32> to vector<256x128xbf16>
    %c5 = arith.constant 5 : index
    %c0_79 = arith.constant 0 : index
    %c0_80 = arith.constant 0 : index
    %94 = vector.load %arg8[%c5, %c0_79, %c0_80] : memref<9x128x4xbf16, #tpu.memory_space<vmem>>, vector<1x128x4xbf16>
    %95 = vector.shape_cast %94 : vector<1x128x4xbf16> to vector<128x4xbf16>
    %cst_81 = arith.constant dense<0.000000e+00> : vector<256x4xf32>
    %96 = tpu.matmul %93, %95, %cst_81 {dimension_numbers = #tpu.dot_dimension_numbers<[1], [0], [0], [1], [0, 0, 1, 1], [], []>} : vector<256x128xbf16>, vector<128x4xbf16>, vector<256x4xf32> -> vector<256x4xf32>
    %97 = arith.addf %90, %96 : vector<256x4xf32>
    %c2_82 = arith.constant 2 : index
    %c0_83 = arith.constant 0 : index
    %c0_84 = arith.constant 0 : index
    %98 = vector.load %arg10[%c2_82, %c0_83, %c0_84] : memref<18x18x128xf32, #tpu.memory_space<vmem>>, vector<16x16x128xf32>
    %99 = vector.shape_cast %98 : vector<16x16x128xf32> to vector<256x128xf32>
    %100 = arith.truncf %99 : vector<256x128xf32> to vector<256x128xbf16>
    %c6 = arith.constant 6 : index
    %c0_85 = arith.constant 0 : index
    %c0_86 = arith.constant 0 : index
    %101 = vector.load %arg8[%c6, %c0_85, %c0_86] : memref<9x128x4xbf16, #tpu.memory_space<vmem>>, vector<1x128x4xbf16>
    %102 = vector.shape_cast %101 : vector<1x128x4xbf16> to vector<128x4xbf16>
    %cst_87 = arith.constant dense<0.000000e+00> : vector<256x4xf32>
    %103 = tpu.matmul %100, %102, %cst_87 {dimension_numbers = #tpu.dot_dimension_numbers<[1], [0], [0], [1], [0, 0, 1, 1], [], []>} : vector<256x128xbf16>, vector<128x4xbf16>, vector<256x4xf32> -> vector<256x4xf32>
    %104 = arith.addf %97, %103 : vector<256x4xf32>
    %c2_88 = arith.constant 2 : index
    %c1_89 = arith.constant 1 : index
    %c0_90 = arith.constant 0 : index
    %105 = vector.load %arg10[%c2_88, %c1_89, %c0_90] : memref<18x18x128xf32, #tpu.memory_space<vmem>>, vector<16x16x128xf32>
    %106 = vector.shape_cast %105 : vector<16x16x128xf32> to vector<256x128xf32>
    %107 = arith.truncf %106 : vector<256x128xf32> to vector<256x128xbf16>
    %c7 = arith.constant 7 : index
    %c0_91 = arith.constant 0 : index
    %c0_92 = arith.constant 0 : index
    %108 = vector.load %arg8[%c7, %c0_91, %c0_92] : memref<9x128x4xbf16, #tpu.memory_space<vmem>>, vector<1x128x4xbf16>
    %109 = vector.shape_cast %108 : vector<1x128x4xbf16> to vector<128x4xbf16>
    %cst_93 = arith.constant dense<0.000000e+00> : vector<256x4xf32>
    %110 = tpu.matmul %107, %109, %cst_93 {dimension_numbers = #tpu.dot_dimension_numbers<[1], [0], [0], [1], [0, 0, 1, 1], [], []>} : vector<256x128xbf16>, vector<128x4xbf16>, vector<256x4xf32> -> vector<256x4xf32>
    %111 = arith.addf %104, %110 : vector<256x4xf32>
    %c2_94 = arith.constant 2 : index
    %c2_95 = arith.constant 2 : index
    %c0_96 = arith.constant 0 : index
    %112 = vector.load %arg10[%c2_94, %c2_95, %c0_96] : memref<18x18x128xf32, #tpu.memory_space<vmem>>, vector<16x16x128xf32>
    %113 = vector.shape_cast %112 : vector<16x16x128xf32> to vector<256x128xf32>
    %114 = arith.truncf %113 : vector<256x128xf32> to vector<256x128xbf16>
    %c8 = arith.constant 8 : index
    %c0_97 = arith.constant 0 : index
    %c0_98 = arith.constant 0 : index
    %115 = vector.load %arg8[%c8, %c0_97, %c0_98] : memref<9x128x4xbf16, #tpu.memory_space<vmem>>, vector<1x128x4xbf16>
    %116 = vector.shape_cast %115 : vector<1x128x4xbf16> to vector<128x4xbf16>
    %cst_99 = arith.constant dense<0.000000e+00> : vector<256x4xf32>
    %117 = tpu.matmul %114, %116, %cst_99 {dimension_numbers = #tpu.dot_dimension_numbers<[1], [0], [0], [1], [0, 0, 1, 1], [], []>} : vector<256x128xbf16>, vector<128x4xbf16>, vector<256x4xf32> -> vector<256x4xf32>
    %118 = arith.addf %111, %117 : vector<256x4xf32>
    %119 = vector.shape_cast %118 : vector<256x4xf32> to vector<1x16x16x4xf32>
    %c0_100 = arith.constant 0 : index
    %c0_101 = arith.constant 0 : index
    %c0_102 = arith.constant 0 : index
    %c0_103 = arith.constant 0 : index
    %120 = vector.load %arg9[%c0_100, %c0_101, %c0_102, %c0_103] : memref<1x16x16x4xf32, #tpu.memory_space<vmem>>, vector<1x16x16x4xf32>
    tpu.vector_store %arg9[%c0_100, %c0_101, %c0_102, %c0_103], %119 {strides = array<i32>} : memref<1x16x16x4xf32, #tpu.memory_space<vmem>>, vector<1x16x16x4xf32>,
    return
  }
  func.func @transform_0(%arg0: i32) -> (i32, i32, i32, i32) {
    %c0_i32 = arith.constant 0 : i32
    %c0_i32_0 = arith.constant 0 : i32
    %c0_i32_1 = arith.constant 0 : i32
    %c0_i32_2 = arith.constant 0 : i32
    return %arg0, %c0_i32, %c0_i32_0, %c0_i32_1 : i32, i32, i32, i32
  }
  func.func @transform_1(%arg0: i32) -> (i32, i32, i32, i32) {
    %c0_i32 = arith.constant 0 : i32
    %c0_i32_0 = arith.constant 0 : i32
    %c0_i32_1 = arith.constant 0 : i32
    %c0_i32_2 = arith.constant 0 : i32
    return %arg0, %c0_i32, %c0_i32_0, %c0_i32_1 : i32, i32, i32, i32
  }
  func.func @transform_2(%arg0: i32) -> (i32, i32) {
    %c0_i32 = arith.constant 0 : i32
    %c0_i32_0 = arith.constant 0 : i32
    %c0_i32_1 = arith.constant 0 : i32
    return %c0_i32, %c0_i32_0 : i32, i32
  }
  func.func @transform_3(%arg0: i32) -> (i32, i32) {
    %c0_i32 = arith.constant 0 : i32
    %c0_i32_0 = arith.constant 0 : i32
    %c0_i32_1 = arith.constant 0 : i32
    return %c0_i32, %c0_i32_0 : i32, i32
  }
  func.func @transform_4(%arg0: i32) -> (i32, i32) {
    %c0_i32 = arith.constant 0 : i32
    %c0_i32_0 = arith.constant 0 : i32
    %c0_i32_1 = arith.constant 0 : i32
    return %c0_i32, %c0_i32_0 : i32, i32
  }
  func.func @transform_5(%arg0: i32) -> (i32, i32) {
    %c0_i32 = arith.constant 0 : i32
    %c0_i32_0 = arith.constant 0 : i32
    %c0_i32_1 = arith.constant 0 : i32
    return %c0_i32, %c0_i32_0 : i32, i32
  }
  func.func @transform_6(%arg0: i32) -> (i32, i32) {
    %c0_i32 = arith.constant 0 : i32
    %c0_i32_0 = arith.constant 0 : i32
    %c0_i32_1 = arith.constant 0 : i32
    return %c0_i32, %c0_i32_0 : i32, i32
  }
  func.func @transform_7(%arg0: i32) -> (i32, i32, i32) {
    %c0_i32 = arith.constant 0 : i32
    %c0_i32_0 = arith.constant 0 : i32
    %c0_i32_1 = arith.constant 0 : i32
    %c0_i32_2 = arith.constant 0 : i32
    return %c0_i32, %c0_i32_0, %c0_i32_1 : i32, i32, i32
  }
  func.func @transform_8(%arg0: i32) -> (i32, i32, i32, i32) {
    %c0_i32 = arith.constant 0 : i32
    %c0_i32_0 = arith.constant 0 : i32
    %c0_i32_1 = arith.constant 0 : i32
    %c0_i32_2 = arith.constant 0 : i32
    return %arg0, %c0_i32, %c0_i32_0, %c0_i32_1 : i32, i32, i32, i32
  }
}

</mosaic_0001>

<llo_original>
// kernel: tpu_custom_call.1
$region0: #{tpu_custom_call.1}
  #allocation0 [shape = 'u32[]', space=smem, size = 0x4, offset = 0x4, fixed_abs, tag = 'smem constant byte address 0x4 - core index']
  #allocation1 [shape = 'u32[144,128]{1,0:T(1,128)}', space=vmem, size = 0x12000, scoped, tag = 'internal scratch']
  #allocation2 [shape = 'f32[18,18,128]{2,1,0:T(8,128)}', space=vmem, size = 0x36000, scoped, tag = 'scratch operand']
  %s0 = inlined_call_operand.vmem [shape: f32[2,16,16,4], index: 0, kind: input, shape index: {}]
  %s1 = inlined_call_operand.vmem [shape: f32[2,16,16,4], index: 1, kind: input, shape index: {}]
  %s2 = inlined_call_operand.vmem [shape: f32[1,8], index: 2, kind: input, shape index: {}]
  %s3 = inlined_call_operand.vmem [shape: f32[1,8], index: 3, kind: input, shape index: {}]
  %s4 = inlined_call_operand.vmem [shape: bf16[8,128], index: 4, kind: input, shape index: {}]
  %s5 = inlined_call_operand.vmem [shape: f32[1,128], index: 5, kind: input, shape index: {}]
  %s6 = inlined_call_operand.vmem [shape: f32[1,128], index: 6, kind: input, shape index: {}]
  %s7 = inlined_call_operand.vmem [shape: bf16[9,128,4], index: 7, kind: input, shape index: {}]
  %s8 = inlined_call_operand.vmem [shape: f32[2,16,16,4], index: 8, kind: output, shape index: {}]
  %s9 = sld [smem:[#allocation0]]
  $region65: #{tpu_custom_call.1} parent=0
    _
  %s11 = ssub.s32 1, %s9
  %s12 = scalar_select 0, %s11, %s9
  loop: start=0, step=1, limit=4
  $region2: #{tpu_custom_call.1} parent=0 // loop_pre_header
    _
  $region3: #{tpu_custom_call.1} parent=0 // loop_header
    %s14 = sphi 0, %s18
    %p15 = scmp.ge.s32.totalorder %s14, 4
    %s24 = sphi 0, %s26
    %s27 = sphi 0, %s24
    %s28 = sphi 0, %s27
    %s44 = sphi 0, %s28
    %s50 = sphi 0, %s52
    %s53 = sphi 0, %s50
    %s54 = sphi 0, %s53
    %s70 = sphi 0, %s54
    %s74 = sphi 0, %s74
    %s76 = sphi 0, %s74
    %s77 = sphi 0, %s76
    %s91 = sphi 0, %s77
    %s95 = sphi 0, %s95
    %s97 = sphi 0, %s95
    %s98 = sphi 0, %s97
    %s112 = sphi 0, %s98
    %s116 = sphi 0, %s116
    %s118 = sphi 0, %s116
    %s119 = sphi 0, %s118
    %s133 = sphi 0, %s119
    %s137 = sphi 0, %s137
    %s139 = sphi 0, %s137
    %s140 = sphi 0, %s139
    %s154 = sphi 0, %s140
    %s158 = sphi 0, %s158
    %s160 = sphi 0, %s158
    %s161 = sphi 0, %s160
    %s175 = sphi 0, %s161
    %s179 = sphi 0, %s179
    %s181 = sphi 0, %s179
    %s182 = sphi 0, %s181
    %s196 = sphi 0, %s182
    %s202 = sphi 0, %s204
    %s205 = sphi 0, %s202
    %s206 = sphi 0, %s205
    %s222 = sphi 0, %s206
  $region4: #{tpu_custom_call.1} parent=0 // loop_header_branch
    %17 = sbr.rel (%p15) target = $region8
  $region5: #{tpu_custom_call.1} parent=0 // loop_body
    %s19 = ssub.s32 %s14, 1
    %s20 = ssub.s32 %s14, 2
    %s21 = sadd.s32 %s14, 1
    %s22 = ssub.s32 %s14, %s21
    %p23 = scmp.eq.s32.totalorder %s22, 0
    %s25 = sadd.s32 %s24, 1
    %s26 = scalar_select %p23, %s24, %s25
    %p29 = pneg %p23
    %p30 = scmp.eq.s32.totalorder %s14, 1
    %p31 = por %p29, %p30
    %p32 = scmp.ne.s32.totalorder %s24, %s27
    %p33 = scmp.eq.s32.totalorder %s14, 0
    %p34 = por %p32, %p33
    %p35 = scmp.ne.s32.totalorder %s24, %s27
    %p36 = scmp.eq.s32.totalorder %s19, 1
    %p37 = por %p35, %p36
    %p38 = scmp.ne.s32.totalorder %s27, %s28
    %p39 = scmp.eq.s32.totalorder %s19, 0
    %p40 = por %p38, %p39
    %p41 = scmp.ne.s32.totalorder %s27, %s28
    %p42 = scmp.eq.s32.totalorder %s20, 1
    %p43 = por %p41, %p42
    %p45 = scmp.ne.s32.totalorder %s28, %s44
    %p46 = scmp.eq.s32.totalorder %s20, 0
    %p47 = por %p45, %p46
    %s48 = ssub.s32 %s14, %s21
    %p49 = scmp.eq.s32.totalorder %s48, 0
    %s51 = sadd.s32 %s50, 1
    %s52 = scalar_select %p49, %s50, %s51
    %p55 = pneg %p49
    %p56 = scmp.eq.s32.totalorder %s14, 1
    %p57 = por %p55, %p56
    %p58 = scmp.ne.s32.totalorder %s50, %s53
    %p59 = scmp.eq.s32.totalorder %s14, 0
    %p60 = por %p58, %p59
    %p61 = scmp.ne.s32.totalorder %s50, %s53
    %p62 = scmp.eq.s32.totalorder %s19, 1
    %p63 = por %p61, %p62
    %p64 = scmp.ne.s32.totalorder %s53, %s54
    %p65 = scmp.eq.s32.totalorder %s19, 0
    %p66 = por %p64, %p65
    %p67 = scmp.ne.s32.totalorder %s53, %s54
    %p68 = scmp.eq.s32.totalorder %s20, 1
    %p69 = por %p67, %p68
    %p71 = scmp.ne.s32.totalorder %s54, %s70
    %p72 = scmp.eq.s32.totalorder %s20, 0
    %p73 = por %p71, %p72
    %s75 = sadd.s32 %s74, 1
    %p78 = scmp.eq.s32.totalorder %s14, 1
    %p79 = scmp.ne.s32.totalorder %s74, %s76
    %p80 = scmp.eq.s32.totalorder %s14, 0
    %p81 = por %p79, %p80
    %p82 = scmp.ne.s32.totalorder %s74, %s76
    %p83 = scmp.eq.s32.totalorder %s19, 1
    %p84 = por %p82, %p83
    %p85 = scmp.ne.s32.totalorder %s76, %s77
    %p86 = scmp.eq.s32.totalorder %s19, 0
    %p87 = por %p85, %p86
    %p88 = scmp.ne.s32.totalorder %s76, %s77
    %p89 = scmp.eq.s32.totalorder %s20, 1
    %p90 = por %p88, %p89
    %p92 = scmp.ne.s32.totalorder %s77, %s91
    %p93 = scmp.eq.s32.totalorder %s20, 0
    %p94 = por %p92, %p93
    %s96 = sadd.s32 %s95, 1
    %p99 = scmp.eq.s32.totalorder %s14, 1
    %p100 = scmp.ne.s32.totalorder %s95, %s97
    %p101 = scmp.eq.s32.totalorder %s14, 0
    %p102 = por %p100, %p101
    %p103 = scmp.ne.s32.totalorder %s95, %s97
    %p104 = scmp.eq.s32.totalorder %s19, 1
    %p105 = por %p103, %p104
    %p106 = scmp.ne.s32.totalorder %s97, %s98
    %p107 = scmp.eq.s32.totalorder %s19, 0
    %p108 = por %p106, %p107
    %p109 = scmp.ne.s32.totalorder %s97, %s98
    %p110 = scmp.eq.s32.totalorder %s20, 1
    %p111 = por %p109, %p110
    %p113 = scmp.ne.s32.totalorder %s98, %s112
    %p114 = scmp.eq.s32.totalorder %s20, 0
    %p115 = por %p113, %p114
    %s117 = sadd.s32 %s116, 1
    %p120 = scmp.eq.s32.totalorder %s14, 1
    %p121 = scmp.ne.s32.totalorder %s116, %s118
    %p122 = scmp.eq.s32.totalorder %s14, 0
    %p123 = por %p121, %p122
    %p124 = scmp.ne.s32.totalorder %s116, %s118
    %p125 = scmp.eq.s32.totalorder %s19, 1
    %p126 = por %p124, %p125
    %p127 = scmp.ne.s32.totalorder %s118, %s119
    %p128 = scmp.eq.s32.totalorder %s19, 0
    %p129 = por %p127, %p128
    %p130 = scmp.ne.s32.totalorder %s118, %s119
    %p131 = scmp.eq.s32.totalorder %s20, 1
    %p132 = por %p130, %p131
    %p134 = scmp.ne.s32.totalorder %s119, %s133
    %p135 = scmp.eq.s32.totalorder %s20, 0
    %p136 = por %p134, %p135
    %s138 = sadd.s32 %s137, 1
    %p141 = scmp.eq.s32.totalorder %s14, 1
    %p142 = scmp.ne.s32.totalorder %s137, %s139
    %p143 = scmp.eq.s32.totalorder %s14, 0
    %p144 = por %p142, %p143
    %p145 = scmp.ne.s32.totalorder %s137, %s139
    %p146 = scmp.eq.s32.totalorder %s19, 1
    %p147 = por %p145, %p146
    %p148 = scmp.ne.s32.totalorder %s139, %s140
    %p149 = scmp.eq.s32.totalorder %s19, 0
    %p150 = por %p148, %p149
    %p151 = scmp.ne.s32.totalorder %s139, %s140
    %p152 = scmp.eq.s32.totalorder %s20, 1
    %p153 = por %p151, %p152
    %p155 = scmp.ne.s32.totalorder %s140, %s154
    %p156 = scmp.eq.s32.totalorder %s20, 0
    %p157 = por %p155, %p156
    %s159 = sadd.s32 %s158, 1
    %p162 = scmp.eq.s32.totalorder %s14, 1
    %p163 = scmp.ne.s32.totalorder %s158, %s160
    %p164 = scmp.eq.s32.totalorder %s14, 0
    %p165 = por %p163, %p164
    %p166 = scmp.ne.s32.totalorder %s158, %s160
    %p167 = scmp.eq.s32.totalorder %s19, 1
    %p168 = por %p166, %p167
    %p169 = scmp.ne.s32.totalorder %s160, %s161
    %p170 = scmp.eq.s32.totalorder %s19, 0
    %p171 = por %p169, %p170
    %p172 = scmp.ne.s32.totalorder %s160, %s161
    %p173 = scmp.eq.s32.totalorder %s20, 1
    %p174 = por %p172, %p173
    %p176 = scmp.ne.s32.totalorder %s161, %s175
    %p177 = scmp.eq.s32.totalorder %s20, 0
    %p178 = por %p176, %p177
    %s180 = sadd.s32 %s179, 1
    %p183 = scmp.eq.s32.totalorder %s14, 1
    %p184 = scmp.ne.s32.totalorder %s179, %s181
    %p185 = scmp.eq.s32.totalorder %s14, 0
    %p186 = por %p184, %p185
    %p187 = scmp.ne.s32.totalorder %s179, %s181
    %p188 = scmp.eq.s32.totalorder %s19, 1
    %p189 = por %p187, %p188
    %p190 = scmp.ne.s32.totalorder %s181, %s182
    %p191 = scmp.eq.s32.totalorder %s19, 0
    %p192 = por %p190, %p191
    %p193 = scmp.ne.s32.totalorder %s181, %s182
    %p194 = scmp.eq.s32.totalorder %s20, 1
    %p195 = por %p193, %p194
    %p197 = scmp.ne.s32.totalorder %s182, %s196
    %p198 = scmp.eq.s32.totalorder %s20, 0
    %p199 = por %p197, %p198
    %s200 = ssub.s32 %s14, %s21
    %p201 = scmp.eq.s32.totalorder %s200, 0
    %s203 = sadd.s32 %s202, 1
    %s204 = scalar_select %p201, %s202, %s203
    %p207 = pneg %p201
    %p208 = scmp.eq.s32.totalorder %s14, 1
    %p209 = por %p207, %p208
    %p210 = scmp.ne.s32.totalorder %s202, %s205
    %p211 = scmp.eq.s32.totalorder %s14, 0
    %p212 = por %p210, %p211
    %p213 = scmp.ne.s32.totalorder %s202, %s205
    %p214 = scmp.eq.s32.totalorder %s19, 1
    %p215 = por %p213, %p214
    %p216 = scmp.ne.s32.totalorder %s205, %s206
    %p217 = scmp.eq.s32.totalorder %s19, 0
    %p218 = por %p216, %p217
    %p219 = scmp.ne.s32.totalorder %s205, %s206
    %p220 = scmp.eq.s32.totalorder %s20, 1
    %p221 = por %p219, %p220
    %p223 = scmp.ne.s32.totalorder %s206, %s222
    %p224 = scmp.eq.s32.totalorder %s20, 0
    %p225 = por %p223, %p224
    %p226 = scmp.le.s32.totalorder 1, %s14
    %p227 = scmp.lt.s32.totalorder %s14, 3
    %p228 = pnand %p226, %p227
    %p229 = pneg %p228
    // Predicated region
    $region9: #{tpu_custom_call.1} parent=5 // pred_check
      _
    $region10: #{tpu_custom_call.1} parent=5 // pred_check_branch
      %231 = sbr.rel (%p228) target = $region12
    $region11: #{tpu_custom_call.1} parent=5 // pred_region
      %s232 = ssub.s32 %s14, 1
      // Predicated region
      $region13: #{tpu_custom_call.1} parent=11 // pred_check
        %p233 = pneg %p87
      $region14: #{tpu_custom_call.1} parent=11 // pred_check_branch
        %235 = sbr.rel (%p233) target = $region16
      $region15: #{tpu_custom_call.1} parent=11 // pred_region
        _
      $region16: #{tpu_custom_call.1} parent=11 // pred_fallthru
        _
      // Predicated region
      $region17: #{tpu_custom_call.1} parent=11 // pred_check
        %p236 = pneg %p108
      $region18: #{tpu_custom_call.1} parent=11 // pred_check_branch
        %238 = sbr.rel (%p236) target = $region20
      $region19: #{tpu_custom_call.1} parent=11 // pred_region
        _
      $region20: #{tpu_custom_call.1} parent=11 // pred_fallthru
        _
      // Predicated region
      $region21: #{tpu_custom_call.1} parent=11 // pred_check
        %p239 = pneg %p129
      $region22: #{tpu_custom_call.1} parent=11 // pred_check_branch
        %241 = sbr.rel (%p239) target = $region24
      $region23: #{tpu_custom_call.1} parent=11 // pred_region
        _
      $region24: #{tpu_custom_call.1} parent=11 // pred_fallthru
        _
      // Predicated region
      $region25: #{tpu_custom_call.1} parent=11 // pred_check
        %p242 = pneg %p150
      $region26: #{tpu_custom_call.1} parent=11 // pred_check_branch
        %244 = sbr.rel (%p242) target = $region28
      $region27: #{tpu_custom_call.1} parent=11 // pred_region
        _
      $region28: #{tpu_custom_call.1} parent=11 // pred_fallthru
        _
      // Predicated region
      $region29: #{tpu_custom_call.1} parent=11 // pred_check
        %p245 = pneg %p171
      $region30: #{tpu_custom_call.1} parent=11 // pred_check_branch
        %247 = sbr.rel (%p245) target = $region32
      $region31: #{tpu_custom_call.1} parent=11 // pred_region
        _
      $region32: #{tpu_custom_call.1} parent=11 // pred_fallthru
        _
      // Predicated region
      $region33: #{tpu_custom_call.1} parent=11 // pred_check
        %p248 = pneg %p192
      $region34: #{tpu_custom_call.1} parent=11 // pred_check_branch
        %250 = sbr.rel (%p248) target = $region36
      $region35: #{tpu_custom_call.1} parent=11 // pred_region
        _
      $region36: #{tpu_custom_call.1} parent=11 // pred_fallthru
        _
    $region12: #{tpu_custom_call.1} parent=5 // pred_fallthru
      _
    %p251 = scmp.lt.s32.totalorder %s14, 2
    // Predicated region
    $region37: #{tpu_custom_call.1} parent=5 // pred_check
      %p252 = pneg %p251
    $region38: #{tpu_custom_call.1} parent=5 // pred_check_branch
      %254 = sbr.rel (%p252) target = $region40
    $region39: #{tpu_custom_call.1} parent=5 // pred_region
      // Predicated region
      $region41: #{tpu_custom_call.1} parent=39 // pred_check
        %p255 = pneg %p34
      $region42: #{tpu_custom_call.1} parent=39 // pred_check_branch
        %257 = sbr.rel (%p255) target = $region44
      $region43: #{tpu_custom_call.1} parent=39 // pred_region
        %p258 = scmp.lt.s32.totalorder %s14, 1
        %s259 = scalar_select %p258, %s14, 1
        %s260 = smul.addr %s259, 32
        %s261 = smul.addr %s260, 8
        %s262 = scalar_lea.vmem %s0, %s261
      $region44: #{tpu_custom_call.1} parent=39 // pred_fallthru
        _
      // Predicated region
      $region45: #{tpu_custom_call.1} parent=39 // pred_check
        %p263 = pneg %p60
      $region46: #{tpu_custom_call.1} parent=39 // pred_check_branch
        %265 = sbr.rel (%p263) target = $region48
      $region47: #{tpu_custom_call.1} parent=39 // pred_region
        %p266 = scmp.lt.s32.totalorder %s14, 1
        %s267 = scalar_select %p266, %s14, 1
        %s268 = smul.addr %s267, 32
        %s269 = smul.addr %s268, 8
        %s270 = scalar_lea.vmem %s1, %s269
      $region48: #{tpu_custom_call.1} parent=39 // pred_fallthru
        _
    $region40: #{tpu_custom_call.1} parent=5 // pred_fallthru
      _
    %p271 = scmp.le.s32.totalorder 1, %s14
    %p272 = scmp.lt.s32.totalorder %s14, 3
    %p273 = pnand %p271, %p272
    %p274 = pneg %p273
    // Predicated region
    $region49: #{tpu_custom_call.1} parent=5 // pred_check
      _
    $region50: #{tpu_custom_call.1} parent=5 // pred_check_branch
      %276 = sbr.rel (%p273) target = $region52
    $region51: #{tpu_custom_call.1} parent=5 // pred_region
      %s277 = ssub.s32 %s14, 1
      %p278 = scmp.lt.s32.totalorder %s19, 1
      %s279 = scalar_select %p278, %s19, 1
      %s280 = smul.addr %s279, 32
      %s281 = smul.addr %s280, 8
      %s282 = scalar_lea.vmem %s0, %s281
      %p283 = pneg %p40
      %p284 = pneg %p37
      %p285 = scmp.lt.s32.totalorder %s19, 1
      %s286 = scalar_select %p285, %s19, 1
      %s287 = smul.addr %s286, 32
      %s288 = smul.addr %s287, 8
      %s289 = scalar_lea.vmem %s1, %s288
      %p290 = pneg %p66
      %p291 = pneg %p63
      %p292 = pneg %p87
      %p293 = pneg %p84
      %p294 = pneg %p108
      %p295 = pneg %p105
      %p296 = pneg %p129
      %p297 = pneg %p126
      %p298 = pneg %p150
      %p299 = pneg %p147
      %p300 = pneg %p171
      %p301 = pneg %p168
      %p302 = pneg %p192
      %p303 = pneg %p189
      %p304 = pneg %p218
      %p305 = pneg %p215
      %p306 = scmp.lt.s32.totalorder %s19, 1
      %s307 = scalar_select %p306, %s19, 1
      %s308 = smul.addr %s307, 32
      %s309 = smul.addr %s308, 8
      %s310 = scalar_lea.vmem %s8, %s309
      %p311 = scmp.lt.s32.totalorder %s19, 1
      %s312 = scalar_select %p311, %s19, 1
      %s313 = smul.addr %s312, 32
      %s314 = smul.addr %s313, 8
      %s315 = scalar_lea.vmem %s0, %s314
      %p316 = scmp.lt.s32.totalorder %s19, 1
      %s317 = scalar_select %p316, %s19, 1
      %s318 = smul.addr %s317, 32
      %s319 = smul.addr %s318, 8
      %s320 = scalar_lea.vmem %s1, %s319
      %p321 = scmp.lt.s32.totalorder %s19, 1
      %s322 = scalar_select %p321, %s19, 1
      %s323 = smul.addr %s322, 32
      %s324 = smul.addr %s323, 8
      %s325 = scalar_lea.vmem %s8, %s324
      %v327 = vld [vmem:[%s315] sm:$0xff]
      %v328 = vld [vmem:[%s315 + $0x8] sm:$0xff]
      %v329 = vld [vmem:[%s315 + $0x10] sm:$0xff]
      %v330 = vld [vmem:[%s315 + $0x18] sm:$0xff]
      %v331 = vld [vmem:[%s315 + $0x20] sm:$0xff]
      %v332 = vld [vmem:[%s315 + $0x28] sm:$0xff]
      %v333 = vld [vmem:[%s315 + $0x30] sm:$0xff]
      %v334 = vld [vmem:[%s315 + $0x38] sm:$0xff]
      %v335 = vld [vmem:[%s315 + $0x40] sm:$0xff]
      %v336 = vld [vmem:[%s315 + $0x48] sm:$0xff]
      %v337 = vld [vmem:[%s315 + $0x50] sm:$0xff]
      %v338 = vld [vmem:[%s315 + $0x58] sm:$0xff]
      %v339 = vld [vmem:[%s315 + $0x60] sm:$0xff]
      %v340 = vld [vmem:[%s315 + $0x68] sm:$0xff]
      %v341 = vld [vmem:[%s315 + $0x70] sm:$0xff]
      %v342 = vld [vmem:[%s315 + $0x78] sm:$0xff]
      %v343 = vld [vmem:[%s315 + $0x80] sm:$0xff]
      %v344 = vld [vmem:[%s315 + $0x88] sm:$0xff]
      %v345 = vld [vmem:[%s315 + $0x90] sm:$0xff]
      %v346 = vld [vmem:[%s315 + $0x98] sm:$0xff]
      %v347 = vld [vmem:[%s315 + $0xa0] sm:$0xff]
      %v348 = vld [vmem:[%s315 + $0xa8] sm:$0xff]
      %v349 = vld [vmem:[%s315 + $0xb0] sm:$0xff]
      %v350 = vld [vmem:[%s315 + $0xb8] sm:$0xff]
      %v351 = vld [vmem:[%s315 + $0xc0] sm:$0xff]
      %v352 = vld [vmem:[%s315 + $0xc8] sm:$0xff]
      %v353 = vld [vmem:[%s315 + $0xd0] sm:$0xff]
      %v354 = vld [vmem:[%s315 + $0xd8] sm:$0xff]
      %v355 = vld [vmem:[%s315 + $0xe0] sm:$0xff]
      %v356 = vld [vmem:[%s315 + $0xe8] sm:$0xff]
      %v357 = vld [vmem:[%s315 + $0xf0] sm:$0xff]
      %v358 = vld [vmem:[%s315 + $0xf8] sm:$0xff]
      %v359 = vld [vmem:[%s2] sm:$0x1]
      %v361 = vlaneseq
      %v362 = vshrl.u32 %v361, 7
      %v363 = vsub.s32 0, %v362
      %v364 = vrot.slane %v359, %v363
      %v366 = vmul.f32 %v327, %v364
      %v367 = vmul.f32 %v328, %v364
      %v368 = vmul.f32 %v329, %v364
      %v369 = vmul.f32 %v330, %v364
      %v370 = vmul.f32 %v331, %v364
      %v371 = vmul.f32 %v332, %v364
      %v372 = vmul.f32 %v333, %v364
      %v373 = vmul.f32 %v334, %v364
      %v374 = vmul.f32 %v335, %v364
      %v375 = vmul.f32 %v336, %v364
      %v376 = vmul.f32 %v337, %v364
      %v377 = vmul.f32 %v338, %v364
      %v378 = vmul.f32 %v339, %v364
      %v379 = vmul.f32 %v340, %v364
      %v380 = vmul.f32 %v341, %v364
      %v381 = vmul.f32 %v342, %v364
      %v382 = vmul.f32 %v343, %v364
      %v383 = vmul.f32 %v344, %v364
      %v384 = vmul.f32 %v345, %v364
      %v385 = vmul.f32 %v346, %v364
      %v386 = vmul.f32 %v347, %v364
      %v387 = vmul.f32 %v348, %v364
      %v388 = vmul.f32 %v349, %v364
      %v389 = vmul.f32 %v350, %v364
      %v390 = vmul.f32 %v351, %v364
      %v391 = vmul.f32 %v352, %v364
      %v392 = vmul.f32 %v353, %v364
      %v393 = vmul.f32 %v354, %v364
      %v394 = vmul.f32 %v355, %v364
      %v395 = vmul.f32 %v356, %v364
      %v396 = vmul.f32 %v357, %v364
      %v397 = vmul.f32 %v358, %v364
      %v398 = vld [vmem:[%s3] sm:$0x1]
      %v400 = vlaneseq
      %v401 = vshrl.u32 %v400, 7
      %v402 = vsub.s32 0, %v401
      %v403 = vrot.slane %v398, %v402
      %v405 = vadd.f32 %v366, %v403
      %v406 = vadd.f32 %v367, %v403
      %v407 = vadd.f32 %v368, %v403
      %v408 = vadd.f32 %v369, %v403
      %v409 = vadd.f32 %v370, %v403
      %v410 = vadd.f32 %v371, %v403
      %v411 = vadd.f32 %v372, %v403
      %v412 = vadd.f32 %v373, %v403
      %v413 = vadd.f32 %v374, %v403
      %v414 = vadd.f32 %v375, %v403
      %v415 = vadd.f32 %v376, %v403
      %v416 = vadd.f32 %v377, %v403
      %v417 = vadd.f32 %v378, %v403
      %v418 = vadd.f32 %v379, %v403
      %v419 = vadd.f32 %v380, %v403
      %v420 = vadd.f32 %v381, %v403
      %v421 = vadd.f32 %v382, %v403
      %v422 = vadd.f32 %v383, %v403
      %v423 = vadd.f32 %v384, %v403
      %v424 = vadd.f32 %v385, %v403
      %v425 = vadd.f32 %v386, %v403
      %v426 = vadd.f32 %v387, %v403
      %v427 = vadd.f32 %v388, %v403
      %v428 = vadd.f32 %v389, %v403
      %v429 = vadd.f32 %v390, %v403
      %v430 = vadd.f32 %v391, %v403
      %v431 = vadd.f32 %v392, %v403
      %v432 = vadd.f32 %v393, %v403
      %v433 = vadd.f32 %v394, %v403
      %v434 = vadd.f32 %v395, %v403
      %v435 = vadd.f32 %v396, %v403
      %v436 = vadd.f32 %v397, %v403
      %v437 = vmax.f32 %v405, 0.0
      %v438 = vmax.f32 %v406, 0.0
      %v439 = vmax.f32 %v407, 0.0
      %v440 = vmax.f32 %v408, 0.0
      %v441 = vmax.f32 %v409, 0.0
      %v442 = vmax.f32 %v410, 0.0
      %v443 = vmax.f32 %v411, 0.0
      %v444 = vmax.f32 %v412, 0.0
      %v445 = vmax.f32 %v413, 0.0
      %v446 = vmax.f32 %v414, 0.0
      %v447 = vmax.f32 %v415, 0.0
      %v448 = vmax.f32 %v416, 0.0
      %v449 = vmax.f32 %v417, 0.0
      %v450 = vmax.f32 %v418, 0.0
      %v451 = vmax.f32 %v419, 0.0
      %v452 = vmax.f32 %v420, 0.0
      %v453 = vmax.f32 %v421, 0.0
      %v454 = vmax.f32 %v422, 0.0
      %v455 = vmax.f32 %v423, 0.0
      %v456 = vmax.f32 %v424, 0.0
      %v457 = vmax.f32 %v425, 0.0
      %v458 = vmax.f32 %v426, 0.0
      %v459 = vmax.f32 %v427, 0.0
      %v460 = vmax.f32 %v428, 0.0
      %v461 = vmax.f32 %v429, 0.0
      %v462 = vmax.f32 %v430, 0.0
      %v463 = vmax.f32 %v431, 0.0
      %v464 = vmax.f32 %v432, 0.0
      %v465 = vmax.f32 %v433, 0.0
      %v466 = vmax.f32 %v434, 0.0
      %v467 = vmax.f32 %v435, 0.0
      %v468 = vmax.f32 %v436, 0.0
      %v469 = vpack.c.bf16 %v438, %v437
      %v470 = vpack.c.bf16 %v440, %v439
      %v471 = vpack.c.bf16 %v442, %v441
      %v472 = vpack.c.bf16 %v444, %v443
      %v473 = vpack.c.bf16 %v446, %v445
      %v474 = vpack.c.bf16 %v448, %v447
      %v475 = vpack.c.bf16 %v450, %v449
      %v476 = vpack.c.bf16 %v452, %v451
      %v477 = vpack.c.bf16 %v454, %v453
      %v478 = vpack.c.bf16 %v456, %v455
      %v479 = vpack.c.bf16 %v458, %v457
      %v480 = vpack.c.bf16 %v460, %v459
      %v481 = vpack.c.bf16 %v462, %v461
      %v482 = vpack.c.bf16 %v464, %v463
      %v483 = vpack.c.bf16 %v466, %v465
      %v484 = vpack.c.bf16 %v468, %v467
      %v485 = vld [vmem:[%s4] sm:$0x3]
      %v486 = vld [vmem:[%s320] sm:$0xff]
      %v487 = vld [vmem:[%s320 + $0x8] sm:$0xff]
      %v488 = vld [vmem:[%s320 + $0x10] sm:$0xff]
      %v489 = vld [vmem:[%s320 + $0x18] sm:$0xff]
      %v490 = vld [vmem:[%s320 + $0x20] sm:$0xff]
      %v491 = vld [vmem:[%s320 + $0x28] sm:$0xff]
      %v492 = vld [vmem:[%s320 + $0x30] sm:$0xff]
      %v493 = vld [vmem:[%s320 + $0x38] sm:$0xff]
      %v494 = vld [vmem:[%s320 + $0x40] sm:$0xff]
      %v495 = vld [vmem:[%s320 + $0x48] sm:$0xff]
      %v496 = vld [vmem:[%s320 + $0x50] sm:$0xff]
      %v497 = vld [vmem:[%s320 + $0x58] sm:$0xff]
      %v498 = vld [vmem:[%s320 + $0x60] sm:$0xff]
      %v499 = vld [vmem:[%s320 + $0x68] sm:$0xff]
      %v500 = vld [vmem:[%s320 + $0x70] sm:$0xff]
      %v501 = vld [vmem:[%s320 + $0x78] sm:$0xff]
      %v502 = vld [vmem:[%s320 + $0x80] sm:$0xff]
      %v503 = vld [vmem:[%s320 + $0x88] sm:$0xff]
      %v504 = vld [vmem:[%s320 + $0x90] sm:$0xff]
      %v505 = vld [vmem:[%s320 + $0x98] sm:$0xff]
      %v506 = vld [vmem:[%s320 + $0xa0] sm:$0xff]
      %v507 = vld [vmem:[%s320 + $0xa8] sm:$0xff]
      %v508 = vld [vmem:[%s320 + $0xb0] sm:$0xff]
      %v509 = vld [vmem:[%s320 + $0xb8] sm:$0xff]
      %v510 = vld [vmem:[%s320 + $0xc0] sm:$0xff]
      %v511 = vld [vmem:[%s320 + $0xc8] sm:$0xff]
      %v512 = vld [vmem:[%s320 + $0xd0] sm:$0xff]
      %v513 = vld [vmem:[%s320 + $0xd8] sm:$0xff]
      %v514 = vld [vmem:[%s320 + $0xe0] sm:$0xff]
      %v515 = vld [vmem:[%s320 + $0xe8] sm:$0xff]
      %v516 = vld [vmem:[%s320 + $0xf0] sm:$0xff]
      %v517 = vld [vmem:[%s320 + $0xf8] sm:$0xff]
      %518 = vrot.lane.b32.xlu0 %v364, 124
      %v519 = vpop.permute.xlu0 %518
      %v521 = vmul.f32 %v486, %v519
      %v522 = vmul.f32 %v487, %v519
      %v523 = vmul.f32 %v488, %v519
      %v524 = vmul.f32 %v489, %v519
      %v525 = vmul.f32 %v490, %v519
      %v526 = vmul.f32 %v491, %v519
      %v527 = vmul.f32 %v492, %v519
      %v528 = vmul.f32 %v493, %v519
      %v529 = vmul.f32 %v494, %v519
      %v530 = vmul.f32 %v495, %v519
      %v531 = vmul.f32 %v496, %v519
      %v532 = vmul.f32 %v497, %v519
      %v533 = vmul.f32 %v498, %v519
      %v534 = vmul.f32 %v499, %v519
      %v535 = vmul.f32 %v500, %v519
      %v536 = vmul.f32 %v501, %v519
      %v537 = vmul.f32 %v502, %v519
      %v538 = vmul.f32 %v503, %v519
      %v539 = vmul.f32 %v504, %v519
      %v540 = vmul.f32 %v505, %v519
      %v541 = vmul.f32 %v506, %v519
      %v542 = vmul.f32 %v507, %v519
      %v543 = vmul.f32 %v508, %v519
      %v544 = vmul.f32 %v509, %v519
      %v545 = vmul.f32 %v510, %v519
      %v546 = vmul.f32 %v511, %v519
      %v547 = vmul.f32 %v512, %v519
      %v548 = vmul.f32 %v513, %v519
      %v549 = vmul.f32 %v514, %v519
      %v550 = vmul.f32 %v515, %v519
      %v551 = vmul.f32 %v516, %v519
      %v552 = vmul.f32 %v517, %v519
      %553 = vrot.lane.b32.xlu0 %v403, 124
      %v554 = vpop.permute.xlu0 %553
      %v556 = vadd.f32 %v521, %v554
      %v557 = vadd.f32 %v522, %v554
      %v558 = vadd.f32 %v523, %v554
      %v559 = vadd.f32 %v524, %v554
      %v560 = vadd.f32 %v525, %v554
      %v561 = vadd.f32 %v526, %v554
      %v562 = vadd.f32 %v527, %v554
      %v563 = vadd.f32 %v528, %v554
      %v564 = vadd.f32 %v529, %v554
      %v565 = vadd.f32 %v530, %v554
      %v566 = vadd.f32 %v531, %v554
      %v567 = vadd.f32 %v532, %v554
      %v568 = vadd.f32 %v533, %v554
      %v569 = vadd.f32 %v534, %v554
      %v570 = vadd.f32 %v535, %v554
      %v571 = vadd.f32 %v536, %v554
      %v572 = vadd.f32 %v537, %v554
      %v573 = vadd.f32 %v538, %v554
      %v574 = vadd.f32 %v539, %v554
      %v575 = vadd.f32 %v540, %v554
      %v576 = vadd.f32 %v541, %v554
      %v577 = vadd.f32 %v542, %v554
      %v578 = vadd.f32 %v543, %v554
      %v579 = vadd.f32 %v544, %v554
      %v580 = vadd.f32 %v545, %v554
      %v581 = vadd.f32 %v546, %v554
      %v582 = vadd.f32 %v547, %v554
      %v583 = vadd.f32 %v548, %v554
      %v584 = vadd.f32 %v549, %v554
      %v585 = vadd.f32 %v550, %v554
      %v586 = vadd.f32 %v551, %v554
      %v587 = vadd.f32 %v552, %v554
      %v588 = vmax.f32 %v556, 0.0
      %v589 = vmax.f32 %v557, 0.0
      %v590 = vmax.f32 %v558, 0.0
      %v591 = vmax.f32 %v559, 0.0
      %v592 = vmax.f32 %v560, 0.0
      %v593 = vmax.f32 %v561, 0.0
      %v594 = vmax.f32 %v562, 0.0
      %v595 = vmax.f32 %v563, 0.0
      %v596 = vmax.f32 %v564, 0.0
      %v597 = vmax.f32 %v565, 0.0
      %v598 = vmax.f32 %v566, 0.0
      %v599 = vmax.f32 %v567, 0.0
      %v600 = vmax.f32 %v568, 0.0
      %v601 = vmax.f32 %v569, 0.0
      %v602 = vmax.f32 %v570, 0.0
      %v603 = vmax.f32 %v571, 0.0
      %v604 = vmax.f32 %v572, 0.0
      %v605 = vmax.f32 %v573, 0.0
      %v606 = vmax.f32 %v574, 0.0
      %v607 = vmax.f32 %v575, 0.0
      %v608 = vmax.f32 %v576, 0.0
      %v609 = vmax.f32 %v577, 0.0
      %v610 = vmax.f32 %v578, 0.0
      %v611 = vmax.f32 %v579, 0.0
      %v612 = vmax.f32 %v580, 0.0
      %v613 = vmax.f32 %v581, 0.0
      %v614 = vmax.f32 %v582, 0.0
      %v615 = vmax.f32 %v583, 0.0
      %v616 = vmax.f32 %v584, 0.0
      %v617 = vmax.f32 %v585, 0.0
      %v618 = vmax.f32 %v586, 0.0
      %v619 = vmax.f32 %v587, 0.0
      %v620 = vpack.c.bf16 %v589, %v588
      %v621 = vpack.c.bf16 %v591, %v590
      %v622 = vpack.c.bf16 %v593, %v592
      %v623 = vpack.c.bf16 %v595, %v594
      %v624 = vpack.c.bf16 %v597, %v596
      %v625 = vpack.c.bf16 %v599, %v598
      %v626 = vpack.c.bf16 %v601, %v600
      %v627 = vpack.c.bf16 %v603, %v602
      %v628 = vpack.c.bf16 %v605, %v604
      %v629 = vpack.c.bf16 %v607, %v606
      %v630 = vpack.c.bf16 %v609, %v608
      %v631 = vpack.c.bf16 %v611, %v610
      %v632 = vpack.c.bf16 %v613, %v612
      %v633 = vpack.c.bf16 %v615, %v614
      %v634 = vpack.c.bf16 %v617, %v616
      %v635 = vpack.c.bf16 %v619, %v618
      %v636 = vld [vmem:[%s4] sm:$0xc]
      %v638 = vunpack.c.l.b16 %v636
      %v639 = vpack.c.b16 %v638, %v638
      %v640 = vrot.slane %v639, 2
      %vm641 = vcmask 31744
      %v643 = vsel %vm641, %v620, 0
      %v646 = vsel %vm641, %v621, 0
      %v649 = vsel %vm641, %v622, 0
      %v652 = vsel %vm641, %v623, 0
      %v655 = vsel %vm641, %v624, 0
      %v658 = vsel %vm641, %v625, 0
      %v661 = vsel %vm641, %v626, 0
      %v664 = vsel %vm641, %v627, 0
      %v667 = vsel %vm641, %v628, 0
      %v670 = vsel %vm641, %v629, 0
      %v673 = vsel %vm641, %v630, 0
      %v676 = vsel %vm641, %v631, 0
      %v679 = vsel %vm641, %v632, 0
      %v682 = vsel %vm641, %v633, 0
      %v685 = vsel %vm641, %v634, 0
      %v688 = vsel %vm641, %v635, 0
      %vm690 = vcmask 1041408
      %v692 = vsel %vm690, %v640, 0
      %694 = vmatprep.subr.bf16.mxu0 0
      %695 = vmatpush1.bf16.msra.mxu0 %v692
      %696 = vmatprep.subr.bf16.mxu0 0
      %697 = vmatpush1.bf16.msra.mxu0 0
      %698 = vmatprep.subr.bf16.mxu0 0
      %699 = vmatpush1.bf16.msra.mxu0 0
      %700 = vmatprep.subr.bf16.mxu0 0
      %701 = vmatpush1.bf16.msra.mxu0 0
      %702 = vmatprep.subr.bf16.mxu0 0
      %703 = vmatpush1.bf16.msra.mxu0 0
      %704 = vmatprep.subr.bf16.mxu0 0
      %705 = vmatpush1.bf16.msra.mxu0 0
      %706 = vmatprep.subr.bf16.mxu0 0
      %707 = vmatpush1.bf16.msra.mxu0 0
      %708 = vmatprep.subr.bf16.mxu0 0
      %709 = vmatpush1.bf16.msra.mxu0 0
      %710 = vmatprep.subr.bf16.mxu0 0
      %711 = vmatpush1.bf16.msra.mxu0 0
      %712 = vmatprep.subr.bf16.mxu0 0
      %713 = vmatpush1.bf16.msra.mxu0 0
      %714 = vmatprep.subr.bf16.mxu0 0
      %715 = vmatpush1.bf16.msra.mxu0 0
      %716 = vmatprep.subr.bf16.mxu0 0
      %717 = vmatpush1.bf16.msra.mxu0 0
      %718 = vmatprep.subr.bf16.mxu0 0
      %719 = vmatpush1.bf16.msra.mxu0 0
      %720 = vmatprep.subr.bf16.mxu0 0
      %721 = vmatpush1.bf16.msra.mxu0 0
      %722 = vmatprep.subr.bf16.mxu0 0
      %723 = vmatpush1.bf16.msra.mxu0 0
      %724 = vmatprep.subr.bf16.mxu0 0
      %725 = vmatpush1.bf16.msra.mxu0 0
      %726 = vmatprep.mubr.bf16.mxu0 0
      %727 = vmatmul.mubr.bf16.gmra.mrb[0].mxu0 %v643
      %v728 = vpop.f32.mrb[0].mxu0
      %v729 = vadd.f32 0.0, %v728
      %v730 = vpop.f32.mrb[0].mxu0
      %v731 = vpop.f32.mrb[0].mxu0
      %v732 = vadd.f32 0.0, %v731
      %v733 = vpop.f32.mrb[0].mxu0
      %734 = vmatprep.mubr.bf16.mxu0 0
      %735 = vmatmul.mubr.bf16.gmra.mrb[0].mxu0 %v646
      %v736 = vpop.f32.mrb[0].mxu0
      %v737 = vadd.f32 0.0, %v736
      %v738 = vpop.f32.mrb[0].mxu0
      %v739 = vpop.f32.mrb[0].mxu0
      %v740 = vadd.f32 0.0, %v739
      %v741 = vpop.f32.mrb[0].mxu0
      %742 = vmatprep.mubr.bf16.mxu0 0
      %743 = vmatmul.mubr.bf16.gmra.mrb[0].mxu0 %v649
      %v744 = vpop.f32.mrb[0].mxu0
      %v745 = vadd.f32 0.0, %v744
      %v746 = vpop.f32.mrb[0].mxu0
      %v747 = vpop.f32.mrb[0].mxu0
      %v748 = vadd.f32 0.0, %v747
      %v749 = vpop.f32.mrb[0].mxu0
      %750 = vmatprep.mubr.bf16.mxu0 0
      %751 = vmatmul.mubr.bf16.gmra.mrb[0].mxu0 %v652
      %v752 = vpop.f32.mrb[0].mxu0
      %v753 = vadd.f32 0.0, %v752
      %v754 = vpop.f32.mrb[0].mxu0
      %v755 = vpop.f32.mrb[0].mxu0
      %v756 = vadd.f32 0.0, %v755
      %v757 = vpop.f32.mrb[0].mxu0
      %758 = vmatprep.mubr.bf16.mxu0 0
      %759 = vmatmul.mubr.bf16.gmra.mrb[0].mxu0 %v655
      %v760 = vpop.f32.mrb[0].mxu0
      %v761 = vadd.f32 0.0, %v760
      %v762 = vpop.f32.mrb[0].mxu0
      %v763 = vpop.f32.mrb[0].mxu0
      %v764 = vadd.f32 0.0, %v763
      %v765 = vpop.f32.mrb[0].mxu0
      %766 = vmatprep.mubr.bf16.mxu0 0
      %767 = vmatmul.mubr.bf16.gmra.mrb[0].mxu0 %v658
      %v768 = vpop.f32.mrb[0].mxu0
      %v769 = vadd.f32 0.0, %v768
      %v770 = vpop.f32.mrb[0].mxu0
      %v771 = vpop.f32.mrb[0].mxu0
      %v772 = vadd.f32 0.0, %v771
      %v773 = vpop.f32.mrb[0].mxu0
      %774 = vmatprep.mubr.bf16.mxu0 0
      %775 = vmatmul.mubr.bf16.gmra.mrb[0].mxu0 %v661
      %v776 = vpop.f32.mrb[0].mxu0
      %v777 = vadd.f32 0.0, %v776
      %v778 = vpop.f32.mrb[0].mxu0
      %v779 = vpop.f32.mrb[0].mxu0
      %v780 = vadd.f32 0.0, %v779
      %v781 = vpop.f32.mrb[0].mxu0
      %782 = vmatprep.mubr.bf16.mxu0 0
      %783 = vmatmul.mubr.bf16.gmra.mrb[0].mxu0 %v664
      %v784 = vpop.f32.mrb[0].mxu0
      %v785 = vadd.f32 0.0, %v784
      %v786 = vpop.f32.mrb[0].mxu0
      %v787 = vpop.f32.mrb[0].mxu0
      %v788 = vadd.f32 0.0, %v787
      %v789 = vpop.f32.mrb[0].mxu0
      %790 = vmatprep.mubr.bf16.mxu0 0
      %791 = vmatmul.mubr.bf16.gmra.mrb[0].mxu0 %v667
      %v792 = vpop.f32.mrb[0].mxu0
      %v793 = vadd.f32 0.0, %v792
      %v794 = vpop.f32.mrb[0].mxu0
      %v795 = vpop.f32.mrb[0].mxu0
      %v796 = vadd.f32 0.0, %v795
      %v797 = vpop.f32.mrb[0].mxu0
      %798 = vmatprep.mubr.bf16.mxu0 0
      %799 = vmatmul.mubr.bf16.gmra.mrb[0].mxu0 %v670
      %v800 = vpop.f32.mrb[0].mxu0
      %v801 = vadd.f32 0.0, %v800
      %v802 = vpop.f32.mrb[0].mxu0
      %v803 = vpop.f32.mrb[0].mxu0
      %v804 = vadd.f32 0.0, %v803
      %v805 = vpop.f32.mrb[0].mxu0
      %806 = vmatprep.mubr.bf16.mxu0 0
      %807 = vmatmul.mubr.bf16.gmra.mrb[0].mxu0 %v673
      %v808 = vpop.f32.mrb[0].mxu0
      %v809 = vadd.f32 0.0, %v808
      %v810 = vpop.f32.mrb[0].mxu0
      %v811 = vpop.f32.mrb[0].mxu0
      %v812 = vadd.f32 0.0, %v811
      %v813 = vpop.f32.mrb[0].mxu0
      %814 = vmatprep.mubr.bf16.mxu0 0
      %815 = vmatmul.mubr.bf16.gmra.mrb[0].mxu0 %v676
      %v816 = vpop.f32.mrb[0].mxu0
      %v817 = vadd.f32 0.0, %v816
      %v818 = vpop.f32.mrb[0].mxu0
      %v819 = vpop.f32.mrb[0].mxu0
      %v820 = vadd.f32 0.0, %v819
      %v821 = vpop.f32.mrb[0].mxu0
      %822 = vmatprep.mubr.bf16.mxu0 0
      %823 = vmatmul.mubr.bf16.gmra.mrb[0].mxu0 %v679
      %v824 = vpop.f32.mrb[0].mxu0
      %v825 = vadd.f32 0.0, %v824
      %v826 = vpop.f32.mrb[0].mxu0
      %v827 = vpop.f32.mrb[0].mxu0
      %v828 = vadd.f32 0.0, %v827
      %v829 = vpop.f32.mrb[0].mxu0
      %830 = vmatprep.mubr.bf16.mxu0 0
      %831 = vmatmul.mubr.bf16.gmra.mrb[0].mxu0 %v682
      %v832 = vpop.f32.mrb[0].mxu0
      %v833 = vadd.f32 0.0, %v832
      %v834 = vpop.f32.mrb[0].mxu0
      %v835 = vpop.f32.mrb[0].mxu0
      %v836 = vadd.f32 0.0, %v835
      %v837 = vpop.f32.mrb[0].mxu0
      %838 = vmatprep.mubr.bf16.mxu0 0
      %839 = vmatmul.mubr.bf16.gmra.mrb[0].mxu0 %v685
      %v840 = vpop.f32.mrb[0].mxu0
      %v841 = vadd.f32 0.0, %v840
      %v842 = vpop.f32.mrb[0].mxu0
      %v843 = vpop.f32.mrb[0].mxu0
      %v844 = vadd.f32 0.0, %v843
      %v845 = vpop.f32.mrb[0].mxu0
      %846 = vmatprep.mubr.bf16.mxu0 0
      %847 = vmatmul.mubr.bf16.gmra.mrb[0].mxu0 %v688
      %v848 = vpop.f32.mrb[0].mxu0
      %v849 = vadd.f32 0.0, %v848
      %v850 = vpop.f32.mrb[0].mxu0
      %v851 = vpop.f32.mrb[0].mxu0
      %v852 = vadd.f32 0.0, %v851
      %v853 = vpop.f32.mrb[0].mxu0
      %854 = vdwg.mxu0
      %v856 = vsel %vm641, %v469, 0
      %v859 = vsel %vm641, %v470, 0
      %v862 = vsel %vm641, %v471, 0
      %v865 = vsel %vm641, %v472, 0
      %v868 = vsel %vm641, %v473, 0
      %v871 = vsel %vm641, %v474, 0
      %v874 = vsel %vm641, %v475, 0
      %v877 = vsel %vm641, %v476, 0
      %v880 = vsel %vm641, %v477, 0
      %v883 = vsel %vm641, %v478, 0
      %v886 = vsel %vm641, %v479, 0
      %v889 = vsel %vm641, %v480, 0
      %v892 = vsel %vm641, %v481, 0
      %v895 = vsel %vm641, %v482, 0
      %v898 = vsel %vm641, %v483, 0
      %v901 = vsel %vm641, %v484, 0
      %v904 = vsel %vm690, %v485, 0
      %906 = vmatprep.subr.bf16.mxu0 0
      %907 = vmatpush1.bf16.msra.mxu0 %v904
      %908 = vmatprep.subr.bf16.mxu0 0
      %909 = vmatpush1.bf16.msra.mxu0 0
      %910 = vmatprep.subr.bf16.mxu0 0
      %911 = vmatpush1.bf16.msra.mxu0 0
      %912 = vmatprep.subr.bf16.mxu0 0
      %913 = vmatpush1.bf16.msra.mxu0 0
      %914 = vmatprep.subr.bf16.mxu0 0
      %915 = vmatpush1.bf16.msra.mxu0 0
      %916 = vmatprep.subr.bf16.mxu0 0
      %917 = vmatpush1.bf16.msra.mxu0 0
      %918 = vmatprep.subr.bf16.mxu0 0
      %919 = vmatpush1.bf16.msra.mxu0 0
      %920 = vmatprep.subr.bf16.mxu0 0
      %921 = vmatpush1.bf16.msra.mxu0 0
      %922 = vmatprep.subr.bf16.mxu0 0
      %923 = vmatpush1.bf16.msra.mxu0 0
      %924 = vmatprep.subr.bf16.mxu0 0
      %925 = vmatpush1.bf16.msra.mxu0 0
      %926 = vmatprep.subr.bf16.mxu0 0
      %927 = vmatpush1.bf16.msra.mxu0 0
      %928 = vmatprep.subr.bf16.mxu0 0
      %929 = vmatpush1.bf16.msra.mxu0 0
      %930 = vmatprep.subr.bf16.mxu0 0
      %931 = vmatpush1.bf16.msra.mxu0 0
      %932 = vmatprep.subr.bf16.mxu0 0
      %933 = vmatpush1.bf16.msra.mxu0 0
      %934 = vmatprep.subr.bf16.mxu0 0
      %935 = vmatpush1.bf16.msra.mxu0 0
      %936 = vmatprep.subr.bf16.mxu0 0
      %937 = vmatpush1.bf16.msra.mxu0 0
      %938 = vmatprep.mubr.bf16.mxu0 0
      %939 = vmatmul.mubr.bf16.gmra.mrb[0].mxu0 %v856
      %v940 = vpop.f32.mrb[0].mxu0
      %v941 = vadd.f32 %v729, %v940
      %v942 = vpop.f32.mrb[0].mxu0
      %v943 = vpop.f32.mrb[0].mxu0
      %v944 = vadd.f32 %v732, %v943
      %v945 = vpop.f32.mrb[0].mxu0
      %946 = vmatprep.mubr.bf16.mxu0 0
      %947 = vmatmul.mubr.bf16.gmra.mrb[0].mxu0 %v859
      %v948 = vpop.f32.mrb[0].mxu0
      %v949 = vadd.f32 %v737, %v948
      %v950 = vpop.f32.mrb[0].mxu0
      %v951 = vpop.f32.mrb[0].mxu0
      %v952 = vadd.f32 %v740, %v951
      %v953 = vpop.f32.mrb[0].mxu0
      %954 = vmatprep.mubr.bf16.mxu0 0
      %955 = vmatmul.mubr.bf16.gmra.mrb[0].mxu0 %v862
      %v956 = vpop.f32.mrb[0].mxu0
      %v957 = vadd.f32 %v745, %v956
      %v958 = vpop.f32.mrb[0].mxu0
      %v959 = vpop.f32.mrb[0].mxu0
      %v960 = vadd.f32 %v748, %v959
      %v961 = vpop.f32.mrb[0].mxu0
      %962 = vmatprep.mubr.bf16.mxu0 0
      %963 = vmatmul.mubr.bf16.gmra.mrb[0].mxu0 %v865
      %v964 = vpop.f32.mrb[0].mxu0
      %v965 = vadd.f32 %v753, %v964
      %v966 = vpop.f32.mrb[0].mxu0
      %v967 = vpop.f32.mrb[0].mxu0
      %v968 = vadd.f32 %v756, %v967
      %v969 = vpop.f32.mrb[0].mxu0
      %970 = vmatprep.mubr.bf16.mxu0 0
      %971 = vmatmul.mubr.bf16.gmra.mrb[0].mxu0 %v868
      %v972 = vpop.f32.mrb[0].mxu0
      %v973 = vadd.f32 %v761, %v972
      %v974 = vpop.f32.mrb[0].mxu0
      %v975 = vpop.f32.mrb[0].mxu0
      %v976 = vadd.f32 %v764, %v975
      %v977 = vpop.f32.mrb[0].mxu0
      %978 = vmatprep.mubr.bf16.mxu0 0
      %979 = vmatmul.mubr.bf16.gmra.mrb[0].mxu0 %v871
      %v980 = vpop.f32.mrb[0].mxu0
      %v981 = vadd.f32 %v769, %v980
      %v982 = vpop.f32.mrb[0].mxu0
      %v983 = vpop.f32.mrb[0].mxu0
      %v984 = vadd.f32 %v772, %v983
      %v985 = vpop.f32.mrb[0].mxu0
      %986 = vmatprep.mubr.bf16.mxu0 0
      %987 = vmatmul.mubr.bf16.gmra.mrb[0].mxu0 %v874
      %v988 = vpop.f32.mrb[0].mxu0
      %v989 = vadd.f32 %v777, %v988
      %v990 = vpop.f32.mrb[0].mxu0
      %v991 = vpop.f32.mrb[0].mxu0
      %v992 = vadd.f32 %v780, %v991
      %v993 = vpop.f32.mrb[0].mxu0
      %994 = vmatprep.mubr.bf16.mxu0 0
      %995 = vmatmul.mubr.bf16.gmra.mrb[0].mxu0 %v877
      %v996 = vpop.f32.mrb[0].mxu0
      %v997 = vadd.f32 %v785, %v996
      %v998 = vpop.f32.mrb[0].mxu0
      %v999 = vpop.f32.mrb[0].mxu0
      %v1000 = vadd.f32 %v788, %v999
      %v1001 = vpop.f32.mrb[0].mxu0
      %1002 = vmatprep.mubr.bf16.mxu0 0
      %1003 = vmatmul.mubr.bf16.gmra.mrb[0].mxu0 %v880
      %v1004 = vpop.f32.mrb[0].mxu0
      %v1005 = vadd.f32 %v793, %v1004
      %v1006 = vpop.f32.mrb[0].mxu0
      %v1007 = vpop.f32.mrb[0].mxu0
      %v1008 = vadd.f32 %v796, %v1007
      %v1009 = vpop.f32.mrb[0].mxu0
      %1010 = vmatprep.mubr.bf16.mxu0 0
      %1011 = vmatmul.mubr.bf16.gmra.mrb[0].mxu0 %v883
      %v1012 = vpop.f32.mrb[0].mxu0
      %v1013 = vadd.f32 %v801, %v1012
      %v1014 = vpop.f32.mrb[0].mxu0
      %v1015 = vpop.f32.mrb[0].mxu0
      %v1016 = vadd.f32 %v804, %v1015
      %v1017 = vpop.f32.mrb[0].mxu0
      %1018 = vmatprep.mubr.bf16.mxu0 0
      %1019 = vmatmul.mubr.bf16.gmra.mrb[0].mxu0 %v886
      %v1020 = vpop.f32.mrb[0].mxu0
      %v1021 = vadd.f32 %v809, %v1020
      %v1022 = vpop.f32.mrb[0].mxu0
      %v1023 = vpop.f32.mrb[0].mxu0
      %v1024 = vadd.f32 %v812, %v1023
      %v1025 = vpop.f32.mrb[0].mxu0
      %1026 = vmatprep.mubr.bf16.mxu0 0
      %1027 = vmatmul.mubr.bf16.gmra.mrb[0].mxu0 %v889
      %v1028 = vpop.f32.mrb[0].mxu0
      %v1029 = vadd.f32 %v817, %v1028
      %v1030 = vpop.f32.mrb[0].mxu0
      %v1031 = vpop.f32.mrb[0].mxu0
      %v1032 = vadd.f32 %v820, %v1031
      %v1033 = vpop.f32.mrb[0].mxu0
      %1034 = vmatprep.mubr.bf16.mxu0 0
      %1035 = vmatmul.mubr.bf16.gmra.mrb[0].mxu0 %v892
      %v1036 = vpop.f32.mrb[0].mxu0
      %v1037 = vadd.f32 %v825, %v1036
      %v1038 = vpop.f32.mrb[0].mxu0
      %v1039 = vpop.f32.mrb[0].mxu0
      %v1040 = vadd.f32 %v828, %v1039
      %v1041 = vpop.f32.mrb[0].mxu0
      %1042 = vmatprep.mubr.bf16.mxu0 0
      %1043 = vmatmul.mubr.bf16.gmra.mrb[0].mxu0 %v895
      %v1044 = vpop.f32.mrb[0].mxu0
      %v1045 = vadd.f32 %v833, %v1044
      %v1046 = vpop.f32.mrb[0].mxu0
      %v1047 = vpop.f32.mrb[0].mxu0
      %v1048 = vadd.f32 %v836, %v1047
      %v1049 = vpop.f32.mrb[0].mxu0
      %1050 = vmatprep.mubr.bf16.mxu0 0
      %1051 = vmatmul.mubr.bf16.gmra.mrb[0].mxu0 %v898
      %v1052 = vpop.f32.mrb[0].mxu0
      %v1053 = vadd.f32 %v841, %v1052
      %v1054 = vpop.f32.mrb[0].mxu0
      %v1055 = vpop.f32.mrb[0].mxu0
      %v1056 = vadd.f32 %v844, %v1055
      %v1057 = vpop.f32.mrb[0].mxu0
      %1058 = vmatprep.mubr.bf16.mxu0 0
      %1059 = vmatmul.mubr.bf16.gmra.mrb[0].mxu0 %v901
      %v1060 = vpop.f32.mrb[0].mxu0
      %v1061 = vadd.f32 %v849, %v1060
      %v1062 = vpop.f32.mrb[0].mxu0
      %v1063 = vpop.f32.mrb[0].mxu0
      %v1064 = vadd.f32 %v852, %v1063
      %v1065 = vpop.f32.mrb[0].mxu0
      %1066 = vdwg.mxu0
      %v1067 = vld [vmem:[%s5] sm:$0x1]
      %v1069 = vlaneseq
      %v1070 = vshrl.u32 %v1069, 7
      %v1071 = vsub.s32 0, %v1070
      %v1072 = vrot.slane %v1067, %v1071
      %v1074 = vmul.f32 %v941, %v1072
      %v1075 = vmul.f32 %v944, %v1072
      %v1076 = vmul.f32 %v949, %v1072
      %v1077 = vmul.f32 %v952, %v1072
      %v1078 = vmul.f32 %v957, %v1072
      %v1079 = vmul.f32 %v960, %v1072
      %v1080 = vmul.f32 %v965, %v1072
      %v1081 = vmul.f32 %v968, %v1072
      %v1082 = vmul.f32 %v973, %v1072
      %v1083 = vmul.f32 %v976, %v1072
      %v1084 = vmul.f32 %v981, %v1072
      %v1085 = vmul.f32 %v984, %v1072
      %v1086 = vmul.f32 %v989, %v1072
      %v1087 = vmul.f32 %v992, %v1072
      %v1088 = vmul.f32 %v997, %v1072
      %v1089 = vmul.f32 %v1000, %v1072
      %v1090 = vmul.f32 %v1005, %v1072
      %v1091 = vmul.f32 %v1008, %v1072
      %v1092 = vmul.f32 %v1013, %v1072
      %v1093 = vmul.f32 %v1016, %v1072
      %v1094 = vmul.f32 %v1021, %v1072
      %v1095 = vmul.f32 %v1024, %v1072
      %v1096 = vmul.f32 %v1029, %v1072
      %v1097 = vmul.f32 %v1032, %v1072
      %v1098 = vmul.f32 %v1037, %v1072
      %v1099 = vmul.f32 %v1040, %v1072
      %v1100 = vmul.f32 %v1045, %v1072
      %v1101 = vmul.f32 %v1048, %v1072
      %v1102 = vmul.f32 %v1053, %v1072
      %v1103 = vmul.f32 %v1056, %v1072
      %v1104 = vmul.f32 %v1061, %v1072
      %v1105 = vmul.f32 %v1064, %v1072
      %v1106 = vld [vmem:[%s6] sm:$0x1]
      %v1108 = vlaneseq
      %v1109 = vshrl.u32 %v1108, 7
      %v1110 = vsub.s32 0, %v1109
      %v1111 = vrot.slane %v1106, %v1110
      %v1113 = vadd.f32 %v1074, %v1111
      %v1114 = vadd.f32 %v1075, %v1111
      %v1115 = vadd.f32 %v1076, %v1111
      %v1116 = vadd.f32 %v1077, %v1111
      %v1117 = vadd.f32 %v1078, %v1111
      %v1118 = vadd.f32 %v1079, %v1111
      %v1119 = vadd.f32 %v1080, %v1111
      %v1120 = vadd.f32 %v1081, %v1111
      %v1121 = vadd.f32 %v1082, %v1111
      %v1122 = vadd.f32 %v1083, %v1111
      %v1123 = vadd.f32 %v1084, %v1111
      %v1124 = vadd.f32 %v1085, %v1111
      %v1125 = vadd.f32 %v1086, %v1111
      %v1126 = vadd.f32 %v1087, %v1111
      %v1127 = vadd.f32 %v1088, %v1111
      %v1128 = vadd.f32 %v1089, %v1111
      %v1129 = vadd.f32 %v1090, %v1111
      %v1130 = vadd.f32 %v1091, %v1111
      %v1131 = vadd.f32 %v1092, %v1111
      %v1132 = vadd.f32 %v1093, %v1111
      %v1133 = vadd.f32 %v1094, %v1111
      %v1134 = vadd.f32 %v1095, %v1111
      %v1135 = vadd.f32 %v1096, %v1111
      %v1136 = vadd.f32 %v1097, %v1111
      %v1137 = vadd.f32 %v1098, %v1111
      %v1138 = vadd.f32 %v1099, %v1111
      %v1139 = vadd.f32 %v1100, %v1111
      %v1140 = vadd.f32 %v1101, %v1111
      %v1141 = vadd.f32 %v1102, %v1111
      %v1142 = vadd.f32 %v1103, %v1111
      %v1143 = vadd.f32 %v1104, %v1111
      %v1144 = vadd.f32 %v1105, %v1111
      %v1145 = vmax.f32 %v1113, 0.0
      %v1146 = vmax.f32 %v1114, 0.0
      %v1147 = vmax.f32 %v1115, 0.0
      %v1148 = vmax.f32 %v1116, 0.0
      %v1149 = vmax.f32 %v1117, 0.0
      %v1150 = vmax.f32 %v1118, 0.0
      %v1151 = vmax.f32 %v1119, 0.0
      %v1152 = vmax.f32 %v1120, 0.0
      %v1153 = vmax.f32 %v1121, 0.0
      %v1154 = vmax.f32 %v1122, 0.0
      %v1155 = vmax.f32 %v1123, 0.0
      %v1156 = vmax.f32 %v1124, 0.0
      %v1157 = vmax.f32 %v1125, 0.0
      %v1158 = vmax.f32 %v1126, 0.0
      %v1159 = vmax.f32 %v1127, 0.0
      %v1160 = vmax.f32 %v1128, 0.0
      %v1161 = vmax.f32 %v1129, 0.0
      %v1162 = vmax.f32 %v1130, 0.0
      %v1163 = vmax.f32 %v1131, 0.0
      %v1164 = vmax.f32 %v1132, 0.0
      %v1165 = vmax.f32 %v1133, 0.0
      %v1166 = vmax.f32 %v1134, 0.0
      %v1167 = vmax.f32 %v1135, 0.0
      %v1168 = vmax.f32 %v1136, 0.0
      %v1169 = vmax.f32 %v1137, 0.0
      %v1170 = vmax.f32 %v1138, 0.0
      %v1171 = vmax.f32 %v1139, 0.0
      %v1172 = vmax.f32 %v1140, 0.0
      %v1173 = vmax.f32 %v1141, 0.0
      %v1174 = vmax.f32 %v1142, 0.0
      %v1175 = vmax.f32 %v1143, 0.0
      %v1176 = vmax.f32 %v1144, 0.0
      %1177 = vst [vmem:[#allocation2] sm:$0xff] 0.0
      %1178 = vst [vmem:[#allocation2 + $0x8] sm:$0xff] 0.0
      %1179 = vst [vmem:[#allocation2 + $0x10] sm:$0x3] 0.0
      %s1180 = scalar_lea.vmem [#allocation2], 408
      %1181 = vst [vmem:[%s1180] sm:$0xff] 0.0
      %1182 = vst [vmem:[%s1180 + $0x8] sm:$0xff] 0.0
      %1183 = vst [vmem:[%s1180 + $0x10] sm:$0x3] 0.0
      %s1184 = scalar_lea.vmem [#allocation2], 24
      %1185 = vst [vmem:[%s1184] sm:$0x1] 0.0
      %1186 = vst [vmem:[%s1184 + $0x18] sm:$0x1] 0.0
      %1187 = vst [vmem:[%s1184 + $0x30] sm:$0x1] 0.0
      %1188 = vst [vmem:[%s1184 + $0x48] sm:$0x1] 0.0
      %1189 = vst [vmem:[%s1184 + $0x60] sm:$0x1] 0.0
      %1190 = vst [vmem:[%s1184 + $0x78] sm:$0x1] 0.0
      %1191 = vst [vmem:[%s1184 + $0x90] sm:$0x1] 0.0
      %1192 = vst [vmem:[%s1184 + $0xa8] sm:$0x1] 0.0
      %1193 = vst [vmem:[%s1184 + $0xc0] sm:$0x1] 0.0
      %1194 = vst [vmem:[%s1184 + $0xd8] sm:$0x1] 0.0
      %1195 = vst [vmem:[%s1184 + $0xf0] sm:$0x1] 0.0
      %1196 = vst [vmem:[%s1184 + $0x108] sm:$0x1] 0.0
      %1197 = vst [vmem:[%s1184 + $0x120] sm:$0x1] 0.0
      %1198 = vst [vmem:[%s1184 + $0x138] sm:$0x1] 0.0
      %1199 = vst [vmem:[%s1184 + $0x150] sm:$0x1] 0.0
      %1200 = vst [vmem:[%s1184 + $0x168] sm:$0x1] 0.0
      %1201 = vst [vmem:[%s1184 + $0x11] sm:$0x1] 0.0
      %1202 = vst [vmem:[%s1184 + $0x29] sm:$0x1] 0.0
      %1203 = vst [vmem:[%s1184 + $0x41] sm:$0x1] 0.0
      %1204 = vst [vmem:[%s1184 + $0x59] sm:$0x1] 0.0
      %1205 = vst [vmem:[%s1184 + $0x71] sm:$0x1] 0.0
      %1206 = vst [vmem:[%s1184 + $0x89] sm:$0x1] 0.0
      %1207 = vst [vmem:[%s1184 + $0xa1] sm:$0x1] 0.0
      %1208 = vst [vmem:[%s1184 + $0xb9] sm:$0x1] 0.0
      %1209 = vst [vmem:[%s1184 + $0xd1] sm:$0x1] 0.0
      %1210 = vst [vmem:[%s1184 + $0xe9] sm:$0x1] 0.0
      %1211 = vst [vmem:[%s1184 + $0x101] sm:$0x1] 0.0
      %1212 = vst [vmem:[%s1184 + $0x119] sm:$0x1] 0.0
      %1213 = vst [vmem:[%s1184 + $0x131] sm:$0x1] 0.0
      %1214 = vst [vmem:[%s1184 + $0x149] sm:$0x1] 0.0
      %1215 = vst [vmem:[%s1184 + $0x161] sm:$0x1] 0.0
      %1216 = vst [vmem:[%s1184 + $0x179] sm:$0x1] 0.0
      %1217 = vst [vmem:[%s1184 + $0x1] sm:$0xff] %v1145
      %1218 = vst [vmem:[%s1184 + $0x9] sm:$0xff] %v1146
      %1219 = vst [vmem:[%s1184 + $0x19] sm:$0xff] %v1147
      %1220 = vst [vmem:[%s1184 + $0x21] sm:$0xff] %v1148
      %1221 = vst [vmem:[%s1184 + $0x31] sm:$0xff] %v1149
      %1222 = vst [vmem:[%s1184 + $0x39] sm:$0xff] %v1150
      %1223 = vst [vmem:[%s1184 + $0x49] sm:$0xff] %v1151
      %1224 = vst [vmem:[%s1184 + $0x51] sm:$0xff] %v1152
      %1225 = vst [vmem:[%s1184 + $0x61] sm:$0xff] %v1153
      %1226 = vst [vmem:[%s1184 + $0x69] sm:$0xff] %v1154
      %1227 = vst [vmem:[%s1184 + $0x79] sm:$0xff] %v1155
      %1228 = vst [vmem:[%s1184 + $0x81] sm:$0xff] %v1156
      %1229 = vst [vmem:[%s1184 + $0x91] sm:$0xff] %v1157
      %1230 = vst [vmem:[%s1184 + $0x99] sm:$0xff] %v1158
      %1231 = vst [vmem:[%s1184 + $0xa9] sm:$0xff] %v1159
      %1232 = vst [vmem:[%s1184 + $0xb1] sm:$0xff] %v1160
      %1233 = vst [vmem:[%s1184 + $0xc1] sm:$0xff] %v1161
      %1234 = vst [vmem:[%s1184 + $0xc9] sm:$0xff] %v1162
      %1235 = vst [vmem:[%s1184 + $0xd9] sm:$0xff] %v1163
      %1236 = vst [vmem:[%s1184 + $0xe1] sm:$0xff] %v1164
      %1237 = vst [vmem:[%s1184 + $0xf1] sm:$0xff] %v1165
      %1238 = vst [vmem:[%s1184 + $0xf9] sm:$0xff] %v1166
      %1239 = vst [vmem:[%s1184 + $0x109] sm:$0xff] %v1167
      %1240 = vst [vmem:[%s1184 + $0x111] sm:$0xff] %v1168
      %1241 = vst [vmem:[%s1184 + $0x121] sm:$0xff] %v1169
      %1242 = vst [vmem:[%s1184 + $0x129] sm:$0xff] %v1170
      %1243 = vst [vmem:[%s1184 + $0x139] sm:$0xff] %v1171
      %1244 = vst [vmem:[%s1184 + $0x141] sm:$0xff] %v1172
      %1245 = vst [vmem:[%s1184 + $0x151] sm:$0xff] %v1173
      %1246 = vst [vmem:[%s1184 + $0x159] sm:$0xff] %v1174
      %1247 = vst [vmem:[%s1184 + $0x169] sm:$0xff] %v1175
      %1248 = vst [vmem:[%s1184 + $0x171] sm:$0xff] %v1176
      %v1249 = vld [vmem:[#allocation2] sm:$0xff]
      %v1250 = vld [vmem:[#allocation2 + $0x8] sm:$0xff]
      %v1251 = vld [vmem:[#allocation2 + $0x18] sm:$0xff]
      %v1252 = vld [vmem:[#allocation2 + $0x20] sm:$0xff]
      %v1253 = vld [vmem:[#allocation2 + $0x30] sm:$0xff]
      %v1254 = vld [vmem:[#allocation2 + $0x38] sm:$0xff]
      %v1255 = vld [vmem:[#allocation2 + $0x48] sm:$0xff]
      %v1256 = vld [vmem:[#allocation2 + $0x50] sm:$0xff]
      %v1257 = vld [vmem:[#allocation2 + $0x60] sm:$0xff]
      %v1258 = vld [vmem:[#allocation2 + $0x68] sm:$0xff]
      %v1259 = vld [vmem:[#allocation2 + $0x78] sm:$0xff]
      %v1260 = vld [vmem:[#allocation2 + $0x80] sm:$0xff]
      %v1261 = vld [vmem:[#allocation2 + $0x90] sm:$0xff]
      %v1262 = vld [vmem:[#allocation2 + $0x98] sm:$0xff]
      %v1263 = vld [vmem:[#allocation2 + $0xa8] sm:$0xff]
      %v1264 = vld [vmem:[#allocation2 + $0xb0] sm:$0xff]
      %v1265 = vld [vmem:[#allocation2 + $0xc0] sm:$0xff]
      %v1266 = vld [vmem:[#allocation2 + $0xc8] sm:$0xff]
      %v1267 = vld [vmem:[#allocation2 + $0xd8] sm:$0xff]
      %v1268 = vld [vmem:[#allocation2 + $0xe0] sm:$0xff]
      %v1269 = vld [vmem:[#allocation2 + $0xf0] sm:$0xff]
      %v1270 = vld [vmem:[#allocation2 + $0xf8] sm:$0xff]
      %v1271 = vld [vmem:[#allocation2 + $0x108] sm:$0xff]
      %v1272 = vld [vmem:[#allocation2 + $0x110] sm:$0xff]
      %v1273 = vld [vmem:[#allocation2 + $0x120] sm:$0xff]
      %v1274 = vld [vmem:[#allocation2 + $0x128] sm:$0xff]
      %v1275 = vld [vmem:[#allocation2 + $0x138] sm:$0xff]
      %v1276 = vld [vmem:[#allocation2 + $0x140] sm:$0xff]
      %v1277 = vld [vmem:[#allocation2 + $0x150] sm:$0xff]
      %v1278 = vld [vmem:[#allocation2 + $0x158] sm:$0xff]
      %v1279 = vld [vmem:[#allocation2 + $0x168] sm:$0xff]
      %v1280 = vld [vmem:[#allocation2 + $0x170] sm:$0xff]
      %v1281 = vpack.c.bf16 %v1250, %v1249
      %v1282 = vpack.c.bf16 %v1252, %v1251
      %v1283 = vpack.c.bf16 %v1254, %v1253
      %v1284 = vpack.c.bf16 %v1256, %v1255
      %v1285 = vpack.c.bf16 %v1258, %v1257
      %v1286 = vpack.c.bf16 %v1260, %v1259
      %v1287 = vpack.c.bf16 %v1262, %v1261
      %v1288 = vpack.c.bf16 %v1264, %v1263
      %v1289 = vpack.c.bf16 %v1266, %v1265
      %v1290 = vpack.c.bf16 %v1268, %v1267
      %v1291 = vpack.c.bf16 %v1270, %v1269
      %v1292 = vpack.c.bf16 %v1272, %v1271
      %v1293 = vpack.c.bf16 %v1274, %v1273
      %v1294 = vpack.c.bf16 %v1276, %v1275
      %v1295 = vpack.c.bf16 %v1278, %v1277
      %v1296 = vpack.c.bf16 %v1280, %v1279
      %v1297 = vld [vmem:[%s7] sm:$0xf]
      %v1298 = vld [vmem:[%s7 + $0x4] sm:$0xf]
      %v1299 = vld [vmem:[%s7 + $0x8] sm:$0xf]
      %v1300 = vld [vmem:[%s7 + $0xc] sm:$0xf]
      %v1301 = vld [vmem:[%s7 + $0x10] sm:$0xf]
      %v1302 = vld [vmem:[%s7 + $0x14] sm:$0xf]
      %v1303 = vld [vmem:[%s7 + $0x18] sm:$0xf]
      %v1304 = vld [vmem:[%s7 + $0x1c] sm:$0xf]
      %v1305 = vld [vmem:[%s7 + $0x20] sm:$0xf]
      %v1306 = vld [vmem:[%s7 + $0x24] sm:$0xf]
      %v1307 = vld [vmem:[%s7 + $0x28] sm:$0xf]
      %v1308 = vld [vmem:[%s7 + $0x2c] sm:$0xf]
      %v1309 = vld [vmem:[%s7 + $0x30] sm:$0xf]
      %v1310 = vld [vmem:[%s7 + $0x34] sm:$0xf]
      %v1311 = vld [vmem:[%s7 + $0x38] sm:$0xf]
      %v1312 = vld [vmem:[%s7 + $0x3c] sm:$0xf]
      %v1313 = vld [vmem:[#allocation2 + $0x1] sm:$0xff]
      %v1314 = vld [vmem:[#allocation2 + $0x9] sm:$0xff]
      %v1315 = vld [vmem:[#allocation2 + $0x19] sm:$0xff]
      %v1316 = vld [vmem:[#allocation2 + $0x21] sm:$0xff]
      %v1317 = vld [vmem:[#allocation2 + $0x31] sm:$0xff]
      %v1318 = vld [vmem:[#allocation2 + $0x39] sm:$0xff]
      %v1319 = vld [vmem:[#allocation2 + $0x49] sm:$0xff]
      %v1320 = vld [vmem:[#allocation2 + $0x51] sm:$0xff]
      %v1321 = vld [vmem:[#allocation2 + $0x61] sm:$0xff]
      %v1322 = vld [vmem:[#allocation2 + $0x69] sm:$0xff]
      %v1323 = vld [vmem:[#allocation2 + $0x79] sm:$0xff]
      %v1324 = vld [vmem:[#allocation2 + $0x81] sm:$0xff]
      %v1325 = vld [vmem:[#allocation2 + $0x91] sm:$0xff]
      %v1326 = vld [vmem:[#allocation2 + $0x99] sm:$0xff]
      %v1327 = vld [vmem:[#allocation2 + $0xa9] sm:$0xff]
      %v1328 = vld [vmem:[#allocation2 + $0xb1] sm:$0xff]
      %v1329 = vld [vmem:[#allocation2 + $0xc1] sm:$0xff]
      %v1330 = vld [vmem:[#allocation2 + $0xc9] sm:$0xff]
      %v1331 = vld [vmem:[#allocation2 + $0xd9] sm:$0xff]
      %v1332 = vld [vmem:[#allocation2 + $0xe1] sm:$0xff]
      %v1333 = vld [vmem:[#allocation2 + $0xf1] sm:$0xff]
      %v1334 = vld [vmem:[#allocation2 + $0xf9] sm:$0xff]
      %v1335 = vld [vmem:[#allocation2 + $0x109] sm:$0xff]
      %v1336 = vld [vmem:[#allocation2 + $0x111] sm:$0xff]
      %v1337 = vld [vmem:[#allocation2 + $0x121] sm:$0xff]
      %v1338 = vld [vmem:[#allocation2 + $0x129] sm:$0xff]
      %v1339 = vld [vmem:[#allocation2 + $0x139] sm:$0xff]
      %v1340 = vld [vmem:[#allocation2 + $0x141] sm:$0xff]
      %v1341 = vld [vmem:[#allocation2 + $0x151] sm:$0xff]
      %v1342 = vld [vmem:[#allocation2 + $0x159] sm:$0xff]
      %v1343 = vld [vmem:[#allocation2 + $0x169] sm:$0xff]
      %v1344 = vld [vmem:[#allocation2 + $0x171] sm:$0xff]
      %v1345 = vpack.c.bf16 %v1314, %v1313
      %v1346 = vpack.c.bf16 %v1316, %v1315
      %v1347 = vpack.c.bf16 %v1318, %v1317
      %v1348 = vpack.c.bf16 %v1320, %v1319
      %v1349 = vpack.c.bf16 %v1322, %v1321
      %v1350 = vpack.c.bf16 %v1324, %v1323
      %v1351 = vpack.c.bf16 %v1326, %v1325
      %v1352 = vpack.c.bf16 %v1328, %v1327
      %v1353 = vpack.c.bf16 %v1330, %v1329
      %v1354 = vpack.c.bf16 %v1332, %v1331
      %v1355 = vpack.c.bf16 %v1334, %v1333
      %v1356 = vpack.c.bf16 %v1336, %v1335
      %v1357 = vpack.c.bf16 %v1338, %v1337
      %v1358 = vpack.c.bf16 %v1340, %v1339
      %v1359 = vpack.c.bf16 %v1342, %v1341
      %v1360 = vpack.c.bf16 %v1344, %v1343
      %s1361 = scalar_lea.vmem %s7, 64
      %v1362 = vld [vmem:[%s1361] sm:$0xf]
      %v1363 = vld [vmem:[%s1361 + $0x4] sm:$0xf]
      %v1364 = vld [vmem:[%s1361 + $0x8] sm:$0xf]
      %v1365 = vld [vmem:[%s1361 + $0xc] sm:$0xf]
      %v1366 = vld [vmem:[%s1361 + $0x10] sm:$0xf]
      %v1367 = vld [vmem:[%s1361 + $0x14] sm:$0xf]
      %v1368 = vld [vmem:[%s1361 + $0x18] sm:$0xf]
      %v1369 = vld [vmem:[%s1361 + $0x1c] sm:$0xf]
      %v1370 = vld [vmem:[%s1361 + $0x20] sm:$0xf]
      %v1371 = vld [vmem:[%s1361 + $0x24] sm:$0xf]
      %v1372 = vld [vmem:[%s1361 + $0x28] sm:$0xf]
      %v1373 = vld [vmem:[%s1361 + $0x2c] sm:$0xf]
      %v1374 = vld [vmem:[%s1361 + $0x30] sm:$0xf]
      %v1375 = vld [vmem:[%s1361 + $0x34] sm:$0xf]
      %v1376 = vld [vmem:[%s1361 + $0x38] sm:$0xf]
      %v1377 = vld [vmem:[%s1361 + $0x3c] sm:$0xf]
      %v1394 = vunpack.c.l.b16 %v1362
      %v1395 = vunpack.c.l.b16 %v1363
      %v1396 = vunpack.c.l.b16 %v1364
      %v1397 = vunpack.c.l.b16 %v1365
      %v1398 = vunpack.c.l.b16 %v1366
      %v1399 = vunpack.c.l.b16 %v1367
      %v1400 = vunpack.c.l.b16 %v1368
      %v1401 = vunpack.c.l.b16 %v1369
      %v1402 = vunpack.c.l.b16 %v1370
      %v1403 = vunpack.c.l.b16 %v1371
      %v1404 = vunpack.c.l.b16 %v1372
      %v1405 = vunpack.c.l.b16 %v1373
      %v1406 = vunpack.c.l.b16 %v1374
      %v1407 = vunpack.c.l.b16 %v1375
      %v1408 = vunpack.c.l.b16 %v1376
      %v1409 = vunpack.c.l.b16 %v1377
      %v1410 = vpack.c.b16 %v1395, %v1394
      %v1411 = vpack.c.b16 %v1397, %v1396
      %v1412 = vpack.c.b16 %v1399, %v1398
      %v1413 = vpack.c.b16 %v1401, %v1400
      %v1414 = vpack.c.b16 %v1403, %v1402
      %v1415 = vpack.c.b16 %v1405, %v1404
      %v1416 = vpack.c.b16 %v1407, %v1406
      %v1417 = vpack.c.b16 %v1409, %v1408
      %1426 = vmatprep.subr.bf16.mxu0 0
      %1427 = vmatpush1.bf16.msra.mxu0 %v1410
      %1428 = vmatprep.subr.bf16.mxu0 0
      %1429 = vmatpush1.bf16.msra.mxu0 %v1411
      %1430 = vmatprep.subr.bf16.mxu0 0
      %1431 = vmatpush1.bf16.msra.mxu0 %v1412
      %1432 = vmatprep.subr.bf16.mxu0 0
      %1433 = vmatpush1.bf16.msra.mxu0 %v1413
      %1434 = vmatprep.subr.bf16.mxu0 0
      %1435 = vmatpush1.bf16.msra.mxu0 %v1414
      %1436 = vmatprep.subr.bf16.mxu0 0
      %1437 = vmatpush1.bf16.msra.mxu0 %v1415
      %1438 = vmatprep.subr.bf16.mxu0 0
      %1439 = vmatpush1.bf16.msra.mxu0 %v1416
      %1440 = vmatprep.subr.bf16.mxu0 0
      %1441 = vmatpush1.bf16.msra.mxu0 %v1417
      %1442 = vmatprep.subr.bf16.mxu0 0
      %1443 = vmatpush1.bf16.msra.mxu0 0
      %1444 = vmatprep.subr.bf16.mxu0 0
      %1445 = vmatpush1.bf16.msra.mxu0 0
      %1446 = vmatprep.subr.bf16.mxu0 0
      %1447 = vmatpush1.bf16.msra.mxu0 0
      %1448 = vmatprep.subr.bf16.mxu0 0
      %1449 = vmatpush1.bf16.msra.mxu0 0
      %1450 = vmatprep.subr.bf16.mxu0 0
      %1451 = vmatpush1.bf16.msra.mxu0 0
      %1452 = vmatprep.subr.bf16.mxu0 0
      %1453 = vmatpush1.bf16.msra.mxu0 0
      %1454 = vmatprep.subr.bf16.mxu0 0
      %1455 = vmatpush1.bf16.msra.mxu0 0
      %1456 = vmatprep.subr.bf16.mxu0 0
      %1457 = vmatpush1.bf16.msra.mxu0 0
      %1458 = vmatprep.mubr.bf16.mxu0 0
      %1459 = vmatmul.mubr.bf16.gmra.mrb[0].mxu0 %v1345
      %v1460 = vpop.f32.mrb[0].mxu0
      %v1461 = vadd.f32 0.0, %v1460
      %v1462 = vpop.f32.mrb[0].mxu0
      %v1463 = vpop.f32.mrb[0].mxu0
      %v1464 = vadd.f32 0.0, %v1463
      %v1465 = vpop.f32.mrb[0].mxu0
      %1466 = vmatprep.mubr.bf16.mxu0 0
      %1467 = vmatmul.mubr.bf16.gmra.mrb[0].mxu0 %v1346
      %v1468 = vpop.f32.mrb[0].mxu0
      %v1469 = vadd.f32 0.0, %v1468
      %v1470 = vpop.f32.mrb[0].mxu0
      %v1471 = vpop.f32.mrb[0].mxu0
      %v1472 = vadd.f32 0.0, %v1471
      %v1473 = vpop.f32.mrb[0].mxu0
      %1474 = vmatprep.mubr.bf16.mxu0 0
      %1475 = vmatmul.mubr.bf16.gmra.mrb[0].mxu0 %v1347
      %v1476 = vpop.f32.mrb[0].mxu0
      %v1477 = vadd.f32 0.0, %v1476
      %v1478 = vpop.f32.mrb[0].mxu0
      %v1479 = vpop.f32.mrb[0].mxu0
      %v1480 = vadd.f32 0.0, %v1479
      %v1481 = vpop.f32.mrb[0].mxu0
      %1482 = vmatprep.mubr.bf16.mxu0 0
      %1483 = vmatmul.mubr.bf16.gmra.mrb[0].mxu0 %v1348
      %v1484 = vpop.f32.mrb[0].mxu0
      %v1485 = vadd.f32 0.0, %v1484
      %v1486 = vpop.f32.mrb[0].mxu0
      %v1487 = vpop.f32.mrb[0].mxu0
      %v1488 = vadd.f32 0.0, %v1487
      %v1489 = vpop.f32.mrb[0].mxu0
      %1490 = vmatprep.mubr.bf16.mxu0 0
      %1491 = vmatmul.mubr.bf16.gmra.mrb[0].mxu0 %v1349
      %v1492 = vpop.f32.mrb[0].mxu0
      %v1493 = vadd.f32 0.0, %v1492
      %v1494 = vpop.f32.mrb[0].mxu0
      %v1495 = vpop.f32.mrb[0].mxu0
      %v1496 = vadd.f32 0.0, %v1495
      %v1497 = vpop.f32.mrb[0].mxu0
      %1498 = vmatprep.mubr.bf16.mxu0 0
      %1499 = vmatmul.mubr.bf16.gmra.mrb[0].mxu0 %v1350
      %v1500 = vpop.f32.mrb[0].mxu0
      %v1501 = vadd.f32 0.0, %v1500
      %v1502 = vpop.f32.mrb[0].mxu0
      %v1503 = vpop.f32.mrb[0].mxu0
      %v1504 = vadd.f32 0.0, %v1503
      %v1505 = vpop.f32.mrb[0].mxu0
      %1506 = vmatprep.mubr.bf16.mxu0 0
      %1507 = vmatmul.mubr.bf16.gmra.mrb[0].mxu0 %v1351
      %v1508 = vpop.f32.mrb[0].mxu0
      %v1509 = vadd.f32 0.0, %v1508
      %v1510 = vpop.f32.mrb[0].mxu0
      %v1511 = vpop.f32.mrb[0].mxu0
      %v1512 = vadd.f32 0.0, %v1511
      %v1513 = vpop.f32.mrb[0].mxu0
      %1514 = vmatprep.mubr.bf16.mxu0 0
      %1515 = vmatmul.mubr.bf16.gmra.mrb[0].mxu0 %v1352
      %v1516 = vpop.f32.mrb[0].mxu0
      %v1517 = vadd.f32 0.0, %v1516
      %v1518 = vpop.f32.mrb[0].mxu0
      %v1519 = vpop.f32.mrb[0].mxu0
      %v1520 = vadd.f32 0.0, %v1519
      %v1521 = vpop.f32.mrb[0].mxu0
      %1522 = vmatprep.mubr.bf16.mxu0 0
      %1523 = vmatmul.mubr.bf16.gmra.mrb[0].mxu0 %v1353
      %v1524 = vpop.f32.mrb[0].mxu0
      %v1525 = vadd.f32 0.0, %v1524
      %v1526 = vpop.f32.mrb[0].mxu0
      %v1527 = vpop.f32.mrb[0].mxu0
      %v1528 = vadd.f32 0.0, %v1527
      %v1529 = vpop.f32.mrb[0].mxu0
      %1530 = vmatprep.mubr.bf16.mxu0 0
      %1531 = vmatmul.mubr.bf16.gmra.mrb[0].mxu0 %v1354
      %v1532 = vpop.f32.mrb[0].mxu0
      %v1533 = vadd.f32 0.0, %v1532
      %v1534 = vpop.f32.mrb[0].mxu0
      %v1535 = vpop.f32.mrb[0].mxu0
      %v1536 = vadd.f32 0.0, %v1535
      %v1537 = vpop.f32.mrb[0].mxu0
      %1538 = vmatprep.mubr.bf16.mxu0 0
      %1539 = vmatmul.mubr.bf16.gmra.mrb[0].mxu0 %v1355
      %v1540 = vpop.f32.mrb[0].mxu0
      %v1541 = vadd.f32 0.0, %v1540
      %v1542 = vpop.f32.mrb[0].mxu0
      %v1543 = vpop.f32.mrb[0].mxu0
      %v1544 = vadd.f32 0.0, %v1543
      %v1545 = vpop.f32.mrb[0].mxu0
      %1546 = vmatprep.mubr.bf16.mxu0 0
      %1547 = vmatmul.mubr.bf16.gmra.mrb[0].mxu0 %v1356
      %v1548 = vpop.f32.mrb[0].mxu0
      %v1549 = vadd.f32 0.0, %v1548
      %v1550 = vpop.f32.mrb[0].mxu0
      %v1551 = vpop.f32.mrb[0].mxu0
      %v1552 = vadd.f32 0.0, %v1551
      %v1553 = vpop.f32.mrb[0].mxu0
      %1554 = vmatprep.mubr.bf16.mxu0 0
      %1555 = vmatmul.mubr.bf16.gmra.mrb[0].mxu0 %v1357
      %v1556 = vpop.f32.mrb[0].mxu0
      %v1557 = vadd.f32 0.0, %v1556
      %v1558 = vpop.f32.mrb[0].mxu0
      %v1559 = vpop.f32.mrb[0].mxu0
      %v1560 = vadd.f32 0.0, %v1559
      %v1561 = vpop.f32.mrb[0].mxu0
      %1562 = vmatprep.mubr.bf16.mxu0 0
      %1563 = vmatmul.mubr.bf16.gmra.mrb[0].mxu0 %v1358
      %v1564 = vpop.f32.mrb[0].mxu0
      %v1565 = vadd.f32 0.0, %v1564
      %v1566 = vpop.f32.mrb[0].mxu0
      %v1567 = vpop.f32.mrb[0].mxu0
      %v1568 = vadd.f32 0.0, %v1567
      %v1569 = vpop.f32.mrb[0].mxu0
      %1570 = vmatprep.mubr.bf16.mxu0 0
      %1571 = vmatmul.mubr.bf16.gmra.mrb[0].mxu0 %v1359
      %v1572 = vpop.f32.mrb[0].mxu0
      %v1573 = vadd.f32 0.0, %v1572
      %v1574 = vpop.f32.mrb[0].mxu0
      %v1575 = vpop.f32.mrb[0].mxu0
      %v1576 = vadd.f32 0.0, %v1575
      %v1577 = vpop.f32.mrb[0].mxu0
      %1578 = vmatprep.mubr.bf16.mxu0 0
      %1579 = vmatmul.mubr.bf16.gmra.mrb[0].mxu0 %v1360
      %v1580 = vpop.f32.mrb[0].mxu0
      %v1581 = vadd.f32 0.0, %v1580
      %v1582 = vpop.f32.mrb[0].mxu0
      %v1583 = vpop.f32.mrb[0].mxu0
      %v1584 = vadd.f32 0.0, %v1583
      %v1585 = vpop.f32.mrb[0].mxu0
      %1586 = vdwg.mxu0
      %v1603 = vunpack.c.l.b16 %v1297
      %v1604 = vunpack.c.l.b16 %v1298
      %v1605 = vunpack.c.l.b16 %v1299
      %v1606 = vunpack.c.l.b16 %v1300
      %v1607 = vunpack.c.l.b16 %v1301
      %v1608 = vunpack.c.l.b16 %v1302
      %v1609 = vunpack.c.l.b16 %v1303
      %v1610 = vunpack.c.l.b16 %v1304
      %v1611 = vunpack.c.l.b16 %v1305
      %v1612 = vunpack.c.l.b16 %v1306
      %v1613 = vunpack.c.l.b16 %v1307
      %v1614 = vunpack.c.l.b16 %v1308
      %v1615 = vunpack.c.l.b16 %v1309
      %v1616 = vunpack.c.l.b16 %v1310
      %v1617 = vunpack.c.l.b16 %v1311
      %v1618 = vunpack.c.l.b16 %v1312
      %v1619 = vpack.c.b16 %v1604, %v1603
      %v1620 = vpack.c.b16 %v1606, %v1605
      %v1621 = vpack.c.b16 %v1608, %v1607
      %v1622 = vpack.c.b16 %v1610, %v1609
      %v1623 = vpack.c.b16 %v1612, %v1611
      %v1624 = vpack.c.b16 %v1614, %v1613
      %v1625 = vpack.c.b16 %v1616, %v1615
      %v1626 = vpack.c.b16 %v1618, %v1617
      %1635 = vmatprep.subr.bf16.mxu0 0
      %1636 = vmatpush1.bf16.msra.mxu0 %v1619
      %1637 = vmatprep.subr.bf16.mxu0 0
      %1638 = vmatpush1.bf16.msra.mxu0 %v1620
      %1639 = vmatprep.subr.bf16.mxu0 0
      %1640 = vmatpush1.bf16.msra.mxu0 %v1621
      %1641 = vmatprep.subr.bf16.mxu0 0
      %1642 = vmatpush1.bf16.msra.mxu0 %v1622
      %1643 = vmatprep.subr.bf16.mxu0 0
      %1644 = vmatpush1.bf16.msra.mxu0 %v1623
      %1645 = vmatprep.subr.bf16.mxu0 0
      %1646 = vmatpush1.bf16.msra.mxu0 %v1624
      %1647 = vmatprep.subr.bf16.mxu0 0
      %1648 = vmatpush1.bf16.msra.mxu0 %v1625
      %1649 = vmatprep.subr.bf16.mxu0 0
      %1650 = vmatpush1.bf16.msra.mxu0 %v1626
      %1651 = vmatprep.subr.bf16.mxu0 0
      %1652 = vmatpush1.bf16.msra.mxu0 0
      %1653 = vmatprep.subr.bf16.mxu0 0
      %1654 = vmatpush1.bf16.msra.mxu0 0
      %1655 = vmatprep.subr.bf16.mxu0 0
      %1656 = vmatpush1.bf16.msra.mxu0 0
      %1657 = vmatprep.subr.bf16.mxu0 0
      %1658 = vmatpush1.bf16.msra.mxu0 0
      %1659 = vmatprep.subr.bf16.mxu0 0
      %1660 = vmatpush1.bf16.msra.mxu0 0
      %1661 = vmatprep.subr.bf16.mxu0 0
      %1662 = vmatpush1.bf16.msra.mxu0 0
      %1663 = vmatprep.subr.bf16.mxu0 0
      %1664 = vmatpush1.bf16.msra.mxu0 0
      %1665 = vmatprep.subr.bf16.mxu0 0
      %1666 = vmatpush1.bf16.msra.mxu0 0
      %1667 = vmatprep.mubr.bf16.mxu0 0
      %1668 = vmatmul.mubr.bf16.gmra.mrb[0].mxu0 %v1281
      %v1669 = vpop.f32.mrb[0].mxu0
      %v1670 = vadd.f32 %v1461, %v1669
      %v1671 = vpop.f32.mrb[0].mxu0
      %v1672 = vpop.f32.mrb[0].mxu0
      %v1673 = vadd.f32 %v1464, %v1672
      %v1674 = vpop.f32.mrb[0].mxu0
      %1675 = vmatprep.mubr.bf16.mxu0 0
      %1676 = vmatmul.mubr.bf16.gmra.mrb[0].mxu0 %v1282
      %v1677 = vpop.f32.mrb[0].mxu0
      %v1678 = vadd.f32 %v1469, %v1677
      %v1679 = vpop.f32.mrb[0].mxu0
      %v1680 = vpop.f32.mrb[0].mxu0
      %v1681 = vadd.f32 %v1472, %v1680
      %v1682 = vpop.f32.mrb[0].mxu0
      %1683 = vmatprep.mubr.bf16.mxu0 0
      %1684 = vmatmul.mubr.bf16.gmra.mrb[0].mxu0 %v1283
      %v1685 = vpop.f32.mrb[0].mxu0
      %v1686 = vadd.f32 %v1477, %v1685
      %v1687 = vpop.f32.mrb[0].mxu0
      %v1688 = vpop.f32.mrb[0].mxu0
      %v1689 = vadd.f32 %v1480, %v1688
      %v1690 = vpop.f32.mrb[0].mxu0
      %1691 = vmatprep.mubr.bf16.mxu0 0
      %1692 = vmatmul.mubr.bf16.gmra.mrb[0].mxu0 %v1284
      %v1693 = vpop.f32.mrb[0].mxu0
      %v1694 = vadd.f32 %v1485, %v1693
      %v1695 = vpop.f32.mrb[0].mxu0
      %v1696 = vpop.f32.mrb[0].mxu0
      %v1697 = vadd.f32 %v1488, %v1696
      %v1698 = vpop.f32.mrb[0].mxu0
      %1699 = vmatprep.mubr.bf16.mxu0 0
      %1700 = vmatmul.mubr.bf16.gmra.mrb[0].mxu0 %v1285
      %v1701 = vpop.f32.mrb[0].mxu0
      %v1702 = vadd.f32 %v1493, %v1701
      %v1703 = vpop.f32.mrb[0].mxu0
      %v1704 = vpop.f32.mrb[0].mxu0
      %v1705 = vadd.f32 %v1496, %v1704
      %v1706 = vpop.f32.mrb[0].mxu0
      %1707 = vmatprep.mubr.bf16.mxu0 0
      %1708 = vmatmul.mubr.bf16.gmra.mrb[0].mxu0 %v1286
      %v1709 = vpop.f32.mrb[0].mxu0
      %v1710 = vadd.f32 %v1501, %v1709
      %v1711 = vpop.f32.mrb[0].mxu0
      %v1712 = vpop.f32.mrb[0].mxu0
      %v1713 = vadd.f32 %v1504, %v1712
      %v1714 = vpop.f32.mrb[0].mxu0
      %1715 = vmatprep.mubr.bf16.mxu0 0
      %1716 = vmatmul.mubr.bf16.gmra.mrb[0].mxu0 %v1287
      %v1717 = vpop.f32.mrb[0].mxu0
      %v1718 = vadd.f32 %v1509, %v1717
      %v1719 = vpop.f32.mrb[0].mxu0
      %v1720 = vpop.f32.mrb[0].mxu0
      %v1721 = vadd.f32 %v1512, %v1720
      %v1722 = vpop.f32.mrb[0].mxu0
      %1723 = vmatprep.mubr.bf16.mxu0 0
      %1724 = vmatmul.mubr.bf16.gmra.mrb[0].mxu0 %v1288
      %v1725 = vpop.f32.mrb[0].mxu0
      %v1726 = vadd.f32 %v1517, %v1725
      %v1727 = vpop.f32.mrb[0].mxu0
      %v1728 = vpop.f32.mrb[0].mxu0
      %v1729 = vadd.f32 %v1520, %v1728
      %v1730 = vpop.f32.mrb[0].mxu0
      %1731 = vmatprep.mubr.bf16.mxu0 0
      %1732 = vmatmul.mubr.bf16.gmra.mrb[0].mxu0 %v1289
      %v1733 = vpop.f32.mrb[0].mxu0
      %v1734 = vadd.f32 %v1525, %v1733
      %v1735 = vpop.f32.mrb[0].mxu0
      %v1736 = vpop.f32.mrb[0].mxu0
      %v1737 = vadd.f32 %v1528, %v1736
      %v1738 = vpop.f32.mrb[0].mxu0
      %1739 = vmatprep.mubr.bf16.mxu0 0
      %1740 = vmatmul.mubr.bf16.gmra.mrb[0].mxu0 %v1290
      %v1741 = vpop.f32.mrb[0].mxu0
      %v1742 = vadd.f32 %v1533, %v1741
      %v1743 = vpop.f32.mrb[0].mxu0
      %v1744 = vpop.f32.mrb[0].mxu0
      %v1745 = vadd.f32 %v1536, %v1744
      %v1746 = vpop.f32.mrb[0].mxu0
      %1747 = vmatprep.mubr.bf16.mxu0 0
      %1748 = vmatmul.mubr.bf16.gmra.mrb[0].mxu0 %v1291
      %v1749 = vpop.f32.mrb[0].mxu0
      %v1750 = vadd.f32 %v1541, %v1749
      %v1751 = vpop.f32.mrb[0].mxu0
      %v1752 = vpop.f32.mrb[0].mxu0
      %v1753 = vadd.f32 %v1544, %v1752
      %v1754 = vpop.f32.mrb[0].mxu0
      %1755 = vmatprep.mubr.bf16.mxu0 0
      %1756 = vmatmul.mubr.bf16.gmra.mrb[0].mxu0 %v1292
      %v1757 = vpop.f32.mrb[0].mxu0
      %v1758 = vadd.f32 %v1549, %v1757
      %v1759 = vpop.f32.mrb[0].mxu0
      %v1760 = vpop.f32.mrb[0].mxu0
      %v1761 = vadd.f32 %v1552, %v1760
      %v1762 = vpop.f32.mrb[0].mxu0
      %1763 = vmatprep.mubr.bf16.mxu0 0
      %1764 = vmatmul.mubr.bf16.gmra.mrb[0].mxu0 %v1293
      %v1765 = vpop.f32.mrb[0].mxu0
      %v1766 = vadd.f32 %v1557, %v1765
      %v1767 = vpop.f32.mrb[0].mxu0
      %v1768 = vpop.f32.mrb[0].mxu0
      %v1769 = vadd.f32 %v1560, %v1768
      %v1770 = vpop.f32.mrb[0].mxu0
      %1771 = vmatprep.mubr.bf16.mxu0 0
      %1772 = vmatmul.mubr.bf16.gmra.mrb[0].mxu0 %v1294
      %v1773 = vpop.f32.mrb[0].mxu0
      %v1774 = vadd.f32 %v1565, %v1773
      %v1775 = vpop.f32.mrb[0].mxu0
      %v1776 = vpop.f32.mrb[0].mxu0
      %v1777 = vadd.f32 %v1568, %v1776
      %v1778 = vpop.f32.mrb[0].mxu0
      %1779 = vmatprep.mubr.bf16.mxu0 0
      %1780 = vmatmul.mubr.bf16.gmra.mrb[0].mxu0 %v1295
      %v1781 = vpop.f32.mrb[0].mxu0
      %v1782 = vadd.f32 %v1573, %v1781
      %v1783 = vpop.f32.mrb[0].mxu0
      %v1784 = vpop.f32.mrb[0].mxu0
      %v1785 = vadd.f32 %v1576, %v1784
      %v1786 = vpop.f32.mrb[0].mxu0
      %1787 = vmatprep.mubr.bf16.mxu0 0
      %1788 = vmatmul.mubr.bf16.gmra.mrb[0].mxu0 %v1296
      %v1789 = vpop.f32.mrb[0].mxu0
      %v1790 = vadd.f32 %v1581, %v1789
      %v1791 = vpop.f32.mrb[0].mxu0
      %v1792 = vpop.f32.mrb[0].mxu0
      %v1793 = vadd.f32 %v1584, %v1792
      %v1794 = vpop.f32.mrb[0].mxu0
      %1795 = vdwg.mxu0
      %v1796 = vld [vmem:[#allocation2 + $0x2] sm:$0xff]
      %v1797 = vld [vmem:[#allocation2 + $0xa] sm:$0xff]
      %v1798 = vld [vmem:[#allocation2 + $0x1a] sm:$0xff]
      %v1799 = vld [vmem:[#allocation2 + $0x22] sm:$0xff]
      %v1800 = vld [vmem:[#allocation2 + $0x32] sm:$0xff]
      %v1801 = vld [vmem:[#allocation2 + $0x3a] sm:$0xff]
      %v1802 = vld [vmem:[#allocation2 + $0x4a] sm:$0xff]
      %v1803 = vld [vmem:[#allocation2 + $0x52] sm:$0xff]
      %v1804 = vld [vmem:[#allocation2 + $0x62] sm:$0xff]
      %v1805 = vld [vmem:[#allocation2 + $0x6a] sm:$0xff]
      %v1806 = vld [vmem:[#allocation2 + $0x7a] sm:$0xff]
      %v1807 = vld [vmem:[#allocation2 + $0x82] sm:$0xff]
      %v1808 = vld [vmem:[#allocation2 + $0x92] sm:$0xff]
      %v1809 = vld [vmem:[#allocation2 + $0x9a] sm:$0xff]
      %v1810 = vld [vmem:[#allocation2 + $0xaa] sm:$0xff]
      %v1811 = vld [vmem:[#allocation2 + $0xb2] sm:$0xff]
      %v1812 = vld [vmem:[#allocation2 + $0xc2] sm:$0xff]
      %v1813 = vld [vmem:[#allocation2 + $0xca] sm:$0xff]
      %v1814 = vld [vmem:[#allocation2 + $0xda] sm:$0xff]
      %v1815 = vld [vmem:[#allocation2 + $0xe2] sm:$0xff]
      %v1816 = vld [vmem:[#allocation2 + $0xf2] sm:$0xff]
      %v1817 = vld [vmem:[#allocation2 + $0xfa] sm:$0xff]
      %v1818 = vld [vmem:[#allocation2 + $0x10a] sm:$0xff]
      %v1819 = vld [vmem:[#allocation2 + $0x112] sm:$0xff]
      %v1820 = vld [vmem:[#allocation2 + $0x122] sm:$0xff]
      %v1821 = vld [vmem:[#allocation2 + $0x12a] sm:$0xff]
      %v1822 = vld [vmem:[#allocation2 + $0x13a] sm:$0xff]
      %v1823 = vld [vmem:[#allocation2 + $0x142] sm:$0xff]
      %v1824 = vld [vmem:[#allocation2 + $0x152] sm:$0xff]
      %v1825 = vld [vmem:[#allocation2 + $0x15a] sm:$0xff]
      %v1826 = vld [vmem:[#allocation2 + $0x16a] sm:$0xff]
      %v1827 = vld [vmem:[#allocation2 + $0x172] sm:$0xff]
      %v1828 = vpack.c.bf16 %v1797, %v1796
      %v1829 = vpack.c.bf16 %v1799, %v1798
      %v1830 = vpack.c.bf16 %v1801, %v1800
      %v1831 = vpack.c.bf16 %v1803, %v1802
      %v1832 = vpack.c.bf16 %v1805, %v1804
      %v1833 = vpack.c.bf16 %v1807, %v1806
      %v1834 = vpack.c.bf16 %v1809, %v1808
      %v1835 = vpack.c.bf16 %v1811, %v1810
      %v1836 = vpack.c.bf16 %v1813, %v1812
      %v1837 = vpack.c.bf16 %v1815, %v1814
      %v1838 = vpack.c.bf16 %v1817, %v1816
      %v1839 = vpack.c.bf16 %v1819, %v1818
      %v1840 = vpack.c.bf16 %v1821, %v1820
      %v1841 = vpack.c.bf16 %v1823, %v1822
      %v1842 = vpack.c.bf16 %v1825, %v1824
      %v1843 = vpack.c.bf16 %v1827, %v1826
      %s1844 = scalar_lea.vmem %s7, 128
      %v1845 = vld [vmem:[%s1844] sm:$0xf]
      %v1846 = vld [vmem:[%s1844 + $0x4] sm:$0xf]
      %v1847 = vld [vmem:[%s1844 + $0x8] sm:$0xf]
      %v1848 = vld [vmem:[%s1844 + $0xc] sm:$0xf]
      %v1849 = vld [vmem:[%s1844 + $0x10] sm:$0xf]
      %v1850 = vld [vmem:[%s1844 + $0x14] sm:$0xf]
      %v1851 = vld [vmem:[%s1844 + $0x18] sm:$0xf]
      %v1852 = vld [vmem:[%s1844 + $0x1c] sm:$0xf]
      %v1853 = vld [vmem:[%s1844 + $0x20] sm:$0xf]
      %v1854 = vld [vmem:[%s1844 + $0x24] sm:$0xf]
      %v1855 = vld [vmem:[%s1844 + $0x28] sm:$0xf]
      %v1856 = vld [vmem:[%s1844 + $0x2c] sm:$0xf]
      %v1857 = vld [vmem:[%s1844 + $0x30] sm:$0xf]
      %v1858 = vld [vmem:[%s1844 + $0x34] sm:$0xf]
      %v1859 = vld [vmem:[%s1844 + $0x38] sm:$0xf]
      %v1860 = vld [vmem:[%s1844 + $0x3c] sm:$0xf]
      %v1877 = vunpack.c.l.b16 %v1845
      %v1878 = vunpack.c.l.b16 %v1846
      %v1879 = vunpack.c.l.b16 %v1847
      %v1880 = vunpack.c.l.b16 %v1848
      %v1881 = vunpack.c.l.b16 %v1849
      %v1882 = vunpack.c.l.b16 %v1850
      %v1883 = vunpack.c.l.b16 %v1851
      %v1884 = vunpack.c.l.b16 %v1852
      %v1885 = vunpack.c.l.b16 %v1853
      %v1886 = vunpack.c.l.b16 %v1854
      %v1887 = vunpack.c.l.b16 %v1855
      %v1888 = vunpack.c.l.b16 %v1856
      %v1889 = vunpack.c.l.b16 %v1857
      %v1890 = vunpack.c.l.b16 %v1858
      %v1891 = vunpack.c.l.b16 %v1859
      %v1892 = vunpack.c.l.b16 %v1860
      %v1893 = vpack.c.b16 %v1878, %v1877
      %v1894 = vpack.c.b16 %v1880, %v1879
      %v1895 = vpack.c.b16 %v1882, %v1881
      %v1896 = vpack.c.b16 %v1884, %v1883
      %v1897 = vpack.c.b16 %v1886, %v1885
      %v1898 = vpack.c.b16 %v1888, %v1887
      %v1899 = vpack.c.b16 %v1890, %v1889
      %v1900 = vpack.c.b16 %v1892, %v1891
      %1909 = vmatprep.subr.bf16.mxu0 0
      %1910 = vmatpush1.bf16.msra.mxu0 %v1893
      %1911 = vmatprep.subr.bf16.mxu0 0
      %1912 = vmatpush1.bf16.msra.mxu0 %v1894
      %1913 = vmatprep.subr.bf16.mxu0 0
      %1914 = vmatpush1.bf16.msra.mxu0 %v1895
      %1915 = vmatprep.subr.bf16.mxu0 0
      %1916 = vmatpush1.bf16.msra.mxu0 %v1896
      %1917 = vmatprep.subr.bf16.mxu0 0
      %1918 = vmatpush1.bf16.msra.mxu0 %v1897
      %1919 = vmatprep.subr.bf16.mxu0 0
      %1920 = vmatpush1.bf16.msra.mxu0 %v1898
      %1921 = vmatprep.subr.bf16.mxu0 0
      %1922 = vmatpush1.bf16.msra.mxu0 %v1899
      %1923 = vmatprep.subr.bf16.mxu0 0
      %1924 = vmatpush1.bf16.msra.mxu0 %v1900
      %1925 = vmatprep.subr.bf16.mxu0 0
      %1926 = vmatpush1.bf16.msra.mxu0 0
      %1927 = vmatprep.subr.bf16.mxu0 0
      %1928 = vmatpush1.bf16.msra.mxu0 0
      %1929 = vmatprep.subr.bf16.mxu0 0
      %1930 = vmatpush1.bf16.msra.mxu0 0
      %1931 = vmatprep.subr.bf16.mxu0 0
      %1932 = vmatpush1.bf16.msra.mxu0 0
      %1933 = vmatprep.subr.bf16.mxu0 0
      %1934 = vmatpush1.bf16.msra.mxu0 0
      %1935 = vmatprep.subr.bf16.mxu0 0
      %1936 = vmatpush1.bf16.msra.mxu0 0
      %1937 = vmatprep.subr.bf16.mxu0 0
      %1938 = vmatpush1.bf16.msra.mxu0 0
      %1939 = vmatprep.subr.bf16.mxu0 0
      %1940 = vmatpush1.bf16.msra.mxu0 0
      %1941 = vmatprep.mubr.bf16.mxu0 0
      %1942 = vmatmul.mubr.bf16.gmra.mrb[0].mxu0 %v1828
      %v1943 = vpop.f32.mrb[0].mxu0
      %v1944 = vadd.f32 0.0, %v1943
      %v1945 = vpop.f32.mrb[0].mxu0
      %v1946 = vpop.f32.mrb[0].mxu0
      %v1947 = vadd.f32 0.0, %v1946
      %v1948 = vpop.f32.mrb[0].mxu0
      %1949 = vmatprep.mubr.bf16.mxu0 0
      %1950 = vmatmul.mubr.bf16.gmra.mrb[0].mxu0 %v1829
      %v1951 = vpop.f32.mrb[0].mxu0
      %v1952 = vadd.f32 0.0, %v1951
      %v1953 = vpop.f32.mrb[0].mxu0
      %v1954 = vpop.f32.mrb[0].mxu0
      %v1955 = vadd.f32 0.0, %v1954
      %v1956 = vpop.f32.mrb[0].mxu0
      %1957 = vmatprep.mubr.bf16.mxu0 0
      %1958 = vmatmul.mubr.bf16.gmra.mrb[0].mxu0 %v1830
      %v1959 = vpop.f32.mrb[0].mxu0
      %v1960 = vadd.f32 0.0, %v1959
      %v1961 = vpop.f32.mrb[0].mxu0
      %v1962 = vpop.f32.mrb[0].mxu0
      %v1963 = vadd.f32 0.0, %v1962
      %v1964 = vpop.f32.mrb[0].mxu0
      %1965 = vmatprep.mubr.bf16.mxu0 0
      %1966 = vmatmul.mubr.bf16.gmra.mrb[0].mxu0 %v1831
      %v1967 = vpop.f32.mrb[0].mxu0
      %v1968 = vadd.f32 0.0, %v1967
      %v1969 = vpop.f32.mrb[0].mxu0
      %v1970 = vpop.f32.mrb[0].mxu0
      %v1971 = vadd.f32 0.0, %v1970
      %v1972 = vpop.f32.mrb[0].mxu0
      %1973 = vmatprep.mubr.bf16.mxu0 0
      %1974 = vmatmul.mubr.bf16.gmra.mrb[0].mxu0 %v1832
      %v1975 = vpop.f32.mrb[0].mxu0
      %v1976 = vadd.f32 0.0, %v1975
      %v1977 = vpop.f32.mrb[0].mxu0
      %v1978 = vpop.f32.mrb[0].mxu0
      %v1979 = vadd.f32 0.0, %v1978
      %v1980 = vpop.f32.mrb[0].mxu0
      %1981 = vmatprep.mubr.bf16.mxu0 0
      %1982 = vmatmul.mubr.bf16.gmra.mrb[0].mxu0 %v1833
      %v1983 = vpop.f32.mrb[0].mxu0
      %v1984 = vadd.f32 0.0, %v1983
      %v1985 = vpop.f32.mrb[0].mxu0
      %v1986 = vpop.f32.mrb[0].mxu0
      %v1987 = vadd.f32 0.0, %v1986
      %v1988 = vpop.f32.mrb[0].mxu0
      %1989 = vmatprep.mubr.bf16.mxu0 0
      %1990 = vmatmul.mubr.bf16.gmra.mrb[0].mxu0 %v1834
      %v1991 = vpop.f32.mrb[0].mxu0
      %v1992 = vadd.f32 0.0, %v1991
      %v1993 = vpop.f32.mrb[0].mxu0
      %v1994 = vpop.f32.mrb[0].mxu0
      %v1995 = vadd.f32 0.0, %v1994
      %v1996 = vpop.f32.mrb[0].mxu0
      %1997 = vmatprep.mubr.bf16.mxu0 0
      %1998 = vmatmul.mubr.bf16.gmra.mrb[0].mxu0 %v1835
      %v1999 = vpop.f32.mrb[0].mxu0
      %v2000 = vadd.f32 0.0, %v1999
      %v2001 = vpop.f32.mrb[0].mxu0
      %v2002 = vpop.f32.mrb[0].mxu0
      %v2003 = vadd.f32 0.0, %v2002
      %v2004 = vpop.f32.mrb[0].mxu0
      %2005 = vmatprep.mubr.bf16.mxu0 0
      %2006 = vmatmul.mubr.bf16.gmra.mrb[0].mxu0 %v1836
      %v2007 = vpop.f32.mrb[0].mxu0
      %v2008 = vadd.f32 0.0, %v2007
      %v2009 = vpop.f32.mrb[0].mxu0
      %v2010 = vpop.f32.mrb[0].mxu0
      %v2011 = vadd.f32 0.0, %v2010
      %v2012 = vpop.f32.mrb[0].mxu0
      %2013 = vmatprep.mubr.bf16.mxu0 0
      %2014 = vmatmul.mubr.bf16.gmra.mrb[0].mxu0 %v1837
      %v2015 = vpop.f32.mrb[0].mxu0
      %v2016 = vadd.f32 0.0, %v2015
      %v2017 = vpop.f32.mrb[0].mxu0
      %v2018 = vpop.f32.mrb[0].mxu0
      %v2019 = vadd.f32 0.0, %v2018
      %v2020 = vpop.f32.mrb[0].mxu0
      %2021 = vmatprep.mubr.bf16.mxu0 0
      %2022 = vmatmul.mubr.bf16.gmra.mrb[0].mxu0 %v1838
      %v2023 = vpop.f32.mrb[0].mxu0
      %v2024 = vadd.f32 0.0, %v2023
      %v2025 = vpop.f32.mrb[0].mxu0
      %v2026 = vpop.f32.mrb[0].mxu0
      %v2027 = vadd.f32 0.0, %v2026
      %v2028 = vpop.f32.mrb[0].mxu0
      %2029 = vmatprep.mubr.bf16.mxu0 0
      %2030 = vmatmul.mubr.bf16.gmra.mrb[0].mxu0 %v1839
      %v2031 = vpop.f32.mrb[0].mxu0
      %v2032 = vadd.f32 0.0, %v2031
      %v2033 = vpop.f32.mrb[0].mxu0
      %v2034 = vpop.f32.mrb[0].mxu0
      %v2035 = vadd.f32 0.0, %v2034
      %v2036 = vpop.f32.mrb[0].mxu0
      %2037 = vmatprep.mubr.bf16.mxu0 0
      %2038 = vmatmul.mubr.bf16.gmra.mrb[0].mxu0 %v1840
      %v2039 = vpop.f32.mrb[0].mxu0
      %v2040 = vadd.f32 0.0, %v2039
      %v2041 = vpop.f32.mrb[0].mxu0
      %v2042 = vpop.f32.mrb[0].mxu0
      %v2043 = vadd.f32 0.0, %v2042
      %v2044 = vpop.f32.mrb[0].mxu0
      %2045 = vmatprep.mubr.bf16.mxu0 0
      %2046 = vmatmul.mubr.bf16.gmra.mrb[0].mxu0 %v1841
      %v2047 = vpop.f32.mrb[0].mxu0
      %v2048 = vadd.f32 0.0, %v2047
      %v2049 = vpop.f32.mrb[0].mxu0
      %v2050 = vpop.f32.mrb[0].mxu0
      %v2051 = vadd.f32 0.0, %v2050
      %v2052 = vpop.f32.mrb[0].mxu0
      %2053 = vmatprep.mubr.bf16.mxu0 0
      %2054 = vmatmul.mubr.bf16.gmra.mrb[0].mxu0 %v1842
      %v2055 = vpop.f32.mrb[0].mxu0
      %v2056 = vadd.f32 0.0, %v2055
      %v2057 = vpop.f32.mrb[0].mxu0
      %v2058 = vpop.f32.mrb[0].mxu0
      %v2059 = vadd.f32 0.0, %v2058
      %v2060 = vpop.f32.mrb[0].mxu0
      %2061 = vmatprep.mubr.bf16.mxu0 0
      %2062 = vmatmul.mubr.bf16.gmra.mrb[0].mxu0 %v1843
      %v2063 = vpop.f32.mrb[0].mxu0
      %v2064 = vadd.f32 0.0, %v2063
      %v2065 = vpop.f32.mrb[0].mxu0
      %v2066 = vpop.f32.mrb[0].mxu0
      %v2067 = vadd.f32 0.0, %v2066
      %v2068 = vpop.f32.mrb[0].mxu0
      %2069 = vdwg.mxu0
      %v2070 = vadd.f32 %v1670, %v1944
      %v2071 = vadd.f32 %v1673, %v1947
      %v2072 = vadd.f32 %v1678, %v1952
      %v2073 = vadd.f32 %v1681, %v1955
      %v2074 = vadd.f32 %v1686, %v1960
      %v2075 = vadd.f32 %v1689, %v1963
      %v2076 = vadd.f32 %v1694, %v1968
      %v2077 = vadd.f32 %v1697, %v1971
      %v2078 = vadd.f32 %v1702, %v1976
      %v2079 = vadd.f32 %v1705, %v1979
      %v2080 = vadd.f32 %v1710, %v1984
      %v2081 = vadd.f32 %v1713, %v1987
      %v2082 = vadd.f32 %v1718, %v1992
      %v2083 = vadd.f32 %v1721, %v1995
      %v2084 = vadd.f32 %v1726, %v2000
      %v2085 = vadd.f32 %v1729, %v2003
      %v2086 = vadd.f32 %v1734, %v2008
      %v2087 = vadd.f32 %v1737, %v2011
      %v2088 = vadd.f32 %v1742, %v2016
      %v2089 = vadd.f32 %v1745, %v2019
      %v2090 = vadd.f32 %v1750, %v2024
      %v2091 = vadd.f32 %v1753, %v2027
      %v2092 = vadd.f32 %v1758, %v2032
      %v2093 = vadd.f32 %v1761, %v2035
      %v2094 = vadd.f32 %v1766, %v2040
      %v2095 = vadd.f32 %v1769, %v2043
      %v2096 = vadd.f32 %v1774, %v2048
      %v2097 = vadd.f32 %v1777, %v2051
      %v2098 = vadd.f32 %v1782, %v2056
      %v2099 = vadd.f32 %v1785, %v2059
      %v2100 = vadd.f32 %v1790, %v2064
      %v2101 = vadd.f32 %v1793, %v2067
      %v2102 = vld [vmem:[%s1184] sm:$0xff]
      %v2103 = vld [vmem:[%s1184 + $0x8] sm:$0xff]
      %v2104 = vld [vmem:[%s1184 + $0x18] sm:$0xff]
      %v2105 = vld [vmem:[%s1184 + $0x20] sm:$0xff]
      %v2106 = vld [vmem:[%s1184 + $0x30] sm:$0xff]
      %v2107 = vld [vmem:[%s1184 + $0x38] sm:$0xff]
      %v2108 = vld [vmem:[%s1184 + $0x48] sm:$0xff]
      %v2109 = vld [vmem:[%s1184 + $0x50] sm:$0xff]
      %v2110 = vld [vmem:[%s1184 + $0x60] sm:$0xff]
      %v2111 = vld [vmem:[%s1184 + $0x68] sm:$0xff]
      %v2112 = vld [vmem:[%s1184 + $0x78] sm:$0xff]
      %v2113 = vld [vmem:[%s1184 + $0x80] sm:$0xff]
      %v2114 = vld [vmem:[%s1184 + $0x90] sm:$0xff]
      %v2115 = vld [vmem:[%s1184 + $0x98] sm:$0xff]
      %v2116 = vld [vmem:[%s1184 + $0xa8] sm:$0xff]
      %v2117 = vld [vmem:[%s1184 + $0xb0] sm:$0xff]
      %v2118 = vld [vmem:[%s1184 + $0xc0] sm:$0xff]
      %v2119 = vld [vmem:[%s1184 + $0xc8] sm:$0xff]
      %v2120 = vld [vmem:[%s1184 + $0xd8] sm:$0xff]
      %v2121 = vld [vmem:[%s1184 + $0xe0] sm:$0xff]
      %v2122 = vld [vmem:[%s1184 + $0xf0] sm:$0xff]
      %v2123 = vld [vmem:[%s1184 + $0xf8] sm:$0xff]
      %v2124 = vld [vmem:[%s1184 + $0x108] sm:$0xff]
      %v2125 = vld [vmem:[%s1184 + $0x110] sm:$0xff]
      %v2126 = vld [vmem:[%s1184 + $0x120] sm:$0xff]
      %v2127 = vld [vmem:[%s1184 + $0x128] sm:$0xff]
      %v2128 = vld [vmem:[%s1184 + $0x138] sm:$0xff]
      %v2129 = vld [vmem:[%s1184 + $0x140] sm:$0xff]
      %v2130 = vld [vmem:[%s1184 + $0x150] sm:$0xff]
      %v2131 = vld [vmem:[%s1184 + $0x158] sm:$0xff]
      %v2132 = vld [vmem:[%s1184 + $0x168] sm:$0xff]
      %v2133 = vld [vmem:[%s1184 + $0x170] sm:$0xff]
      %v2134 = vpack.c.bf16 %v2103, %v2102
      %v2135 = vpack.c.bf16 %v2105, %v2104
      %v2136 = vpack.c.bf16 %v2107, %v2106
      %v2137 = vpack.c.bf16 %v2109, %v2108
      %v2138 = vpack.c.bf16 %v2111, %v2110
      %v2139 = vpack.c.bf16 %v2113, %v2112
      %v2140 = vpack.c.bf16 %v2115, %v2114
      %v2141 = vpack.c.bf16 %v2117, %v2116
      %v2142 = vpack.c.bf16 %v2119, %v2118
      %v2143 = vpack.c.bf16 %v2121, %v2120
      %v2144 = vpack.c.bf16 %v2123, %v2122
      %v2145 = vpack.c.bf16 %v2125, %v2124
      %v2146 = vpack.c.bf16 %v2127, %v2126
      %v2147 = vpack.c.bf16 %v2129, %v2128
      %v2148 = vpack.c.bf16 %v2131, %v2130
      %v2149 = vpack.c.bf16 %v2133, %v2132
      %s2150 = scalar_lea.vmem %s7, 192
      %v2151 = vld [vmem:[%s2150] sm:$0xf]
      %v2152 = vld [vmem:[%s2150 + $0x4] sm:$0xf]
      %v2153 = vld [vmem:[%s2150 + $0x8] sm:$0xf]
      %v2154 = vld [vmem:[%s2150 + $0xc] sm:$0xf]
      %v2155 = vld [vmem:[%s2150 + $0x10] sm:$0xf]
      %v2156 = vld [vmem:[%s2150 + $0x14] sm:$0xf]
      %v2157 = vld [vmem:[%s2150 + $0x18] sm:$0xf]
      %v2158 = vld [vmem:[%s2150 + $0x1c] sm:$0xf]
      %v2159 = vld [vmem:[%s2150 + $0x20] sm:$0xf]
      %v2160 = vld [vmem:[%s2150 + $0x24] sm:$0xf]
      %v2161 = vld [vmem:[%s2150 + $0x28] sm:$0xf]
      %v2162 = vld [vmem:[%s2150 + $0x2c] sm:$0xf]
      %v2163 = vld [vmem:[%s2150 + $0x30] sm:$0xf]
      %v2164 = vld [vmem:[%s2150 + $0x34] sm:$0xf]
      %v2165 = vld [vmem:[%s2150 + $0x38] sm:$0xf]
      %v2166 = vld [vmem:[%s2150 + $0x3c] sm:$0xf]
      %v2183 = vunpack.c.l.b16 %v2151
      %v2184 = vunpack.c.l.b16 %v2152
      %v2185 = vunpack.c.l.b16 %v2153
      %v2186 = vunpack.c.l.b16 %v2154
      %v2187 = vunpack.c.l.b16 %v2155
      %v2188 = vunpack.c.l.b16 %v2156
      %v2189 = vunpack.c.l.b16 %v2157
      %v2190 = vunpack.c.l.b16 %v2158
      %v2191 = vunpack.c.l.b16 %v2159
      %v2192 = vunpack.c.l.b16 %v2160
      %v2193 = vunpack.c.l.b16 %v2161
      %v2194 = vunpack.c.l.b16 %v2162
      %v2195 = vunpack.c.l.b16 %v2163
      %v2196 = vunpack.c.l.b16 %v2164
      %v2197 = vunpack.c.l.b16 %v2165
      %v2198 = vunpack.c.l.b16 %v2166
      %v2199 = vpack.c.b16 %v2184, %v2183
      %v2200 = vpack.c.b16 %v2186, %v2185
      %v2201 = vpack.c.b16 %v2188, %v2187
      %v2202 = vpack.c.b16 %v2190, %v2189
      %v2203 = vpack.c.b16 %v2192, %v2191
      %v2204 = vpack.c.b16 %v2194, %v2193
      %v2205 = vpack.c.b16 %v2196, %v2195
      %v2206 = vpack.c.b16 %v2198, %v2197
      %2215 = vmatprep.subr.bf16.mxu0 0
      %2216 = vmatpush1.bf16.msra.mxu0 %v2199
      %2217 = vmatprep.subr.bf16.mxu0 0
      %2218 = vmatpush1.bf16.msra.mxu0 %v2200
      %2219 = vmatprep.subr.bf16.mxu0 0
      %2220 = vmatpush1.bf16.msra.mxu0 %v2201
      %2221 = vmatprep.subr.bf16.mxu0 0
      %2222 = vmatpush1.bf16.msra.mxu0 %v2202
      %2223 = vmatprep.subr.bf16.mxu0 0
      %2224 = vmatpush1.bf16.msra.mxu0 %v2203
      %2225 = vmatprep.subr.bf16.mxu0 0
      %2226 = vmatpush1.bf16.msra.mxu0 %v2204
      %2227 = vmatprep.subr.bf16.mxu0 0
      %2228 = vmatpush1.bf16.msra.mxu0 %v2205
      %2229 = vmatprep.subr.bf16.mxu0 0
      %2230 = vmatpush1.bf16.msra.mxu0 %v2206
      %2231 = vmatprep.subr.bf16.mxu0 0
      %2232 = vmatpush1.bf16.msra.mxu0 0
      %2233 = vmatprep.subr.bf16.mxu0 0
      %2234 = vmatpush1.bf16.msra.mxu0 0
      %2235 = vmatprep.subr.bf16.mxu0 0
      %2236 = vmatpush1.bf16.msra.mxu0 0
      %2237 = vmatprep.subr.bf16.mxu0 0
      %2238 = vmatpush1.bf16.msra.mxu0 0
      %2239 = vmatprep.subr.bf16.mxu0 0
      %2240 = vmatpush1.bf16.msra.mxu0 0
      %2241 = vmatprep.subr.bf16.mxu0 0
      %2242 = vmatpush1.bf16.msra.mxu0 0
      %2243 = vmatprep.subr.bf16.mxu0 0
      %2244 = vmatpush1.bf16.msra.mxu0 0
      %2245 = vmatprep.subr.bf16.mxu0 0
      %2246 = vmatpush1.bf16.msra.mxu0 0
      %2247 = vmatprep.mubr.bf16.mxu0 0
      %2248 = vmatmul.mubr.bf16.gmra.mrb[0].mxu0 %v2134
      %v2249 = vpop.f32.mrb[0].mxu0
      %v2250 = vadd.f32 0.0, %v2249
      %v2251 = vpop.f32.mrb[0].mxu0
      %v2252 = vpop.f32.mrb[0].mxu0
      %v2253 = vadd.f32 0.0, %v2252
      %v2254 = vpop.f32.mrb[0].mxu0
      %2255 = vmatprep.mubr.bf16.mxu0 0
      %2256 = vmatmul.mubr.bf16.gmra.mrb[0].mxu0 %v2135
      %v2257 = vpop.f32.mrb[0].mxu0
      %v2258 = vadd.f32 0.0, %v2257
      %v2259 = vpop.f32.mrb[0].mxu0
      %v2260 = vpop.f32.mrb[0].mxu0
      %v2261 = vadd.f32 0.0, %v2260
      %v2262 = vpop.f32.mrb[0].mxu0
      %2263 = vmatprep.mubr.bf16.mxu0 0
      %2264 = vmatmul.mubr.bf16.gmra.mrb[0].mxu0 %v2136
      %v2265 = vpop.f32.mrb[0].mxu0
      %v2266 = vadd.f32 0.0, %v2265
      %v2267 = vpop.f32.mrb[0].mxu0
      %v2268 = vpop.f32.mrb[0].mxu0
      %v2269 = vadd.f32 0.0, %v2268
      %v2270 = vpop.f32.mrb[0].mxu0
      %2271 = vmatprep.mubr.bf16.mxu0 0
      %2272 = vmatmul.mubr.bf16.gmra.mrb[0].mxu0 %v2137
      %v2273 = vpop.f32.mrb[0].mxu0
      %v2274 = vadd.f32 0.0, %v2273
      %v2275 = vpop.f32.mrb[0].mxu0
      %v2276 = vpop.f32.mrb[0].mxu0
      %v2277 = vadd.f32 0.0, %v2276
      %v2278 = vpop.f32.mrb[0].mxu0
      %2279 = vmatprep.mubr.bf16.mxu0 0
      %2280 = vmatmul.mubr.bf16.gmra.mrb[0].mxu0 %v2138
      %v2281 = vpop.f32.mrb[0].mxu0
      %v2282 = vadd.f32 0.0, %v2281
      %v2283 = vpop.f32.mrb[0].mxu0
      %v2284 = vpop.f32.mrb[0].mxu0
      %v2285 = vadd.f32 0.0, %v2284
      %v2286 = vpop.f32.mrb[0].mxu0
      %2287 = vmatprep.mubr.bf16.mxu0 0
      %2288 = vmatmul.mubr.bf16.gmra.mrb[0].mxu0 %v2139
      %v2289 = vpop.f32.mrb[0].mxu0
      %v2290 = vadd.f32 0.0, %v2289
      %v2291 = vpop.f32.mrb[0].mxu0
      %v2292 = vpop.f32.mrb[0].mxu0
      %v2293 = vadd.f32 0.0, %v2292
      %v2294 = vpop.f32.mrb[0].mxu0
      %2295 = vmatprep.mubr.bf16.mxu0 0
      %2296 = vmatmul.mubr.bf16.gmra.mrb[0].mxu0 %v2140
      %v2297 = vpop.f32.mrb[0].mxu0
      %v2298 = vadd.f32 0.0, %v2297
      %v2299 = vpop.f32.mrb[0].mxu0
      %v2300 = vpop.f32.mrb[0].mxu0
      %v2301 = vadd.f32 0.0, %v2300
      %v2302 = vpop.f32.mrb[0].mxu0
      %2303 = vmatprep.mubr.bf16.mxu0 0
      %2304 = vmatmul.mubr.bf16.gmra.mrb[0].mxu0 %v2141
      %v2305 = vpop.f32.mrb[0].mxu0
      %v2306 = vadd.f32 0.0, %v2305
      %v2307 = vpop.f32.mrb[0].mxu0
      %v2308 = vpop.f32.mrb[0].mxu0
      %v2309 = vadd.f32 0.0, %v2308
      %v2310 = vpop.f32.mrb[0].mxu0
      %2311 = vmatprep.mubr.bf16.mxu0 0
      %2312 = vmatmul.mubr.bf16.gmra.mrb[0].mxu0 %v2142
      %v2313 = vpop.f32.mrb[0].mxu0
      %v2314 = vadd.f32 0.0, %v2313
      %v2315 = vpop.f32.mrb[0].mxu0
      %v2316 = vpop.f32.mrb[0].mxu0
      %v2317 = vadd.f32 0.0, %v2316
      %v2318 = vpop.f32.mrb[0].mxu0
      %2319 = vmatprep.mubr.bf16.mxu0 0
      %2320 = vmatmul.mubr.bf16.gmra.mrb[0].mxu0 %v2143
      %v2321 = vpop.f32.mrb[0].mxu0
      %v2322 = vadd.f32 0.0, %v2321
      %v2323 = vpop.f32.mrb[0].mxu0
      %v2324 = vpop.f32.mrb[0].mxu0
      %v2325 = vadd.f32 0.0, %v2324
      %v2326 = vpop.f32.mrb[0].mxu0
      %2327 = vmatprep.mubr.bf16.mxu0 0
      %2328 = vmatmul.mubr.bf16.gmra.mrb[0].mxu0 %v2144
      %v2329 = vpop.f32.mrb[0].mxu0
      %v2330 = vadd.f32 0.0, %v2329
      %v2331 = vpop.f32.mrb[0].mxu0
      %v2332 = vpop.f32.mrb[0].mxu0
      %v2333 = vadd.f32 0.0, %v2332
      %v2334 = vpop.f32.mrb[0].mxu0
      %2335 = vmatprep.mubr.bf16.mxu0 0
      %2336 = vmatmul.mubr.bf16.gmra.mrb[0].mxu0 %v2145
      %v2337 = vpop.f32.mrb[0].mxu0
      %v2338 = vadd.f32 0.0, %v2337
      %v2339 = vpop.f32.mrb[0].mxu0
      %v2340 = vpop.f32.mrb[0].mxu0
      %v2341 = vadd.f32 0.0, %v2340
      %v2342 = vpop.f32.mrb[0].mxu0
      %2343 = vmatprep.mubr.bf16.mxu0 0
      %2344 = vmatmul.mubr.bf16.gmra.mrb[0].mxu0 %v2146
      %v2345 = vpop.f32.mrb[0].mxu0
      %v2346 = vadd.f32 0.0, %v2345
      %v2347 = vpop.f32.mrb[0].mxu0
      %v2348 = vpop.f32.mrb[0].mxu0
      %v2349 = vadd.f32 0.0, %v2348
      %v2350 = vpop.f32.mrb[0].mxu0
      %2351 = vmatprep.mubr.bf16.mxu0 0
      %2352 = vmatmul.mubr.bf16.gmra.mrb[0].mxu0 %v2147
      %v2353 = vpop.f32.mrb[0].mxu0
      %v2354 = vadd.f32 0.0, %v2353
      %v2355 = vpop.f32.mrb[0].mxu0
      %v2356 = vpop.f32.mrb[0].mxu0
      %v2357 = vadd.f32 0.0, %v2356
      %v2358 = vpop.f32.mrb[0].mxu0
      %2359 = vmatprep.mubr.bf16.mxu0 0
      %2360 = vmatmul.mubr.bf16.gmra.mrb[0].mxu0 %v2148
      %v2361 = vpop.f32.mrb[0].mxu0
      %v2362 = vadd.f32 0.0, %v2361
      %v2363 = vpop.f32.mrb[0].mxu0
      %v2364 = vpop.f32.mrb[0].mxu0
      %v2365 = vadd.f32 0.0, %v2364
      %v2366 = vpop.f32.mrb[0].mxu0
      %2367 = vmatprep.mubr.bf16.mxu0 0
      %2368 = vmatmul.mubr.bf16.gmra.mrb[0].mxu0 %v2149
      %v2369 = vpop.f32.mrb[0].mxu0
      %v2370 = vadd.f32 0.0, %v2369
      %v2371 = vpop.f32.mrb[0].mxu0
      %v2372 = vpop.f32.mrb[0].mxu0
      %v2373 = vadd.f32 0.0, %v2372
      %v2374 = vpop.f32.mrb[0].mxu0
      %2375 = vdwg.mxu0
      %v2376 = vadd.f32 %v2070, %v2250
      %v2377 = vadd.f32 %v2071, %v2253
      %v2378 = vadd.f32 %v2072, %v2258
      %v2379 = vadd.f32 %v2073, %v2261
      %v2380 = vadd.f32 %v2074, %v2266
      %v2381 = vadd.f32 %v2075, %v2269
      %v2382 = vadd.f32 %v2076, %v2274
      %v2383 = vadd.f32 %v2077, %v2277
      %v2384 = vadd.f32 %v2078, %v2282
      %v2385 = vadd.f32 %v2079, %v2285
      %v2386 = vadd.f32 %v2080, %v2290
      %v2387 = vadd.f32 %v2081, %v2293
      %v2388 = vadd.f32 %v2082, %v2298
      %v2389 = vadd.f32 %v2083, %v2301
      %v2390 = vadd.f32 %v2084, %v2306
      %v2391 = vadd.f32 %v2085, %v2309
      %v2392 = vadd.f32 %v2086, %v2314
      %v2393 = vadd.f32 %v2087, %v2317
      %v2394 = vadd.f32 %v2088, %v2322
      %v2395 = vadd.f32 %v2089, %v2325
      %v2396 = vadd.f32 %v2090, %v2330
      %v2397 = vadd.f32 %v2091, %v2333
      %v2398 = vadd.f32 %v2092, %v2338
      %v2399 = vadd.f32 %v2093, %v2341
      %v2400 = vadd.f32 %v2094, %v2346
      %v2401 = vadd.f32 %v2095, %v2349
      %v2402 = vadd.f32 %v2096, %v2354
      %v2403 = vadd.f32 %v2097, %v2357
      %v2404 = vadd.f32 %v2098, %v2362
      %v2405 = vadd.f32 %v2099, %v2365
      %v2406 = vadd.f32 %v2100, %v2370
      %v2407 = vadd.f32 %v2101, %v2373
      %v2408 = vld [vmem:[%s1184 + $0x1] sm:$0xff]
      %v2409 = vld [vmem:[%s1184 + $0x9] sm:$0xff]
      %v2410 = vld [vmem:[%s1184 + $0x19] sm:$0xff]
      %v2411 = vld [vmem:[%s1184 + $0x21] sm:$0xff]
      %v2412 = vld [vmem:[%s1184 + $0x31] sm:$0xff]
      %v2413 = vld [vmem:[%s1184 + $0x39] sm:$0xff]
      %v2414 = vld [vmem:[%s1184 + $0x49] sm:$0xff]
      %v2415 = vld [vmem:[%s1184 + $0x51] sm:$0xff]
      %v2416 = vld [vmem:[%s1184 + $0x61] sm:$0xff]
      %v2417 = vld [vmem:[%s1184 + $0x69] sm:$0xff]
      %v2418 = vld [vmem:[%s1184 + $0x79] sm:$0xff]
      %v2419 = vld [vmem:[%s1184 + $0x81] sm:$0xff]
      %v2420 = vld [vmem:[%s1184 + $0x91] sm:$0xff]
      %v2421 = vld [vmem:[%s1184 + $0x99] sm:$0xff]
      %v2422 = vld [vmem:[%s1184 + $0xa9] sm:$0xff]
      %v2423 = vld [vmem:[%s1184 + $0xb1] sm:$0xff]
      %v2424 = vld [vmem:[%s1184 + $0xc1] sm:$0xff]
      %v2425 = vld [vmem:[%s1184 + $0xc9] sm:$0xff]
      %v2426 = vld [vmem:[%s1184 + $0xd9] sm:$0xff]
      %v2427 = vld [vmem:[%s1184 + $0xe1] sm:$0xff]
      %v2428 = vld [vmem:[%s1184 + $0xf1] sm:$0xff]
      %v2429 = vld [vmem:[%s1184 + $0xf9] sm:$0xff]
      %v2430 = vld [vmem:[%s1184 + $0x109] sm:$0xff]
      %v2431 = vld [vmem:[%s1184 + $0x111] sm:$0xff]
      %v2432 = vld [vmem:[%s1184 + $0x121] sm:$0xff]
      %v2433 = vld [vmem:[%s1184 + $0x129] sm:$0xff]
      %v2434 = vld [vmem:[%s1184 + $0x139] sm:$0xff]
      %v2435 = vld [vmem:[%s1184 + $0x141] sm:$0xff]
      %v2436 = vld [vmem:[%s1184 + $0x151] sm:$0xff]
      %v2437 = vld [vmem:[%s1184 + $0x159] sm:$0xff]
      %v2438 = vld [vmem:[%s1184 + $0x169] sm:$0xff]
      %v2439 = vld [vmem:[%s1184 + $0x171] sm:$0xff]
      %v2440 = vpack.c.bf16 %v2409, %v2408
      %v2441 = vpack.c.bf16 %v2411, %v2410
      %v2442 = vpack.c.bf16 %v2413, %v2412
      %v2443 = vpack.c.bf16 %v2415, %v2414
      %v2444 = vpack.c.bf16 %v2417, %v2416
      %v2445 = vpack.c.bf16 %v2419, %v2418
      %v2446 = vpack.c.bf16 %v2421, %v2420
      %v2447 = vpack.c.bf16 %v2423, %v2422
      %v2448 = vpack.c.bf16 %v2425, %v2424
      %v2449 = vpack.c.bf16 %v2427, %v2426
      %v2450 = vpack.c.bf16 %v2429, %v2428
      %v2451 = vpack.c.bf16 %v2431, %v2430
      %v2452 = vpack.c.bf16 %v2433, %v2432
      %v2453 = vpack.c.bf16 %v2435, %v2434
      %v2454 = vpack.c.bf16 %v2437, %v2436
      %v2455 = vpack.c.bf16 %v2439, %v2438
      %s2456 = scalar_lea.vmem %s7, 256
      %v2457 = vld [vmem:[%s2456] sm:$0xf]
      %v2458 = vld [vmem:[%s2456 + $0x4] sm:$0xf]
      %v2459 = vld [vmem:[%s2456 + $0x8] sm:$0xf]
      %v2460 = vld [vmem:[%s2456 + $0xc] sm:$0xf]
      %v2461 = vld [vmem:[%s2456 + $0x10] sm:$0xf]
      %v2462 = vld [vmem:[%s2456 + $0x14] sm:$0xf]
      %v2463 = vld [vmem:[%s2456 + $0x18] sm:$0xf]
      %v2464 = vld [vmem:[%s2456 + $0x1c] sm:$0xf]
      %v2465 = vld [vmem:[%s2456 + $0x20] sm:$0xf]
      %v2466 = vld [vmem:[%s2456 + $0x24] sm:$0xf]
      %v2467 = vld [vmem:[%s2456 + $0x28] sm:$0xf]
      %v2468 = vld [vmem:[%s2456 + $0x2c] sm:$0xf]
      %v2469 = vld [vmem:[%s2456 + $0x30] sm:$0xf]
      %v2470 = vld [vmem:[%s2456 + $0x34] sm:$0xf]
      %v2471 = vld [vmem:[%s2456 + $0x38] sm:$0xf]
      %v2472 = vld [vmem:[%s2456 + $0x3c] sm:$0xf]
      %v2489 = vunpack.c.l.b16 %v2457
      %v2490 = vunpack.c.l.b16 %v2458
      %v2491 = vunpack.c.l.b16 %v2459
      %v2492 = vunpack.c.l.b16 %v2460
      %v2493 = vunpack.c.l.b16 %v2461
      %v2494 = vunpack.c.l.b16 %v2462
      %v2495 = vunpack.c.l.b16 %v2463
      %v2496 = vunpack.c.l.b16 %v2464
      %v2497 = vunpack.c.l.b16 %v2465
      %v2498 = vunpack.c.l.b16 %v2466
      %v2499 = vunpack.c.l.b16 %v2467
      %v2500 = vunpack.c.l.b16 %v2468
      %v2501 = vunpack.c.l.b16 %v2469
      %v2502 = vunpack.c.l.b16 %v2470
      %v2503 = vunpack.c.l.b16 %v2471
      %v2504 = vunpack.c.l.b16 %v2472
      %v2505 = vpack.c.b16 %v2490, %v2489
      %v2506 = vpack.c.b16 %v2492, %v2491
      %v2507 = vpack.c.b16 %v2494, %v2493
      %v2508 = vpack.c.b16 %v2496, %v2495
      %v2509 = vpack.c.b16 %v2498, %v2497
      %v2510 = vpack.c.b16 %v2500, %v2499
      %v2511 = vpack.c.b16 %v2502, %v2501
      %v2512 = vpack.c.b16 %v2504, %v2503
      %2521 = vmatprep.subr.bf16.mxu0 0
      %2522 = vmatpush1.bf16.msra.mxu0 %v2505
      %2523 = vmatprep.subr.bf16.mxu0 0
      %2524 = vmatpush1.bf16.msra.mxu0 %v2506
      %2525 = vmatprep.subr.bf16.mxu0 0
      %2526 = vmatpush1.bf16.msra.mxu0 %v2507
      %2527 = vmatprep.subr.bf16.mxu0 0
      %2528 = vmatpush1.bf16.msra.mxu0 %v2508
      %2529 = vmatprep.subr.bf16.mxu0 0
      %2530 = vmatpush1.bf16.msra.mxu0 %v2509
      %2531 = vmatprep.subr.bf16.mxu0 0
      %2532 = vmatpush1.bf16.msra.mxu0 %v2510
      %2533 = vmatprep.subr.bf16.mxu0 0
      %2534 = vmatpush1.bf16.msra.mxu0 %v2511
      %2535 = vmatprep.subr.bf16.mxu0 0
      %2536 = vmatpush1.bf16.msra.mxu0 %v2512
      %2537 = vmatprep.subr.bf16.mxu0 0
      %2538 = vmatpush1.bf16.msra.mxu0 0
      %2539 = vmatprep.subr.bf16.mxu0 0
      %2540 = vmatpush1.bf16.msra.mxu0 0
      %2541 = vmatprep.subr.bf16.mxu0 0
      %2542 = vmatpush1.bf16.msra.mxu0 0
      %2543 = vmatprep.subr.bf16.mxu0 0
      %2544 = vmatpush1.bf16.msra.mxu0 0
      %2545 = vmatprep.subr.bf16.mxu0 0
      %2546 = vmatpush1.bf16.msra.mxu0 0
      %2547 = vmatprep.subr.bf16.mxu0 0
      %2548 = vmatpush1.bf16.msra.mxu0 0
      %2549 = vmatprep.subr.bf16.mxu0 0
      %2550 = vmatpush1.bf16.msra.mxu0 0
      %2551 = vmatprep.subr.bf16.mxu0 0
      %2552 = vmatpush1.bf16.msra.mxu0 0
      %2553 = vmatprep.mubr.bf16.mxu0 0
      %2554 = vmatmul.mubr.bf16.gmra.mrb[0].mxu0 %v2440
      %v2555 = vpop.f32.mrb[0].mxu0
      %v2556 = vadd.f32 0.0, %v2555
      %v2557 = vpop.f32.mrb[0].mxu0
      %v2558 = vpop.f32.mrb[0].mxu0
      %v2559 = vadd.f32 0.0, %v2558
      %v2560 = vpop.f32.mrb[0].mxu0
      %2561 = vmatprep.mubr.bf16.mxu0 0
      %2562 = vmatmul.mubr.bf16.gmra.mrb[0].mxu0 %v2441
      %v2563 = vpop.f32.mrb[0].mxu0
      %v2564 = vadd.f32 0.0, %v2563
      %v2565 = vpop.f32.mrb[0].mxu0
      %v2566 = vpop.f32.mrb[0].mxu0
      %v2567 = vadd.f32 0.0, %v2566
      %v2568 = vpop.f32.mrb[0].mxu0
      %2569 = vmatprep.mubr.bf16.mxu0 0
      %2570 = vmatmul.mubr.bf16.gmra.mrb[0].mxu0 %v2442
      %v2571 = vpop.f32.mrb[0].mxu0
      %v2572 = vadd.f32 0.0, %v2571
      %v2573 = vpop.f32.mrb[0].mxu0
      %v2574 = vpop.f32.mrb[0].mxu0
      %v2575 = vadd.f32 0.0, %v2574
      %v2576 = vpop.f32.mrb[0].mxu0
      %2577 = vmatprep.mubr.bf16.mxu0 0
      %2578 = vmatmul.mubr.bf16.gmra.mrb[0].mxu0 %v2443
      %v2579 = vpop.f32.mrb[0].mxu0
      %v2580 = vadd.f32 0.0, %v2579
      %v2581 = vpop.f32.mrb[0].mxu0
      %v2582 = vpop.f32.mrb[0].mxu0
      %v2583 = vadd.f32 0.0, %v2582
      %v2584 = vpop.f32.mrb[0].mxu0
      %2585 = vmatprep.mubr.bf16.mxu0 0
      %2586 = vmatmul.mubr.bf16.gmra.mrb[0].mxu0 %v2444
      %v2587 = vpop.f32.mrb[0].mxu0
      %v2588 = vadd.f32 0.0, %v2587
      %v2589 = vpop.f32.mrb[0].mxu0
      %v2590 = vpop.f32.mrb[0].mxu0
      %v2591 = vadd.f32 0.0, %v2590
      %v2592 = vpop.f32.mrb[0].mxu0
      %2593 = vmatprep.mubr.bf16.mxu0 0
      %2594 = vmatmul.mubr.bf16.gmra.mrb[0].mxu0 %v2445
      %v2595 = vpop.f32.mrb[0].mxu0
      %v2596 = vadd.f32 0.0, %v2595
      %v2597 = vpop.f32.mrb[0].mxu0
      %v2598 = vpop.f32.mrb[0].mxu0
      %v2599 = vadd.f32 0.0, %v2598
      %v2600 = vpop.f32.mrb[0].mxu0
      %2601 = vmatprep.mubr.bf16.mxu0 0
      %2602 = vmatmul.mubr.bf16.gmra.mrb[0].mxu0 %v2446
      %v2603 = vpop.f32.mrb[0].mxu0
      %v2604 = vadd.f32 0.0, %v2603
      %v2605 = vpop.f32.mrb[0].mxu0
      %v2606 = vpop.f32.mrb[0].mxu0
      %v2607 = vadd.f32 0.0, %v2606
      %v2608 = vpop.f32.mrb[0].mxu0
      %2609 = vmatprep.mubr.bf16.mxu0 0
      %2610 = vmatmul.mubr.bf16.gmra.mrb[0].mxu0 %v2447
      %v2611 = vpop.f32.mrb[0].mxu0
      %v2612 = vadd.f32 0.0, %v2611
      %v2613 = vpop.f32.mrb[0].mxu0
      %v2614 = vpop.f32.mrb[0].mxu0
      %v2615 = vadd.f32 0.0, %v2614
      %v2616 = vpop.f32.mrb[0].mxu0
      %2617 = vmatprep.mubr.bf16.mxu0 0
      %2618 = vmatmul.mubr.bf16.gmra.mrb[0].mxu0 %v2448
      %v2619 = vpop.f32.mrb[0].mxu0
      %v2620 = vadd.f32 0.0, %v2619
      %v2621 = vpop.f32.mrb[0].mxu0
      %v2622 = vpop.f32.mrb[0].mxu0
      %v2623 = vadd.f32 0.0, %v2622
      %v2624 = vpop.f32.mrb[0].mxu0
      %2625 = vmatprep.mubr.bf16.mxu0 0
      %2626 = vmatmul.mubr.bf16.gmra.mrb[0].mxu0 %v2449
      %v2627 = vpop.f32.mrb[0].mxu0
      %v2628 = vadd.f32 0.0, %v2627
      %v2629 = vpop.f32.mrb[0].mxu0
      %v2630 = vpop.f32.mrb[0].mxu0
      %v2631 = vadd.f32 0.0, %v2630
      %v2632 = vpop.f32.mrb[0].mxu0
      %2633 = vmatprep.mubr.bf16.mxu0 0
      %2634 = vmatmul.mubr.bf16.gmra.mrb[0].mxu0 %v2450
      %v2635 = vpop.f32.mrb[0].mxu0
      %v2636 = vadd.f32 0.0, %v2635
      %v2637 = vpop.f32.mrb[0].mxu0
      %v2638 = vpop.f32.mrb[0].mxu0
      %v2639 = vadd.f32 0.0, %v2638
      %v2640 = vpop.f32.mrb[0].mxu0
      %2641 = vmatprep.mubr.bf16.mxu0 0
      %2642 = vmatmul.mubr.bf16.gmra.mrb[0].mxu0 %v2451
      %v2643 = vpop.f32.mrb[0].mxu0
      %v2644 = vadd.f32 0.0, %v2643
      %v2645 = vpop.f32.mrb[0].mxu0
      %v2646 = vpop.f32.mrb[0].mxu0
      %v2647 = vadd.f32 0.0, %v2646
      %v2648 = vpop.f32.mrb[0].mxu0
      %2649 = vmatprep.mubr.bf16.mxu0 0
      %2650 = vmatmul.mubr.bf16.gmra.mrb[0].mxu0 %v2452
      %v2651 = vpop.f32.mrb[0].mxu0
      %v2652 = vadd.f32 0.0, %v2651
      %v2653 = vpop.f32.mrb[0].mxu0
      %v2654 = vpop.f32.mrb[0].mxu0
      %v2655 = vadd.f32 0.0, %v2654
      %v2656 = vpop.f32.mrb[0].mxu0
      %2657 = vmatprep.mubr.bf16.mxu0 0
      %2658 = vmatmul.mubr.bf16.gmra.mrb[0].mxu0 %v2453
      %v2659 = vpop.f32.mrb[0].mxu0
      %v2660 = vadd.f32 0.0, %v2659
      %v2661 = vpop.f32.mrb[0].mxu0
      %v2662 = vpop.f32.mrb[0].mxu0
      %v2663 = vadd.f32 0.0, %v2662
      %v2664 = vpop.f32.mrb[0].mxu0
      %2665 = vmatprep.mubr.bf16.mxu0 0
      %2666 = vmatmul.mubr.bf16.gmra.mrb[0].mxu0 %v2454
      %v2667 = vpop.f32.mrb[0].mxu0
      %v2668 = vadd.f32 0.0, %v2667
      %v2669 = vpop.f32.mrb[0].mxu0
      %v2670 = vpop.f32.mrb[0].mxu0
      %v2671 = vadd.f32 0.0, %v2670
      %v2672 = vpop.f32.mrb[0].mxu0
      %2673 = vmatprep.mubr.bf16.mxu0 0
      %2674 = vmatmul.mubr.bf16.gmra.mrb[0].mxu0 %v2455
      %v2675 = vpop.f32.mrb[0].mxu0
      %v2676 = vadd.f32 0.0, %v2675
      %v2677 = vpop.f32.mrb[0].mxu0
      %v2678 = vpop.f32.mrb[0].mxu0
      %v2679 = vadd.f32 0.0, %v2678
      %v2680 = vpop.f32.mrb[0].mxu0
      %2681 = vdwg.mxu0
      %v2682 = vadd.f32 %v2376, %v2556
      %v2683 = vadd.f32 %v2377, %v2559
      %v2684 = vadd.f32 %v2378, %v2564
      %v2685 = vadd.f32 %v2379, %v2567
      %v2686 = vadd.f32 %v2380, %v2572
      %v2687 = vadd.f32 %v2381, %v2575
      %v2688 = vadd.f32 %v2382, %v2580
      %v2689 = vadd.f32 %v2383, %v2583
      %v2690 = vadd.f32 %v2384, %v2588
      %v2691 = vadd.f32 %v2385, %v2591
      %v2692 = vadd.f32 %v2386, %v2596
      %v2693 = vadd.f32 %v2387, %v2599
      %v2694 = vadd.f32 %v2388, %v2604
      %v2695 = vadd.f32 %v2389, %v2607
      %v2696 = vadd.f32 %v2390, %v2612
      %v2697 = vadd.f32 %v2391, %v2615
      %v2698 = vadd.f32 %v2392, %v2620
      %v2699 = vadd.f32 %v2393, %v2623
      %v2700 = vadd.f32 %v2394, %v2628
      %v2701 = vadd.f32 %v2395, %v2631
      %v2702 = vadd.f32 %v2396, %v2636
      %v2703 = vadd.f32 %v2397, %v2639
      %v2704 = vadd.f32 %v2398, %v2644
      %v2705 = vadd.f32 %v2399, %v2647
      %v2706 = vadd.f32 %v2400, %v2652
      %v2707 = vadd.f32 %v2401, %v2655
      %v2708 = vadd.f32 %v2402, %v2660
      %v2709 = vadd.f32 %v2403, %v2663
      %v2710 = vadd.f32 %v2404, %v2668
      %v2711 = vadd.f32 %v2405, %v2671
      %v2712 = vadd.f32 %v2406, %v2676
      %v2713 = vadd.f32 %v2407, %v2679
      %v2714 = vld [vmem:[%s1184 + $0x2] sm:$0xff]
      %v2715 = vld [vmem:[%s1184 + $0xa] sm:$0xff]
      %v2716 = vld [vmem:[%s1184 + $0x1a] sm:$0xff]
      %v2717 = vld [vmem:[%s1184 + $0x22] sm:$0xff]
      %v2718 = vld [vmem:[%s1184 + $0x32] sm:$0xff]
      %v2719 = vld [vmem:[%s1184 + $0x3a] sm:$0xff]
      %v2720 = vld [vmem:[%s1184 + $0x4a] sm:$0xff]
      %v2721 = vld [vmem:[%s1184 + $0x52] sm:$0xff]
      %v2722 = vld [vmem:[%s1184 + $0x62] sm:$0xff]
      %v2723 = vld [vmem:[%s1184 + $0x6a] sm:$0xff]
      %v2724 = vld [vmem:[%s1184 + $0x7a] sm:$0xff]
      %v2725 = vld [vmem:[%s1184 + $0x82] sm:$0xff]
      %v2726 = vld [vmem:[%s1184 + $0x92] sm:$0xff]
      %v2727 = vld [vmem:[%s1184 + $0x9a] sm:$0xff]
      %v2728 = vld [vmem:[%s1184 + $0xaa] sm:$0xff]
      %v2729 = vld [vmem:[%s1184 + $0xb2] sm:$0xff]
      %v2730 = vld [vmem:[%s1184 + $0xc2] sm:$0xff]
      %v2731 = vld [vmem:[%s1184 + $0xca] sm:$0xff]
      %v2732 = vld [vmem:[%s1184 + $0xda] sm:$0xff]
      %v2733 = vld [vmem:[%s1184 + $0xe2] sm:$0xff]
      %v2734 = vld [vmem:[%s1184 + $0xf2] sm:$0xff]
      %v2735 = vld [vmem:[%s1184 + $0xfa] sm:$0xff]
      %v2736 = vld [vmem:[%s1184 + $0x10a] sm:$0xff]
      %v2737 = vld [vmem:[%s1184 + $0x112] sm:$0xff]
      %v2738 = vld [vmem:[%s1184 + $0x122] sm:$0xff]
      %v2739 = vld [vmem:[%s1184 + $0x12a] sm:$0xff]
      %v2740 = vld [vmem:[%s1184 + $0x13a] sm:$0xff]
      %v2741 = vld [vmem:[%s1184 + $0x142] sm:$0xff]
      %v2742 = vld [vmem:[%s1184 + $0x152] sm:$0xff]
      %v2743 = vld [vmem:[%s1184 + $0x15a] sm:$0xff]
      %v2744 = vld [vmem:[%s1184 + $0x16a] sm:$0xff]
      %v2745 = vld [vmem:[%s1184 + $0x172] sm:$0xff]
      %v2746 = vpack.c.bf16 %v2715, %v2714
      %v2747 = vpack.c.bf16 %v2717, %v2716
      %v2748 = vpack.c.bf16 %v2719, %v2718
      %v2749 = vpack.c.bf16 %v2721, %v2720
      %v2750 = vpack.c.bf16 %v2723, %v2722
      %v2751 = vpack.c.bf16 %v2725, %v2724
      %v2752 = vpack.c.bf16 %v2727, %v2726
      %v2753 = vpack.c.bf16 %v2729, %v2728
      %v2754 = vpack.c.bf16 %v2731, %v2730
      %v2755 = vpack.c.bf16 %v2733, %v2732
      %v2756 = vpack.c.bf16 %v2735, %v2734
      %v2757 = vpack.c.bf16 %v2737, %v2736
      %v2758 = vpack.c.bf16 %v2739, %v2738
      %v2759 = vpack.c.bf16 %v2741, %v2740
      %v2760 = vpack.c.bf16 %v2743, %v2742
      %v2761 = vpack.c.bf16 %v2745, %v2744
      %s2762 = scalar_lea.vmem %s7, 320
      %v2763 = vld [vmem:[%s2762] sm:$0xf]
      %v2764 = vld [vmem:[%s2762 + $0x4] sm:$0xf]
      %v2765 = vld [vmem:[%s2762 + $0x8] sm:$0xf]
      %v2766 = vld [vmem:[%s2762 + $0xc] sm:$0xf]
      %v2767 = vld [vmem:[%s2762 + $0x10] sm:$0xf]
      %v2768 = vld [vmem:[%s2762 + $0x14] sm:$0xf]
      %v2769 = vld [vmem:[%s2762 + $0x18] sm:$0xf]
      %v2770 = vld [vmem:[%s2762 + $0x1c] sm:$0xf]
      %v2771 = vld [vmem:[%s2762 + $0x20] sm:$0xf]
      %v2772 = vld [vmem:[%s2762 + $0x24] sm:$0xf]
      %v2773 = vld [vmem:[%s2762 + $0x28] sm:$0xf]
      %v2774 = vld [vmem:[%s2762 + $0x2c] sm:$0xf]
      %v2775 = vld [vmem:[%s2762 + $0x30] sm:$0xf]
      %v2776 = vld [vmem:[%s2762 + $0x34] sm:$0xf]
      %v2777 = vld [vmem:[%s2762 + $0x38] sm:$0xf]
      %v2778 = vld [vmem:[%s2762 + $0x3c] sm:$0xf]
      %v2795 = vunpack.c.l.b16 %v2763
      %v2796 = vunpack.c.l.b16 %v2764
      %v2797 = vunpack.c.l.b16 %v2765
      %v2798 = vunpack.c.l.b16 %v2766
      %v2799 = vunpack.c.l.b16 %v2767
      %v2800 = vunpack.c.l.b16 %v2768
      %v2801 = vunpack.c.l.b16 %v2769
      %v2802 = vunpack.c.l.b16 %v2770
      %v2803 = vunpack.c.l.b16 %v2771
      %v2804 = vunpack.c.l.b16 %v2772
      %v2805 = vunpack.c.l.b16 %v2773
      %v2806 = vunpack.c.l.b16 %v2774
      %v2807 = vunpack.c.l.b16 %v2775
      %v2808 = vunpack.c.l.b16 %v2776
      %v2809 = vunpack.c.l.b16 %v2777
      %v2810 = vunpack.c.l.b16 %v2778
      %v2811 = vpack.c.b16 %v2796, %v2795
      %v2812 = vpack.c.b16 %v2798, %v2797
      %v2813 = vpack.c.b16 %v2800, %v2799
      %v2814 = vpack.c.b16 %v2802, %v2801
      %v2815 = vpack.c.b16 %v2804, %v2803
      %v2816 = vpack.c.b16 %v2806, %v2805
      %v2817 = vpack.c.b16 %v2808, %v2807
      %v2818 = vpack.c.b16 %v2810, %v2809
      %2827 = vmatprep.subr.bf16.mxu0 0
      %2828 = vmatpush1.bf16.msra.mxu0 %v2811
      %2829 = vmatprep.subr.bf16.mxu0 0
      %2830 = vmatpush1.bf16.msra.mxu0 %v2812
      %2831 = vmatprep.subr.bf16.mxu0 0
      %2832 = vmatpush1.bf16.msra.mxu0 %v2813
      %2833 = vmatprep.subr.bf16.mxu0 0
      %2834 = vmatpush1.bf16.msra.mxu0 %v2814
      %2835 = vmatprep.subr.bf16.mxu0 0
      %2836 = vmatpush1.bf16.msra.mxu0 %v2815
      %2837 = vmatprep.subr.bf16.mxu0 0
      %2838 = vmatpush1.bf16.msra.mxu0 %v2816
      %2839 = vmatprep.subr.bf16.mxu0 0
      %2840 = vmatpush1.bf16.msra.mxu0 %v2817
      %2841 = vmatprep.subr.bf16.mxu0 0
      %2842 = vmatpush1.bf16.msra.mxu0 %v2818
      %2843 = vmatprep.subr.bf16.mxu0 0
      %2844 = vmatpush1.bf16.msra.mxu0 0
      %2845 = vmatprep.subr.bf16.mxu0 0
      %2846 = vmatpush1.bf16.msra.mxu0 0
      %2847 = vmatprep.subr.bf16.mxu0 0
      %2848 = vmatpush1.bf16.msra.mxu0 0
      %2849 = vmatprep.subr.bf16.mxu0 0
      %2850 = vmatpush1.bf16.msra.mxu0 0
      %2851 = vmatprep.subr.bf16.mxu0 0
      %2852 = vmatpush1.bf16.msra.mxu0 0
      %2853 = vmatprep.subr.bf16.mxu0 0
      %2854 = vmatpush1.bf16.msra.mxu0 0
      %2855 = vmatprep.subr.bf16.mxu0 0
      %2856 = vmatpush1.bf16.msra.mxu0 0
      %2857 = vmatprep.subr.bf16.mxu0 0
      %2858 = vmatpush1.bf16.msra.mxu0 0
      %2859 = vmatprep.mubr.bf16.mxu0 0
      %2860 = vmatmul.mubr.bf16.gmra.mrb[0].mxu0 %v2746
      %v2861 = vpop.f32.mrb[0].mxu0
      %v2862 = vadd.f32 0.0, %v2861
      %v2863 = vpop.f32.mrb[0].mxu0
      %v2864 = vpop.f32.mrb[0].mxu0
      %v2865 = vadd.f32 0.0, %v2864
      %v2866 = vpop.f32.mrb[0].mxu0
      %2867 = vmatprep.mubr.bf16.mxu0 0
      %2868 = vmatmul.mubr.bf16.gmra.mrb[0].mxu0 %v2747
      %v2869 = vpop.f32.mrb[0].mxu0
      %v2870 = vadd.f32 0.0, %v2869
      %v2871 = vpop.f32.mrb[0].mxu0
      %v2872 = vpop.f32.mrb[0].mxu0
      %v2873 = vadd.f32 0.0, %v2872
      %v2874 = vpop.f32.mrb[0].mxu0
      %2875 = vmatprep.mubr.bf16.mxu0 0
      %2876 = vmatmul.mubr.bf16.gmra.mrb[0].mxu0 %v2748
      %v2877 = vpop.f32.mrb[0].mxu0
      %v2878 = vadd.f32 0.0, %v2877
      %v2879 = vpop.f32.mrb[0].mxu0
      %v2880 = vpop.f32.mrb[0].mxu0
      %v2881 = vadd.f32 0.0, %v2880
      %v2882 = vpop.f32.mrb[0].mxu0
      %2883 = vmatprep.mubr.bf16.mxu0 0
      %2884 = vmatmul.mubr.bf16.gmra.mrb[0].mxu0 %v2749
      %v2885 = vpop.f32.mrb[0].mxu0
      %v2886 = vadd.f32 0.0, %v2885
      %v2887 = vpop.f32.mrb[0].mxu0
      %v2888 = vpop.f32.mrb[0].mxu0
      %v2889 = vadd.f32 0.0, %v2888
      %v2890 = vpop.f32.mrb[0].mxu0
      %2891 = vmatprep.mubr.bf16.mxu0 0
      %2892 = vmatmul.mubr.bf16.gmra.mrb[0].mxu0 %v2750
      %v2893 = vpop.f32.mrb[0].mxu0
      %v2894 = vadd.f32 0.0, %v2893
      %v2895 = vpop.f32.mrb[0].mxu0
      %v2896 = vpop.f32.mrb[0].mxu0
      %v2897 = vadd.f32 0.0, %v2896
      %v2898 = vpop.f32.mrb[0].mxu0
      %2899 = vmatprep.mubr.bf16.mxu0 0
      %2900 = vmatmul.mubr.bf16.gmra.mrb[0].mxu0 %v2751
      %v2901 = vpop.f32.mrb[0].mxu0
      %v2902 = vadd.f32 0.0, %v2901
      %v2903 = vpop.f32.mrb[0].mxu0
      %v2904 = vpop.f32.mrb[0].mxu0
      %v2905 = vadd.f32 0.0, %v2904
      %v2906 = vpop.f32.mrb[0].mxu0
      %2907 = vmatprep.mubr.bf16.mxu0 0
      %2908 = vmatmul.mubr.bf16.gmra.mrb[0].mxu0 %v2752
      %v2909 = vpop.f32.mrb[0].mxu0
      %v2910 = vadd.f32 0.0, %v2909
      %v2911 = vpop.f32.mrb[0].mxu0
      %v2912 = vpop.f32.mrb[0].mxu0
      %v2913 = vadd.f32 0.0, %v2912
      %v2914 = vpop.f32.mrb[0].mxu0
      %2915 = vmatprep.mubr.bf16.mxu0 0
      %2916 = vmatmul.mubr.bf16.gmra.mrb[0].mxu0 %v2753
      %v2917 = vpop.f32.mrb[0].mxu0
      %v2918 = vadd.f32 0.0, %v2917
      %v2919 = vpop.f32.mrb[0].mxu0
      %v2920 = vpop.f32.mrb[0].mxu0
      %v2921 = vadd.f32 0.0, %v2920
      %v2922 = vpop.f32.mrb[0].mxu0
      %2923 = vmatprep.mubr.bf16.mxu0 0
      %2924 = vmatmul.mubr.bf16.gmra.mrb[0].mxu0 %v2754
      %v2925 = vpop.f32.mrb[0].mxu0
      %v2926 = vadd.f32 0.0, %v2925
      %v2927 = vpop.f32.mrb[0].mxu0
      %v2928 = vpop.f32.mrb[0].mxu0
      %v2929 = vadd.f32 0.0, %v2928
      %v2930 = vpop.f32.mrb[0].mxu0
      %2931 = vmatprep.mubr.bf16.mxu0 0
      %2932 = vmatmul.mubr.bf16.gmra.mrb[0].mxu0 %v2755
      %v2933 = vpop.f32.mrb[0].mxu0
      %v2934 = vadd.f32 0.0, %v2933
      %v2935 = vpop.f32.mrb[0].mxu0
      %v2936 = vpop.f32.mrb[0].mxu0
      %v2937 = vadd.f32 0.0, %v2936
      %v2938 = vpop.f32.mrb[0].mxu0
      %2939 = vmatprep.mubr.bf16.mxu0 0
      %2940 = vmatmul.mubr.bf16.gmra.mrb[0].mxu0 %v2756
      %v2941 = vpop.f32.mrb[0].mxu0
      %v2942 = vadd.f32 0.0, %v2941
      %v2943 = vpop.f32.mrb[0].mxu0
      %v2944 = vpop.f32.mrb[0].mxu0
      %v2945 = vadd.f32 0.0, %v2944
      %v2946 = vpop.f32.mrb[0].mxu0
      %2947 = vmatprep.mubr.bf16.mxu0 0
      %2948 = vmatmul.mubr.bf16.gmra.mrb[0].mxu0 %v2757
      %v2949 = vpop.f32.mrb[0].mxu0
      %v2950 = vadd.f32 0.0, %v2949
      %v2951 = vpop.f32.mrb[0].mxu0
      %v2952 = vpop.f32.mrb[0].mxu0
      %v2953 = vadd.f32 0.0, %v2952
      %v2954 = vpop.f32.mrb[0].mxu0
      %2955 = vmatprep.mubr.bf16.mxu0 0
      %2956 = vmatmul.mubr.bf16.gmra.mrb[0].mxu0 %v2758
      %v2957 = vpop.f32.mrb[0].mxu0
      %v2958 = vadd.f32 0.0, %v2957
      %v2959 = vpop.f32.mrb[0].mxu0
      %v2960 = vpop.f32.mrb[0].mxu0
      %v2961 = vadd.f32 0.0, %v2960
      %v2962 = vpop.f32.mrb[0].mxu0
      %2963 = vmatprep.mubr.bf16.mxu0 0
      %2964 = vmatmul.mubr.bf16.gmra.mrb[0].mxu0 %v2759
      %v2965 = vpop.f32.mrb[0].mxu0
      %v2966 = vadd.f32 0.0, %v2965
      %v2967 = vpop.f32.mrb[0].mxu0
      %v2968 = vpop.f32.mrb[0].mxu0
      %v2969 = vadd.f32 0.0, %v2968
      %v2970 = vpop.f32.mrb[0].mxu0
      %2971 = vmatprep.mubr.bf16.mxu0 0
      %2972 = vmatmul.mubr.bf16.gmra.mrb[0].mxu0 %v2760
      %v2973 = vpop.f32.mrb[0].mxu0
      %v2974 = vadd.f32 0.0, %v2973
      %v2975 = vpop.f32.mrb[0].mxu0
      %v2976 = vpop.f32.mrb[0].mxu0
      %v2977 = vadd.f32 0.0, %v2976
      %v2978 = vpop.f32.mrb[0].mxu0
      %2979 = vmatprep.mubr.bf16.mxu0 0
      %2980 = vmatmul.mubr.bf16.gmra.mrb[0].mxu0 %v2761
      %v2981 = vpop.f32.mrb[0].mxu0
      %v2982 = vadd.f32 0.0, %v2981
      %v2983 = vpop.f32.mrb[0].mxu0
      %v2984 = vpop.f32.mrb[0].mxu0
      %v2985 = vadd.f32 0.0, %v2984
      %v2986 = vpop.f32.mrb[0].mxu0
      %2987 = vdwg.mxu0
      %v2988 = vadd.f32 %v2682, %v2862
      %v2989 = vadd.f32 %v2683, %v2865
      %v2990 = vadd.f32 %v2684, %v2870
      %v2991 = vadd.f32 %v2685, %v2873
      %v2992 = vadd.f32 %v2686, %v2878
      %v2993 = vadd.f32 %v2687, %v2881
      %v2994 = vadd.f32 %v2688, %v2886
      %v2995 = vadd.f32 %v2689, %v2889
      %v2996 = vadd.f32 %v2690, %v2894
      %v2997 = vadd.f32 %v2691, %v2897
      %v2998 = vadd.f32 %v2692, %v2902
      %v2999 = vadd.f32 %v2693, %v2905
      %v3000 = vadd.f32 %v2694, %v2910
      %v3001 = vadd.f32 %v2695, %v2913
      %v3002 = vadd.f32 %v2696, %v2918
      %v3003 = vadd.f32 %v2697, %v2921
      %v3004 = vadd.f32 %v2698, %v2926
      %v3005 = vadd.f32 %v2699, %v2929
      %v3006 = vadd.f32 %v2700, %v2934
      %v3007 = vadd.f32 %v2701, %v2937
      %v3008 = vadd.f32 %v2702, %v2942
      %v3009 = vadd.f32 %v2703, %v2945
      %v3010 = vadd.f32 %v2704, %v2950
      %v3011 = vadd.f32 %v2705, %v2953
      %v3012 = vadd.f32 %v2706, %v2958
      %v3013 = vadd.f32 %v2707, %v2961
      %v3014 = vadd.f32 %v2708, %v2966
      %v3015 = vadd.f32 %v2709, %v2969
      %v3016 = vadd.f32 %v2710, %v2974
      %v3017 = vadd.f32 %v2711, %v2977
      %v3018 = vadd.f32 %v2712, %v2982
      %v3019 = vadd.f32 %v2713, %v2985
      %s3020 = scalar_lea.vmem [#allocation2], 48
      %v3021 = vld [vmem:[%s3020] sm:$0xff]
      %v3022 = vld [vmem:[%s3020 + $0x8] sm:$0xff]
      %v3023 = vld [vmem:[%s3020 + $0x18] sm:$0xff]
      %v3024 = vld [vmem:[%s3020 + $0x20] sm:$0xff]
      %v3025 = vld [vmem:[%s3020 + $0x30] sm:$0xff]
      %v3026 = vld [vmem:[%s3020 + $0x38] sm:$0xff]
      %v3027 = vld [vmem:[%s3020 + $0x48] sm:$0xff]
      %v3028 = vld [vmem:[%s3020 + $0x50] sm:$0xff]
      %v3029 = vld [vmem:[%s3020 + $0x60] sm:$0xff]
      %v3030 = vld [vmem:[%s3020 + $0x68] sm:$0xff]
      %v3031 = vld [vmem:[%s3020 + $0x78] sm:$0xff]
      %v3032 = vld [vmem:[%s3020 + $0x80] sm:$0xff]
      %v3033 = vld [vmem:[%s3020 + $0x90] sm:$0xff]
      %v3034 = vld [vmem:[%s3020 + $0x98] sm:$0xff]
      %v3035 = vld [vmem:[%s3020 + $0xa8] sm:$0xff]
      %v3036 = vld [vmem:[%s3020 + $0xb0] sm:$0xff]
      %v3037 = vld [vmem:[%s3020 + $0xc0] sm:$0xff]
      %v3038 = vld [vmem:[%s3020 + $0xc8] sm:$0xff]
      %v3039 = vld [vmem:[%s3020 + $0xd8] sm:$0xff]
      %v3040 = vld [vmem:[%s3020 + $0xe0] sm:$0xff]
      %v3041 = vld [vmem:[%s3020 + $0xf0] sm:$0xff]
      %v3042 = vld [vmem:[%s3020 + $0xf8] sm:$0xff]
      %v3043 = vld [vmem:[%s3020 + $0x108] sm:$0xff]
      %v3044 = vld [vmem:[%s3020 + $0x110] sm:$0xff]
      %v3045 = vld [vmem:[%s3020 + $0x120] sm:$0xff]
      %v3046 = vld [vmem:[%s3020 + $0x128] sm:$0xff]
      %v3047 = vld [vmem:[%s3020 + $0x138] sm:$0xff]
      %v3048 = vld [vmem:[%s3020 + $0x140] sm:$0xff]
      %v3049 = vld [vmem:[%s3020 + $0x150] sm:$0xff]
      %v3050 = vld [vmem:[%s3020 + $0x158] sm:$0xff]
      %v3051 = vld [vmem:[%s3020 + $0x168] sm:$0xff]
      %v3052 = vld [vmem:[%s3020 + $0x170] sm:$0xff]
      %v3053 = vpack.c.bf16 %v3022, %v3021
      %v3054 = vpack.c.bf16 %v3024, %v3023
      %v3055 = vpack.c.bf16 %v3026, %v3025
      %v3056 = vpack.c.bf16 %v3028, %v3027
      %v3057 = vpack.c.bf16 %v3030, %v3029
      %v3058 = vpack.c.bf16 %v3032, %v3031
      %v3059 = vpack.c.bf16 %v3034, %v3033
      %v3060 = vpack.c.bf16 %v3036, %v3035
      %v3061 = vpack.c.bf16 %v3038, %v3037
      %v3062 = vpack.c.bf16 %v3040, %v3039
      %v3063 = vpack.c.bf16 %v3042, %v3041
      %v3064 = vpack.c.bf16 %v3044, %v3043
      %v3065 = vpack.c.bf16 %v3046, %v3045
      %v3066 = vpack.c.bf16 %v3048, %v3047
      %v3067 = vpack.c.bf16 %v3050, %v3049
      %v3068 = vpack.c.bf16 %v3052, %v3051
      %s3069 = scalar_lea.vmem %s7, 384
      %v3070 = vld [vmem:[%s3069] sm:$0xf]
      %v3071 = vld [vmem:[%s3069 + $0x4] sm:$0xf]
      %v3072 = vld [vmem:[%s3069 + $0x8] sm:$0xf]
      %v3073 = vld [vmem:[%s3069 + $0xc] sm:$0xf]
      %v3074 = vld [vmem:[%s3069 + $0x10] sm:$0xf]
      %v3075 = vld [vmem:[%s3069 + $0x14] sm:$0xf]
      %v3076 = vld [vmem:[%s3069 + $0x18] sm:$0xf]
      %v3077 = vld [vmem:[%s3069 + $0x1c] sm:$0xf]
      %v3078 = vld [vmem:[%s3069 + $0x20] sm:$0xf]
      %v3079 = vld [vmem:[%s3069 + $0x24] sm:$0xf]
      %v3080 = vld [vmem:[%s3069 + $0x28] sm:$0xf]
      %v3081 = vld [vmem:[%s3069 + $0x2c] sm:$0xf]
      %v3082 = vld [vmem:[%s3069 + $0x30] sm:$0xf]
      %v3083 = vld [vmem:[%s3069 + $0x34] sm:$0xf]
      %v3084 = vld [vmem:[%s3069 + $0x38] sm:$0xf]
      %v3085 = vld [vmem:[%s3069 + $0x3c] sm:$0xf]
      %v3102 = vunpack.c.l.b16 %v3070
      %v3103 = vunpack.c.l.b16 %v3071
      %v3104 = vunpack.c.l.b16 %v3072
      %v3105 = vunpack.c.l.b16 %v3073
      %v3106 = vunpack.c.l.b16 %v3074
      %v3107 = vunpack.c.l.b16 %v3075
      %v3108 = vunpack.c.l.b16 %v3076
      %v3109 = vunpack.c.l.b16 %v3077
      %v3110 = vunpack.c.l.b16 %v3078
      %v3111 = vunpack.c.l.b16 %v3079
      %v3112 = vunpack.c.l.b16 %v3080
      %v3113 = vunpack.c.l.b16 %v3081
      %v3114 = vunpack.c.l.b16 %v3082
      %v3115 = vunpack.c.l.b16 %v3083
      %v3116 = vunpack.c.l.b16 %v3084
      %v3117 = vunpack.c.l.b16 %v3085
      %v3118 = vpack.c.b16 %v3103, %v3102
      %v3119 = vpack.c.b16 %v3105, %v3104
      %v3120 = vpack.c.b16 %v3107, %v3106
      %v3121 = vpack.c.b16 %v3109, %v3108
      %v3122 = vpack.c.b16 %v3111, %v3110
      %v3123 = vpack.c.b16 %v3113, %v3112
      %v3124 = vpack.c.b16 %v3115, %v3114
      %v3125 = vpack.c.b16 %v3117, %v3116
      %3134 = vmatprep.subr.bf16.mxu0 0
      %3135 = vmatpush1.bf16.msra.mxu0 %v3118
      %3136 = vmatprep.subr.bf16.mxu0 0
      %3137 = vmatpush1.bf16.msra.mxu0 %v3119
      %3138 = vmatprep.subr.bf16.mxu0 0
      %3139 = vmatpush1.bf16.msra.mxu0 %v3120
      %3140 = vmatprep.subr.bf16.mxu0 0
      %3141 = vmatpush1.bf16.msra.mxu0 %v3121
      %3142 = vmatprep.subr.bf16.mxu0 0
      %3143 = vmatpush1.bf16.msra.mxu0 %v3122
      %3144 = vmatprep.subr.bf16.mxu0 0
      %3145 = vmatpush1.bf16.msra.mxu0 %v3123
      %3146 = vmatprep.subr.bf16.mxu0 0
      %3147 = vmatpush1.bf16.msra.mxu0 %v3124
      %3148 = vmatprep.subr.bf16.mxu0 0
      %3149 = vmatpush1.bf16.msra.mxu0 %v3125
      %3150 = vmatprep.subr.bf16.mxu0 0
      %3151 = vmatpush1.bf16.msra.mxu0 0
      %3152 = vmatprep.subr.bf16.mxu0 0
      %3153 = vmatpush1.bf16.msra.mxu0 0
      %3154 = vmatprep.subr.bf16.mxu0 0
      %3155 = vmatpush1.bf16.msra.mxu0 0
      %3156 = vmatprep.subr.bf16.mxu0 0
      %3157 = vmatpush1.bf16.msra.mxu0 0
      %3158 = vmatprep.subr.bf16.mxu0 0
      %3159 = vmatpush1.bf16.msra.mxu0 0
      %3160 = vmatprep.subr.bf16.mxu0 0
      %3161 = vmatpush1.bf16.msra.mxu0 0
      %3162 = vmatprep.subr.bf16.mxu0 0
      %3163 = vmatpush1.bf16.msra.mxu0 0
      %3164 = vmatprep.subr.bf16.mxu0 0
      %3165 = vmatpush1.bf16.msra.mxu0 0
      %3166 = vmatprep.mubr.bf16.mxu0 0
      %3167 = vmatmul.mubr.bf16.gmra.mrb[0].mxu0 %v3053
      %v3168 = vpop.f32.mrb[0].mxu0
      %v3169 = vadd.f32 0.0, %v3168
      %v3170 = vpop.f32.mrb[0].mxu0
      %v3171 = vpop.f32.mrb[0].mxu0
      %v3172 = vadd.f32 0.0, %v3171
      %v3173 = vpop.f32.mrb[0].mxu0
      %3174 = vmatprep.mubr.bf16.mxu0 0
      %3175 = vmatmul.mubr.bf16.gmra.mrb[0].mxu0 %v3054
      %v3176 = vpop.f32.mrb[0].mxu0
      %v3177 = vadd.f32 0.0, %v3176
      %v3178 = vpop.f32.mrb[0].mxu0
      %v3179 = vpop.f32.mrb[0].mxu0
      %v3180 = vadd.f32 0.0, %v3179
      %v3181 = vpop.f32.mrb[0].mxu0
      %3182 = vmatprep.mubr.bf16.mxu0 0
      %3183 = vmatmul.mubr.bf16.gmra.mrb[0].mxu0 %v3055
      %v3184 = vpop.f32.mrb[0].mxu0
      %v3185 = vadd.f32 0.0, %v3184
      %v3186 = vpop.f32.mrb[0].mxu0
      %v3187 = vpop.f32.mrb[0].mxu0
      %v3188 = vadd.f32 0.0, %v3187
      %v3189 = vpop.f32.mrb[0].mxu0
      %3190 = vmatprep.mubr.bf16.mxu0 0
      %3191 = vmatmul.mubr.bf16.gmra.mrb[0].mxu0 %v3056
      %v3192 = vpop.f32.mrb[0].mxu0
      %v3193 = vadd.f32 0.0, %v3192
      %v3194 = vpop.f32.mrb[0].mxu0
      %v3195 = vpop.f32.mrb[0].mxu0
      %v3196 = vadd.f32 0.0, %v3195
      %v3197 = vpop.f32.mrb[0].mxu0
      %3198 = vmatprep.mubr.bf16.mxu0 0
      %3199 = vmatmul.mubr.bf16.gmra.mrb[0].mxu0 %v3057
      %v3200 = vpop.f32.mrb[0].mxu0
      %v3201 = vadd.f32 0.0, %v3200
      %v3202 = vpop.f32.mrb[0].mxu0
      %v3203 = vpop.f32.mrb[0].mxu0
      %v3204 = vadd.f32 0.0, %v3203
      %v3205 = vpop.f32.mrb[0].mxu0
      %3206 = vmatprep.mubr.bf16.mxu0 0
      %3207 = vmatmul.mubr.bf16.gmra.mrb[0].mxu0 %v3058
      %v3208 = vpop.f32.mrb[0].mxu0
      %v3209 = vadd.f32 0.0, %v3208
      %v3210 = vpop.f32.mrb[0].mxu0
      %v3211 = vpop.f32.mrb[0].mxu0
      %v3212 = vadd.f32 0.0, %v3211
      %v3213 = vpop.f32.mrb[0].mxu0
      %3214 = vmatprep.mubr.bf16.mxu0 0
      %3215 = vmatmul.mubr.bf16.gmra.mrb[0].mxu0 %v3059
      %v3216 = vpop.f32.mrb[0].mxu0
      %v3217 = vadd.f32 0.0, %v3216
      %v3218 = vpop.f32.mrb[0].mxu0
      %v3219 = vpop.f32.mrb[0].mxu0
      %v3220 = vadd.f32 0.0, %v3219
      %v3221 = vpop.f32.mrb[0].mxu0
      %3222 = vmatprep.mubr.bf16.mxu0 0
      %3223 = vmatmul.mubr.bf16.gmra.mrb[0].mxu0 %v3060
      %v3224 = vpop.f32.mrb[0].mxu0
      %v3225 = vadd.f32 0.0, %v3224
      %v3226 = vpop.f32.mrb[0].mxu0
      %v3227 = vpop.f32.mrb[0].mxu0
      %v3228 = vadd.f32 0.0, %v3227
      %v3229 = vpop.f32.mrb[0].mxu0
      %3230 = vmatprep.mubr.bf16.mxu0 0
      %3231 = vmatmul.mubr.bf16.gmra.mrb[0].mxu0 %v3061
      %v3232 = vpop.f32.mrb[0].mxu0
      %v3233 = vadd.f32 0.0, %v3232
      %v3234 = vpop.f32.mrb[0].mxu0
      %v3235 = vpop.f32.mrb[0].mxu0
      %v3236 = vadd.f32 0.0, %v3235
      %v3237 = vpop.f32.mrb[0].mxu0
      %3238 = vmatprep.mubr.bf16.mxu0 0
      %3239 = vmatmul.mubr.bf16.gmra.mrb[0].mxu0 %v3062
      %v3240 = vpop.f32.mrb[0].mxu0
      %v3241 = vadd.f32 0.0, %v3240
      %v3242 = vpop.f32.mrb[0].mxu0
      %v3243 = vpop.f32.mrb[0].mxu0
      %v3244 = vadd.f32 0.0, %v3243
      %v3245 = vpop.f32.mrb[0].mxu0
      %3246 = vmatprep.mubr.bf16.mxu0 0
      %3247 = vmatmul.mubr.bf16.gmra.mrb[0].mxu0 %v3063
      %v3248 = vpop.f32.mrb[0].mxu0
      %v3249 = vadd.f32 0.0, %v3248
      %v3250 = vpop.f32.mrb[0].mxu0
      %v3251 = vpop.f32.mrb[0].mxu0
      %v3252 = vadd.f32 0.0, %v3251
      %v3253 = vpop.f32.mrb[0].mxu0
      %3254 = vmatprep.mubr.bf16.mxu0 0
      %3255 = vmatmul.mubr.bf16.gmra.mrb[0].mxu0 %v3064
      %v3256 = vpop.f32.mrb[0].mxu0
      %v3257 = vadd.f32 0.0, %v3256
      %v3258 = vpop.f32.mrb[0].mxu0
      %v3259 = vpop.f32.mrb[0].mxu0
      %v3260 = vadd.f32 0.0, %v3259
      %v3261 = vpop.f32.mrb[0].mxu0
      %3262 = vmatprep.mubr.bf16.mxu0 0
      %3263 = vmatmul.mubr.bf16.gmra.mrb[0].mxu0 %v3065
      %v3264 = vpop.f32.mrb[0].mxu0
      %v3265 = vadd.f32 0.0, %v3264
      %v3266 = vpop.f32.mrb[0].mxu0
      %v3267 = vpop.f32.mrb[0].mxu0
      %v3268 = vadd.f32 0.0, %v3267
      %v3269 = vpop.f32.mrb[0].mxu0
      %3270 = vmatprep.mubr.bf16.mxu0 0
      %3271 = vmatmul.mubr.bf16.gmra.mrb[0].mxu0 %v3066
      %v3272 = vpop.f32.mrb[0].mxu0
      %v3273 = vadd.f32 0.0, %v3272
      %v3274 = vpop.f32.mrb[0].mxu0
      %v3275 = vpop.f32.mrb[0].mxu0
      %v3276 = vadd.f32 0.0, %v3275
      %v3277 = vpop.f32.mrb[0].mxu0
      %3278 = vmatprep.mubr.bf16.mxu0 0
      %3279 = vmatmul.mubr.bf16.gmra.mrb[0].mxu0 %v3067
      %v3280 = vpop.f32.mrb[0].mxu0
      %v3281 = vadd.f32 0.0, %v3280
      %v3282 = vpop.f32.mrb[0].mxu0
      %v3283 = vpop.f32.mrb[0].mxu0
      %v3284 = vadd.f32 0.0, %v3283
      %v3285 = vpop.f32.mrb[0].mxu0
      %3286 = vmatprep.mubr.bf16.mxu0 0
      %3287 = vmatmul.mubr.bf16.gmra.mrb[0].mxu0 %v3068
      %v3288 = vpop.f32.mrb[0].mxu0
      %v3289 = vadd.f32 0.0, %v3288
      %v3290 = vpop.f32.mrb[0].mxu0
      %v3291 = vpop.f32.mrb[0].mxu0
      %v3292 = vadd.f32 0.0, %v3291
      %v3293 = vpop.f32.mrb[0].mxu0
      %3294 = vdwg.mxu0
      %v3295 = vadd.f32 %v2988, %v3169
      %v3296 = vadd.f32 %v2989, %v3172
      %v3297 = vadd.f32 %v2990, %v3177
      %v3298 = vadd.f32 %v2991, %v3180
      %v3299 = vadd.f32 %v2992, %v3185
      %v3300 = vadd.f32 %v2993, %v3188
      %v3301 = vadd.f32 %v2994, %v3193
      %v3302 = vadd.f32 %v2995, %v3196
      %v3303 = vadd.f32 %v2996, %v3201
      %v3304 = vadd.f32 %v2997, %v3204
      %v3305 = vadd.f32 %v2998, %v3209
      %v3306 = vadd.f32 %v2999, %v3212
      %v3307 = vadd.f32 %v3000, %v3217
      %v3308 = vadd.f32 %v3001, %v3220
      %v3309 = vadd.f32 %v3002, %v3225
      %v3310 = vadd.f32 %v3003, %v3228
      %v3311 = vadd.f32 %v3004, %v3233
      %v3312 = vadd.f32 %v3005, %v3236
      %v3313 = vadd.f32 %v3006, %v3241
      %v3314 = vadd.f32 %v3007, %v3244
      %v3315 = vadd.f32 %v3008, %v3249
      %v3316 = vadd.f32 %v3009, %v3252
      %v3317 = vadd.f32 %v3010, %v3257
      %v3318 = vadd.f32 %v3011, %v3260
      %v3319 = vadd.f32 %v3012, %v3265
      %v3320 = vadd.f32 %v3013, %v3268
      %v3321 = vadd.f32 %v3014, %v3273
      %v3322 = vadd.f32 %v3015, %v3276
      %v3323 = vadd.f32 %v3016, %v3281
      %v3324 = vadd.f32 %v3017, %v3284
      %v3325 = vadd.f32 %v3018, %v3289
      %v3326 = vadd.f32 %v3019, %v3292
      %v3327 = vld [vmem:[%s3020 + $0x1] sm:$0xff]
      %v3328 = vld [vmem:[%s3020 + $0x9] sm:$0xff]
      %v3329 = vld [vmem:[%s3020 + $0x19] sm:$0xff]
      %v3330 = vld [vmem:[%s3020 + $0x21] sm:$0xff]
      %v3331 = vld [vmem:[%s3020 + $0x31] sm:$0xff]
      %v3332 = vld [vmem:[%s3020 + $0x39] sm:$0xff]
      %v3333 = vld [vmem:[%s3020 + $0x49] sm:$0xff]
      %v3334 = vld [vmem:[%s3020 + $0x51] sm:$0xff]
      %v3335 = vld [vmem:[%s3020 + $0x61] sm:$0xff]
      %v3336 = vld [vmem:[%s3020 + $0x69] sm:$0xff]
      %v3337 = vld [vmem:[%s3020 + $0x79] sm:$0xff]
      %v3338 = vld [vmem:[%s3020 + $0x81] sm:$0xff]
      %v3339 = vld [vmem:[%s3020 + $0x91] sm:$0xff]
      %v3340 = vld [vmem:[%s3020 + $0x99] sm:$0xff]
      %v3341 = vld [vmem:[%s3020 + $0xa9] sm:$0xff]
      %v3342 = vld [vmem:[%s3020 + $0xb1] sm:$0xff]
      %v3343 = vld [vmem:[%s3020 + $0xc1] sm:$0xff]
      %v3344 = vld [vmem:[%s3020 + $0xc9] sm:$0xff]
      %v3345 = vld [vmem:[%s3020 + $0xd9] sm:$0xff]
      %v3346 = vld [vmem:[%s3020 + $0xe1] sm:$0xff]
      %v3347 = vld [vmem:[%s3020 + $0xf1] sm:$0xff]
      %v3348 = vld [vmem:[%s3020 + $0xf9] sm:$0xff]
      %v3349 = vld [vmem:[%s3020 + $0x109] sm:$0xff]
      %v3350 = vld [vmem:[%s3020 + $0x111] sm:$0xff]
      %v3351 = vld [vmem:[%s3020 + $0x121] sm:$0xff]
      %v3352 = vld [vmem:[%s3020 + $0x129] sm:$0xff]
      %v3353 = vld [vmem:[%s3020 + $0x139] sm:$0xff]
      %v3354 = vld [vmem:[%s3020 + $0x141] sm:$0xff]
      %v3355 = vld [vmem:[%s3020 + $0x151] sm:$0xff]
      %v3356 = vld [vmem:[%s3020 + $0x159] sm:$0xff]
      %v3357 = vld [vmem:[%s3020 + $0x169] sm:$0xff]
      %v3358 = vld [vmem:[%s3020 + $0x171] sm:$0xff]
      %v3359 = vpack.c.bf16 %v3328, %v3327
      %v3360 = vpack.c.bf16 %v3330, %v3329
      %v3361 = vpack.c.bf16 %v3332, %v3331
      %v3362 = vpack.c.bf16 %v3334, %v3333
      %v3363 = vpack.c.bf16 %v3336, %v3335
      %v3364 = vpack.c.bf16 %v3338, %v3337
      %v3365 = vpack.c.bf16 %v3340, %v3339
      %v3366 = vpack.c.bf16 %v3342, %v3341
      %v3367 = vpack.c.bf16 %v3344, %v3343
      %v3368 = vpack.c.bf16 %v3346, %v3345
      %v3369 = vpack.c.bf16 %v3348, %v3347
      %v3370 = vpack.c.bf16 %v3350, %v3349
      %v3371 = vpack.c.bf16 %v3352, %v3351
      %v3372 = vpack.c.bf16 %v3354, %v3353
      %v3373 = vpack.c.bf16 %v3356, %v3355
      %v3374 = vpack.c.bf16 %v3358, %v3357
      %s3375 = scalar_lea.vmem %s7, 448
      %v3376 = vld [vmem:[%s3375] sm:$0xf]
      %v3377 = vld [vmem:[%s3375 + $0x4] sm:$0xf]
      %v3378 = vld [vmem:[%s3375 + $0x8] sm:$0xf]
      %v3379 = vld [vmem:[%s3375 + $0xc] sm:$0xf]
      %v3380 = vld [vmem:[%s3375 + $0x10] sm:$0xf]
      %v3381 = vld [vmem:[%s3375 + $0x14] sm:$0xf]
      %v3382 = vld [vmem:[%s3375 + $0x18] sm:$0xf]
      %v3383 = vld [vmem:[%s3375 + $0x1c] sm:$0xf]
      %v3384 = vld [vmem:[%s3375 + $0x20] sm:$0xf]
      %v3385 = vld [vmem:[%s3375 + $0x24] sm:$0xf]
      %v3386 = vld [vmem:[%s3375 + $0x28] sm:$0xf]
      %v3387 = vld [vmem:[%s3375 + $0x2c] sm:$0xf]
      %v3388 = vld [vmem:[%s3375 + $0x30] sm:$0xf]
      %v3389 = vld [vmem:[%s3375 + $0x34] sm:$0xf]
      %v3390 = vld [vmem:[%s3375 + $0x38] sm:$0xf]
      %v3391 = vld [vmem:[%s3375 + $0x3c] sm:$0xf]
      %v3408 = vunpack.c.l.b16 %v3376
      %v3409 = vunpack.c.l.b16 %v3377
      %v3410 = vunpack.c.l.b16 %v3378
      %v3411 = vunpack.c.l.b16 %v3379
      %v3412 = vunpack.c.l.b16 %v3380
      %v3413 = vunpack.c.l.b16 %v3381
      %v3414 = vunpack.c.l.b16 %v3382
      %v3415 = vunpack.c.l.b16 %v3383
      %v3416 = vunpack.c.l.b16 %v3384
      %v3417 = vunpack.c.l.b16 %v3385
      %v3418 = vunpack.c.l.b16 %v3386
      %v3419 = vunpack.c.l.b16 %v3387
      %v3420 = vunpack.c.l.b16 %v3388
      %v3421 = vunpack.c.l.b16 %v3389
      %v3422 = vunpack.c.l.b16 %v3390
      %v3423 = vunpack.c.l.b16 %v3391
      %v3424 = vpack.c.b16 %v3409, %v3408
      %v3425 = vpack.c.b16 %v3411, %v3410
      %v3426 = vpack.c.b16 %v3413, %v3412
      %v3427 = vpack.c.b16 %v3415, %v3414
      %v3428 = vpack.c.b16 %v3417, %v3416
      %v3429 = vpack.c.b16 %v3419, %v3418
      %v3430 = vpack.c.b16 %v3421, %v3420
      %v3431 = vpack.c.b16 %v3423, %v3422
      %3440 = vmatprep.subr.bf16.mxu0 0
      %3441 = vmatpush1.bf16.msra.mxu0 %v3424
      %3442 = vmatprep.subr.bf16.mxu0 0
      %3443 = vmatpush1.bf16.msra.mxu0 %v3425
      %3444 = vmatprep.subr.bf16.mxu0 0
      %3445 = vmatpush1.bf16.msra.mxu0 %v3426
      %3446 = vmatprep.subr.bf16.mxu0 0
      %3447 = vmatpush1.bf16.msra.mxu0 %v3427
      %3448 = vmatprep.subr.bf16.mxu0 0
      %3449 = vmatpush1.bf16.msra.mxu0 %v3428
      %3450 = vmatprep.subr.bf16.mxu0 0
      %3451 = vmatpush1.bf16.msra.mxu0 %v3429
      %3452 = vmatprep.subr.bf16.mxu0 0
      %3453 = vmatpush1.bf16.msra.mxu0 %v3430
      %3454 = vmatprep.subr.bf16.mxu0 0
      %3455 = vmatpush1.bf16.msra.mxu0 %v3431
      %3456 = vmatprep.subr.bf16.mxu0 0
      %3457 = vmatpush1.bf16.msra.mxu0 0
      %3458 = vmatprep.subr.bf16.mxu0 0
      %3459 = vmatpush1.bf16.msra.mxu0 0
      %3460 = vmatprep.subr.bf16.mxu0 0
      %3461 = vmatpush1.bf16.msra.mxu0 0
      %3462 = vmatprep.subr.bf16.mxu0 0
      %3463 = vmatpush1.bf16.msra.mxu0 0
      %3464 = vmatprep.subr.bf16.mxu0 0
      %3465 = vmatpush1.bf16.msra.mxu0 0
      %3466 = vmatprep.subr.bf16.mxu0 0
      %3467 = vmatpush1.bf16.msra.mxu0 0
      %3468 = vmatprep.subr.bf16.mxu0 0
      %3469 = vmatpush1.bf16.msra.mxu0 0
      %3470 = vmatprep.subr.bf16.mxu0 0
      %3471 = vmatpush1.bf16.msra.mxu0 0
      %3472 = vmatprep.mubr.bf16.mxu0 0
      %3473 = vmatmul.mubr.bf16.gmra.mrb[0].mxu0 %v3359
      %v3474 = vpop.f32.mrb[0].mxu0
      %v3475 = vadd.f32 0.0, %v3474
      %v3476 = vpop.f32.mrb[0].mxu0
      %v3477 = vpop.f32.mrb[0].mxu0
      %v3478 = vadd.f32 0.0, %v3477
      %v3479 = vpop.f32.mrb[0].mxu0
      %3480 = vmatprep.mubr.bf16.mxu0 0
      %3481 = vmatmul.mubr.bf16.gmra.mrb[0].mxu0 %v3360
      %v3482 = vpop.f32.mrb[0].mxu0
      %v3483 = vadd.f32 0.0, %v3482
      %v3484 = vpop.f32.mrb[0].mxu0
      %v3485 = vpop.f32.mrb[0].mxu0
      %v3486 = vadd.f32 0.0, %v3485
      %v3487 = vpop.f32.mrb[0].mxu0
      %3488 = vmatprep.mubr.bf16.mxu0 0
      %3489 = vmatmul.mubr.bf16.gmra.mrb[0].mxu0 %v3361
      %v3490 = vpop.f32.mrb[0].mxu0
      %v3491 = vadd.f32 0.0, %v3490
      %v3492 = vpop.f32.mrb[0].mxu0
      %v3493 = vpop.f32.mrb[0].mxu0
      %v3494 = vadd.f32 0.0, %v3493
      %v3495 = vpop.f32.mrb[0].mxu0
      %3496 = vmatprep.mubr.bf16.mxu0 0
      %3497 = vmatmul.mubr.bf16.gmra.mrb[0].mxu0 %v3362
      %v3498 = vpop.f32.mrb[0].mxu0
      %v3499 = vadd.f32 0.0, %v3498
      %v3500 = vpop.f32.mrb[0].mxu0
      %v3501 = vpop.f32.mrb[0].mxu0
      %v3502 = vadd.f32 0.0, %v3501
      %v3503 = vpop.f32.mrb[0].mxu0
      %3504 = vmatprep.mubr.bf16.mxu0 0
      %3505 = vmatmul.mubr.bf16.gmra.mrb[0].mxu0 %v3363
      %v3506 = vpop.f32.mrb[0].mxu0
      %v3507 = vadd.f32 0.0, %v3506
      %v3508 = vpop.f32.mrb[0].mxu0
      %v3509 = vpop.f32.mrb[0].mxu0
      %v3510 = vadd.f32 0.0, %v3509
      %v3511 = vpop.f32.mrb[0].mxu0
      %3512 = vmatprep.mubr.bf16.mxu0 0
      %3513 = vmatmul.mubr.bf16.gmra.mrb[0].mxu0 %v3364
      %v3514 = vpop.f32.mrb[0].mxu0
      %v3515 = vadd.f32 0.0, %v3514
      %v3516 = vpop.f32.mrb[0].mxu0
      %v3517 = vpop.f32.mrb[0].mxu0
      %v3518 = vadd.f32 0.0, %v3517
      %v3519 = vpop.f32.mrb[0].mxu0
      %3520 = vmatprep.mubr.bf16.mxu0 0
      %3521 = vmatmul.mubr.bf16.gmra.mrb[0].mxu0 %v3365
      %v3522 = vpop.f32.mrb[0].mxu0
      %v3523 = vadd.f32 0.0, %v3522
      %v3524 = vpop.f32.mrb[0].mxu0
      %v3525 = vpop.f32.mrb[0].mxu0
      %v3526 = vadd.f32 0.0, %v3525
      %v3527 = vpop.f32.mrb[0].mxu0
      %3528 = vmatprep.mubr.bf16.mxu0 0
      %3529 = vmatmul.mubr.bf16.gmra.mrb[0].mxu0 %v3366
      %v3530 = vpop.f32.mrb[0].mxu0
      %v3531 = vadd.f32 0.0, %v3530
      %v3532 = vpop.f32.mrb[0].mxu0
      %v3533 = vpop.f32.mrb[0].mxu0
      %v3534 = vadd.f32 0.0, %v3533
      %v3535 = vpop.f32.mrb[0].mxu0
      %3536 = vmatprep.mubr.bf16.mxu0 0
      %3537 = vmatmul.mubr.bf16.gmra.mrb[0].mxu0 %v3367
      %v3538 = vpop.f32.mrb[0].mxu0
      %v3539 = vadd.f32 0.0, %v3538
      %v3540 = vpop.f32.mrb[0].mxu0
      %v3541 = vpop.f32.mrb[0].mxu0
      %v3542 = vadd.f32 0.0, %v3541
      %v3543 = vpop.f32.mrb[0].mxu0
      %3544 = vmatprep.mubr.bf16.mxu0 0
      %3545 = vmatmul.mubr.bf16.gmra.mrb[0].mxu0 %v3368
      %v3546 = vpop.f32.mrb[0].mxu0
      %v3547 = vadd.f32 0.0, %v3546
      %v3548 = vpop.f32.mrb[0].mxu0
      %v3549 = vpop.f32.mrb[0].mxu0
      %v3550 = vadd.f32 0.0, %v3549
      %v3551 = vpop.f32.mrb[0].mxu0
      %3552 = vmatprep.mubr.bf16.mxu0 0
      %3553 = vmatmul.mubr.bf16.gmra.mrb[0].mxu0 %v3369
      %v3554 = vpop.f32.mrb[0].mxu0
      %v3555 = vadd.f32 0.0, %v3554
      %v3556 = vpop.f32.mrb[0].mxu0
      %v3557 = vpop.f32.mrb[0].mxu0
      %v3558 = vadd.f32 0.0, %v3557
      %v3559 = vpop.f32.mrb[0].mxu0
      %3560 = vmatprep.mubr.bf16.mxu0 0
      %3561 = vmatmul.mubr.bf16.gmra.mrb[0].mxu0 %v3370
      %v3562 = vpop.f32.mrb[0].mxu0
      %v3563 = vadd.f32 0.0, %v3562
      %v3564 = vpop.f32.mrb[0].mxu0
      %v3565 = vpop.f32.mrb[0].mxu0
      %v3566 = vadd.f32 0.0, %v3565
      %v3567 = vpop.f32.mrb[0].mxu0
      %3568 = vmatprep.mubr.bf16.mxu0 0
      %3569 = vmatmul.mubr.bf16.gmra.mrb[0].mxu0 %v3371
      %v3570 = vpop.f32.mrb[0].mxu0
      %v3571 = vadd.f32 0.0, %v3570
      %v3572 = vpop.f32.mrb[0].mxu0
      %v3573 = vpop.f32.mrb[0].mxu0
      %v3574 = vadd.f32 0.0, %v3573
      %v3575 = vpop.f32.mrb[0].mxu0
      %3576 = vmatprep.mubr.bf16.mxu0 0
      %3577 = vmatmul.mubr.bf16.gmra.mrb[0].mxu0 %v3372
      %v3578 = vpop.f32.mrb[0].mxu0
      %v3579 = vadd.f32 0.0, %v3578
      %v3580 = vpop.f32.mrb[0].mxu0
      %v3581 = vpop.f32.mrb[0].mxu0
      %v3582 = vadd.f32 0.0, %v3581
      %v3583 = vpop.f32.mrb[0].mxu0
      %3584 = vmatprep.mubr.bf16.mxu0 0
      %3585 = vmatmul.mubr.bf16.gmra.mrb[0].mxu0 %v3373
      %v3586 = vpop.f32.mrb[0].mxu0
      %v3587 = vadd.f32 0.0, %v3586
      %v3588 = vpop.f32.mrb[0].mxu0
      %v3589 = vpop.f32.mrb[0].mxu0
      %v3590 = vadd.f32 0.0, %v3589
      %v3591 = vpop.f32.mrb[0].mxu0
      %3592 = vmatprep.mubr.bf16.mxu0 0
      %3593 = vmatmul.mubr.bf16.gmra.mrb[0].mxu0 %v3374
      %v3594 = vpop.f32.mrb[0].mxu0
      %v3595 = vadd.f32 0.0, %v3594
      %v3596 = vpop.f32.mrb[0].mxu0
      %v3597 = vpop.f32.mrb[0].mxu0
      %v3598 = vadd.f32 0.0, %v3597
      %v3599 = vpop.f32.mrb[0].mxu0
      %3600 = vdwg.mxu0
      %v3601 = vadd.f32 %v3295, %v3475
      %v3602 = vadd.f32 %v3296, %v3478
      %v3603 = vadd.f32 %v3297, %v3483
      %v3604 = vadd.f32 %v3298, %v3486
      %v3605 = vadd.f32 %v3299, %v3491
      %v3606 = vadd.f32 %v3300, %v3494
      %v3607 = vadd.f32 %v3301, %v3499
      %v3608 = vadd.f32 %v3302, %v3502
      %v3609 = vadd.f32 %v3303, %v3507
      %v3610 = vadd.f32 %v3304, %v3510
      %v3611 = vadd.f32 %v3305, %v3515
      %v3612 = vadd.f32 %v3306, %v3518
      %v3613 = vadd.f32 %v3307, %v3523
      %v3614 = vadd.f32 %v3308, %v3526
      %v3615 = vadd.f32 %v3309, %v3531
      %v3616 = vadd.f32 %v3310, %v3534
      %v3617 = vadd.f32 %v3311, %v3539
      %v3618 = vadd.f32 %v3312, %v3542
      %v3619 = vadd.f32 %v3313, %v3547
      %v3620 = vadd.f32 %v3314, %v3550
      %v3621 = vadd.f32 %v3315, %v3555
      %v3622 = vadd.f32 %v3316, %v3558
      %v3623 = vadd.f32 %v3317, %v3563
      %v3624 = vadd.f32 %v3318, %v3566
      %v3625 = vadd.f32 %v3319, %v3571
      %v3626 = vadd.f32 %v3320, %v3574
      %v3627 = vadd.f32 %v3321, %v3579
      %v3628 = vadd.f32 %v3322, %v3582
      %v3629 = vadd.f32 %v3323, %v3587
      %v3630 = vadd.f32 %v3324, %v3590
      %v3631 = vadd.f32 %v3325, %v3595
      %v3632 = vadd.f32 %v3326, %v3598
      %v3633 = vld [vmem:[%s3020 + $0x2] sm:$0xff]
      %v3634 = vld [vmem:[%s3020 + $0xa] sm:$0xff]
      %v3635 = vld [vmem:[%s3020 + $0x1a] sm:$0xff]
      %v3636 = vld [vmem:[%s3020 + $0x22] sm:$0xff]
      %v3637 = vld [vmem:[%s3020 + $0x32] sm:$0xff]
      %v3638 = vld [vmem:[%s3020 + $0x3a] sm:$0xff]
      %v3639 = vld [vmem:[%s3020 + $0x4a] sm:$0xff]
      %v3640 = vld [vmem:[%s3020 + $0x52] sm:$0xff]
      %v3641 = vld [vmem:[%s3020 + $0x62] sm:$0xff]
      %v3642 = vld [vmem:[%s3020 + $0x6a] sm:$0xff]
      %v3643 = vld [vmem:[%s3020 + $0x7a] sm:$0xff]
      %v3644 = vld [vmem:[%s3020 + $0x82] sm:$0xff]
      %v3645 = vld [vmem:[%s3020 + $0x92] sm:$0xff]
      %v3646 = vld [vmem:[%s3020 + $0x9a] sm:$0xff]
      %v3647 = vld [vmem:[%s3020 + $0xaa] sm:$0xff]
      %v3648 = vld [vmem:[%s3020 + $0xb2] sm:$0xff]
      %v3649 = vld [vmem:[%s3020 + $0xc2] sm:$0xff]
      %v3650 = vld [vmem:[%s3020 + $0xca] sm:$0xff]
      %v3651 = vld [vmem:[%s3020 + $0xda] sm:$0xff]
      %v3652 = vld [vmem:[%s3020 + $0xe2] sm:$0xff]
      %v3653 = vld [vmem:[%s3020 + $0xf2] sm:$0xff]
      %v3654 = vld [vmem:[%s3020 + $0xfa] sm:$0xff]
      %v3655 = vld [vmem:[%s3020 + $0x10a] sm:$0xff]
      %v3656 = vld [vmem:[%s3020 + $0x112] sm:$0xff]
      %v3657 = vld [vmem:[%s3020 + $0x122] sm:$0xff]
      %v3658 = vld [vmem:[%s3020 + $0x12a] sm:$0xff]
      %v3659 = vld [vmem:[%s3020 + $0x13a] sm:$0xff]
      %v3660 = vld [vmem:[%s3020 + $0x142] sm:$0xff]
      %v3661 = vld [vmem:[%s3020 + $0x152] sm:$0xff]
      %v3662 = vld [vmem:[%s3020 + $0x15a] sm:$0xff]
      %v3663 = vld [vmem:[%s3020 + $0x16a] sm:$0xff]
      %v3664 = vld [vmem:[%s3020 + $0x172] sm:$0xff]
      %v3665 = vpack.c.bf16 %v3634, %v3633
      %v3666 = vpack.c.bf16 %v3636, %v3635
      %v3667 = vpack.c.bf16 %v3638, %v3637
      %v3668 = vpack.c.bf16 %v3640, %v3639
      %v3669 = vpack.c.bf16 %v3642, %v3641
      %v3670 = vpack.c.bf16 %v3644, %v3643
      %v3671 = vpack.c.bf16 %v3646, %v3645
      %v3672 = vpack.c.bf16 %v3648, %v3647
      %v3673 = vpack.c.bf16 %v3650, %v3649
      %v3674 = vpack.c.bf16 %v3652, %v3651
      %v3675 = vpack.c.bf16 %v3654, %v3653
      %v3676 = vpack.c.bf16 %v3656, %v3655
      %v3677 = vpack.c.bf16 %v3658, %v3657
      %v3678 = vpack.c.bf16 %v3660, %v3659
      %v3679 = vpack.c.bf16 %v3662, %v3661
      %v3680 = vpack.c.bf16 %v3664, %v3663
      %s3681 = scalar_lea.vmem %s7, 512
      %v3682 = vld [vmem:[%s3681] sm:$0xf]
      %v3683 = vld [vmem:[%s3681 + $0x4] sm:$0xf]
      %v3684 = vld [vmem:[%s3681 + $0x8] sm:$0xf]
      %v3685 = vld [vmem:[%s3681 + $0xc] sm:$0xf]
      %v3686 = vld [vmem:[%s3681 + $0x10] sm:$0xf]
      %v3687 = vld [vmem:[%s3681 + $0x14] sm:$0xf]
      %v3688 = vld [vmem:[%s3681 + $0x18] sm:$0xf]
      %v3689 = vld [vmem:[%s3681 + $0x1c] sm:$0xf]
      %v3690 = vld [vmem:[%s3681 + $0x20] sm:$0xf]
      %v3691 = vld [vmem:[%s3681 + $0x24] sm:$0xf]
      %v3692 = vld [vmem:[%s3681 + $0x28] sm:$0xf]
      %v3693 = vld [vmem:[%s3681 + $0x2c] sm:$0xf]
      %v3694 = vld [vmem:[%s3681 + $0x30] sm:$0xf]
      %v3695 = vld [vmem:[%s3681 + $0x34] sm:$0xf]
      %v3696 = vld [vmem:[%s3681 + $0x38] sm:$0xf]
      %v3697 = vld [vmem:[%s3681 + $0x3c] sm:$0xf]
      %v3714 = vunpack.c.l.b16 %v3682
      %v3715 = vunpack.c.l.b16 %v3683
      %v3716 = vunpack.c.l.b16 %v3684
      %v3717 = vunpack.c.l.b16 %v3685
      %v3718 = vunpack.c.l.b16 %v3686
      %v3719 = vunpack.c.l.b16 %v3687
      %v3720 = vunpack.c.l.b16 %v3688
      %v3721 = vunpack.c.l.b16 %v3689
      %v3722 = vunpack.c.l.b16 %v3690
      %v3723 = vunpack.c.l.b16 %v3691
      %v3724 = vunpack.c.l.b16 %v3692
      %v3725 = vunpack.c.l.b16 %v3693
      %v3726 = vunpack.c.l.b16 %v3694
      %v3727 = vunpack.c.l.b16 %v3695
      %v3728 = vunpack.c.l.b16 %v3696
      %v3729 = vunpack.c.l.b16 %v3697
      %v3730 = vpack.c.b16 %v3715, %v3714
      %v3731 = vpack.c.b16 %v3717, %v3716
      %v3732 = vpack.c.b16 %v3719, %v3718
      %v3733 = vpack.c.b16 %v3721, %v3720
      %v3734 = vpack.c.b16 %v3723, %v3722
      %v3735 = vpack.c.b16 %v3725, %v3724
      %v3736 = vpack.c.b16 %v3727, %v3726
      %v3737 = vpack.c.b16 %v3729, %v3728
      %3746 = vmatprep.subr.bf16.mxu0 0
      %3747 = vmatpush1.bf16.msra.mxu0 %v3730
      %3748 = vmatprep.subr.bf16.mxu0 0
      %3749 = vmatpush1.bf16.msra.mxu0 %v3731
      %3750 = vmatprep.subr.bf16.mxu0 0
      %3751 = vmatpush1.bf16.msra.mxu0 %v3732
      %3752 = vmatprep.subr.bf16.mxu0 0
      %3753 = vmatpush1.bf16.msra.mxu0 %v3733
      %3754 = vmatprep.subr.bf16.mxu0 0
      %3755 = vmatpush1.bf16.msra.mxu0 %v3734
      %3756 = vmatprep.subr.bf16.mxu0 0
      %3757 = vmatpush1.bf16.msra.mxu0 %v3735
      %3758 = vmatprep.subr.bf16.mxu0 0
      %3759 = vmatpush1.bf16.msra.mxu0 %v3736
      %3760 = vmatprep.subr.bf16.mxu0 0
      %3761 = vmatpush1.bf16.msra.mxu0 %v3737
      %3762 = vmatprep.subr.bf16.mxu0 0
      %3763 = vmatpush1.bf16.msra.mxu0 0
      %3764 = vmatprep.subr.bf16.mxu0 0
      %3765 = vmatpush1.bf16.msra.mxu0 0
      %3766 = vmatprep.subr.bf16.mxu0 0
      %3767 = vmatpush1.bf16.msra.mxu0 0
      %3768 = vmatprep.subr.bf16.mxu0 0
      %3769 = vmatpush1.bf16.msra.mxu0 0
      %3770 = vmatprep.subr.bf16.mxu0 0
      %3771 = vmatpush1.bf16.msra.mxu0 0
      %3772 = vmatprep.subr.bf16.mxu0 0
      %3773 = vmatpush1.bf16.msra.mxu0 0
      %3774 = vmatprep.subr.bf16.mxu0 0
      %3775 = vmatpush1.bf16.msra.mxu0 0
      %3776 = vmatprep.subr.bf16.mxu0 0
      %3777 = vmatpush1.bf16.msra.mxu0 0
      %3778 = vmatprep.mubr.bf16.mxu0 0
      %3779 = vmatmul.mubr.bf16.gmra.mrb[0].mxu0 %v3665
      %v3780 = vpop.f32.mrb[0].mxu0
      %v3781 = vadd.f32 0.0, %v3780
      %v3782 = vpop.f32.mrb[0].mxu0
      %v3783 = vpop.f32.mrb[0].mxu0
      %v3784 = vadd.f32 0.0, %v3783
      %v3785 = vpop.f32.mrb[0].mxu0
      %3786 = vmatprep.mubr.bf16.mxu0 0
      %3787 = vmatmul.mubr.bf16.gmra.mrb[0].mxu0 %v3666
      %v3788 = vpop.f32.mrb[0].mxu0
      %v3789 = vadd.f32 0.0, %v3788
      %v3790 = vpop.f32.mrb[0].mxu0
      %v3791 = vpop.f32.mrb[0].mxu0
      %v3792 = vadd.f32 0.0, %v3791
      %v3793 = vpop.f32.mrb[0].mxu0
      %3794 = vmatprep.mubr.bf16.mxu0 0
      %3795 = vmatmul.mubr.bf16.gmra.mrb[0].mxu0 %v3667
      %v3796 = vpop.f32.mrb[0].mxu0
      %v3797 = vadd.f32 0.0, %v3796
      %v3798 = vpop.f32.mrb[0].mxu0
      %v3799 = vpop.f32.mrb[0].mxu0
      %v3800 = vadd.f32 0.0, %v3799
      %v3801 = vpop.f32.mrb[0].mxu0
      %3802 = vmatprep.mubr.bf16.mxu0 0
      %3803 = vmatmul.mubr.bf16.gmra.mrb[0].mxu0 %v3668
      %v3804 = vpop.f32.mrb[0].mxu0
      %v3805 = vadd.f32 0.0, %v3804
      %v3806 = vpop.f32.mrb[0].mxu0
      %v3807 = vpop.f32.mrb[0].mxu0
      %v3808 = vadd.f32 0.0, %v3807
      %v3809 = vpop.f32.mrb[0].mxu0
      %3810 = vmatprep.mubr.bf16.mxu0 0
      %3811 = vmatmul.mubr.bf16.gmra.mrb[0].mxu0 %v3669
      %v3812 = vpop.f32.mrb[0].mxu0
      %v3813 = vadd.f32 0.0, %v3812
      %v3814 = vpop.f32.mrb[0].mxu0
      %v3815 = vpop.f32.mrb[0].mxu0
      %v3816 = vadd.f32 0.0, %v3815
      %v3817 = vpop.f32.mrb[0].mxu0
      %3818 = vmatprep.mubr.bf16.mxu0 0
      %3819 = vmatmul.mubr.bf16.gmra.mrb[0].mxu0 %v3670
      %v3820 = vpop.f32.mrb[0].mxu0
      %v3821 = vadd.f32 0.0, %v3820
      %v3822 = vpop.f32.mrb[0].mxu0
      %v3823 = vpop.f32.mrb[0].mxu0
      %v3824 = vadd.f32 0.0, %v3823
      %v3825 = vpop.f32.mrb[0].mxu0
      %3826 = vmatprep.mubr.bf16.mxu0 0
      %3827 = vmatmul.mubr.bf16.gmra.mrb[0].mxu0 %v3671
      %v3828 = vpop.f32.mrb[0].mxu0
      %v3829 = vadd.f32 0.0, %v3828
      %v3830 = vpop.f32.mrb[0].mxu0
      %v3831 = vpop.f32.mrb[0].mxu0
      %v3832 = vadd.f32 0.0, %v3831
      %v3833 = vpop.f32.mrb[0].mxu0
      %3834 = vmatprep.mubr.bf16.mxu0 0
      %3835 = vmatmul.mubr.bf16.gmra.mrb[0].mxu0 %v3672
      %v3836 = vpop.f32.mrb[0].mxu0
      %v3837 = vadd.f32 0.0, %v3836
      %v3838 = vpop.f32.mrb[0].mxu0
      %v3839 = vpop.f32.mrb[0].mxu0
      %v3840 = vadd.f32 0.0, %v3839
      %v3841 = vpop.f32.mrb[0].mxu0
      %3842 = vmatprep.mubr.bf16.mxu0 0
      %3843 = vmatmul.mubr.bf16.gmra.mrb[0].mxu0 %v3673
      %v3844 = vpop.f32.mrb[0].mxu0
      %v3845 = vadd.f32 0.0, %v3844
      %v3846 = vpop.f32.mrb[0].mxu0
      %v3847 = vpop.f32.mrb[0].mxu0
      %v3848 = vadd.f32 0.0, %v3847
      %v3849 = vpop.f32.mrb[0].mxu0
      %3850 = vmatprep.mubr.bf16.mxu0 0
      %3851 = vmatmul.mubr.bf16.gmra.mrb[0].mxu0 %v3674
      %v3852 = vpop.f32.mrb[0].mxu0
      %v3853 = vadd.f32 0.0, %v3852
      %v3854 = vpop.f32.mrb[0].mxu0
      %v3855 = vpop.f32.mrb[0].mxu0
      %v3856 = vadd.f32 0.0, %v3855
      %v3857 = vpop.f32.mrb[0].mxu0
      %3858 = vmatprep.mubr.bf16.mxu0 0
      %3859 = vmatmul.mubr.bf16.gmra.mrb[0].mxu0 %v3675
      %v3860 = vpop.f32.mrb[0].mxu0
      %v3861 = vadd.f32 0.0, %v3860
      %v3862 = vpop.f32.mrb[0].mxu0
      %v3863 = vpop.f32.mrb[0].mxu0
      %v3864 = vadd.f32 0.0, %v3863
      %v3865 = vpop.f32.mrb[0].mxu0
      %3866 = vmatprep.mubr.bf16.mxu0 0
      %3867 = vmatmul.mubr.bf16.gmra.mrb[0].mxu0 %v3676
      %v3868 = vpop.f32.mrb[0].mxu0
      %v3869 = vadd.f32 0.0, %v3868
      %v3870 = vpop.f32.mrb[0].mxu0
      %v3871 = vpop.f32.mrb[0].mxu0
      %v3872 = vadd.f32 0.0, %v3871
      %v3873 = vpop.f32.mrb[0].mxu0
      %3874 = vmatprep.mubr.bf16.mxu0 0
      %3875 = vmatmul.mubr.bf16.gmra.mrb[0].mxu0 %v3677
      %v3876 = vpop.f32.mrb[0].mxu0
      %v3877 = vadd.f32 0.0, %v3876
      %v3878 = vpop.f32.mrb[0].mxu0
      %v3879 = vpop.f32.mrb[0].mxu0
      %v3880 = vadd.f32 0.0, %v3879
      %v3881 = vpop.f32.mrb[0].mxu0
      %3882 = vmatprep.mubr.bf16.mxu0 0
      %3883 = vmatmul.mubr.bf16.gmra.mrb[0].mxu0 %v3678
      %v3884 = vpop.f32.mrb[0].mxu0
      %v3885 = vadd.f32 0.0, %v3884
      %v3886 = vpop.f32.mrb[0].mxu0
      %v3887 = vpop.f32.mrb[0].mxu0
      %v3888 = vadd.f32 0.0, %v3887
      %v3889 = vpop.f32.mrb[0].mxu0
      %3890 = vmatprep.mubr.bf16.mxu0 0
      %3891 = vmatmul.mubr.bf16.gmra.mrb[0].mxu0 %v3679
      %v3892 = vpop.f32.mrb[0].mxu0
      %v3893 = vadd.f32 0.0, %v3892
      %v3894 = vpop.f32.mrb[0].mxu0
      %v3895 = vpop.f32.mrb[0].mxu0
      %v3896 = vadd.f32 0.0, %v3895
      %v3897 = vpop.f32.mrb[0].mxu0
      %3898 = vmatprep.mubr.bf16.mxu0 0
      %3899 = vmatmul.mubr.bf16.gmra.mrb[0].mxu0 %v3680
      %v3900 = vpop.f32.mrb[0].mxu0
      %v3901 = vadd.f32 0.0, %v3900
      %v3902 = vpop.f32.mrb[0].mxu0
      %v3903 = vpop.f32.mrb[0].mxu0
      %v3904 = vadd.f32 0.0, %v3903
      %v3905 = vpop.f32.mrb[0].mxu0
      %3906 = vdwg.mxu0
      %v3907 = vadd.f32 %v3601, %v3781
      %v3908 = vadd.f32 %v3602, %v3784
      %v3909 = vadd.f32 %v3603, %v3789
      %v3910 = vadd.f32 %v3604, %v3792
      %v3911 = vadd.f32 %v3605, %v3797
      %v3912 = vadd.f32 %v3606, %v3800
      %v3913 = vadd.f32 %v3607, %v3805
      %v3914 = vadd.f32 %v3608, %v3808
      %v3915 = vadd.f32 %v3609, %v3813
      %v3916 = vadd.f32 %v3610, %v3816
      %v3917 = vadd.f32 %v3611, %v3821
      %v3918 = vadd.f32 %v3612, %v3824
      %v3919 = vadd.f32 %v3613, %v3829
      %v3920 = vadd.f32 %v3614, %v3832
      %v3921 = vadd.f32 %v3615, %v3837
      %v3922 = vadd.f32 %v3616, %v3840
      %v3923 = vadd.f32 %v3617, %v3845
      %v3924 = vadd.f32 %v3618, %v3848
      %v3925 = vadd.f32 %v3619, %v3853
      %v3926 = vadd.f32 %v3620, %v3856
      %v3927 = vadd.f32 %v3621, %v3861
      %v3928 = vadd.f32 %v3622, %v3864
      %v3929 = vadd.f32 %v3623, %v3869
      %v3930 = vadd.f32 %v3624, %v3872
      %v3931 = vadd.f32 %v3625, %v3877
      %v3932 = vadd.f32 %v3626, %v3880
      %v3933 = vadd.f32 %v3627, %v3885
      %v3934 = vadd.f32 %v3628, %v3888
      %v3935 = vadd.f32 %v3629, %v3893
      %v3936 = vadd.f32 %v3630, %v3896
      %v3937 = vadd.f32 %v3631, %v3901
      %v3938 = vadd.f32 %v3632, %v3904
      %3939 = vst.msk [vmem:[%s325] sm:$0xff] %vm641, %v3907
      %3940 = vst.msk [vmem:[%s325 + $0x8] sm:$0xff] %vm641, %v3908
      %3941 = vst.msk [vmem:[%s325 + $0x10] sm:$0xff] %vm641, %v3909
      %3942 = vst.msk [vmem:[%s325 + $0x18] sm:$0xff] %vm641, %v3910
      %3943 = vst.msk [vmem:[%s325 + $0x20] sm:$0xff] %vm641, %v3911
      %3944 = vst.msk [vmem:[%s325 + $0x28] sm:$0xff] %vm641, %v3912
      %3945 = vst.msk [vmem:[%s325 + $0x30] sm:$0xff] %vm641, %v3913
      %3946 = vst.msk [vmem:[%s325 + $0x38] sm:$0xff] %vm641, %v3914
      %3947 = vst.msk [vmem:[%s325 + $0x40] sm:$0xff] %vm641, %v3915
      %3948 = vst.msk [vmem:[%s325 + $0x48] sm:$0xff] %vm641, %v3916
      %3949 = vst.msk [vmem:[%s325 + $0x50] sm:$0xff] %vm641, %v3917
      %3950 = vst.msk [vmem:[%s325 + $0x58] sm:$0xff] %vm641, %v3918
      %3951 = vst.msk [vmem:[%s325 + $0x60] sm:$0xff] %vm641, %v3919
      %3952 = vst.msk [vmem:[%s325 + $0x68] sm:$0xff] %vm641, %v3920
      %3953 = vst.msk [vmem:[%s325 + $0x70] sm:$0xff] %vm641, %v3921
      %3954 = vst.msk [vmem:[%s325 + $0x78] sm:$0xff] %vm641, %v3922
      %3955 = vst.msk [vmem:[%s325 + $0x80] sm:$0xff] %vm641, %v3923
      %3956 = vst.msk [vmem:[%s325 + $0x88] sm:$0xff] %vm641, %v3924
      %3957 = vst.msk [vmem:[%s325 + $0x90] sm:$0xff] %vm641, %v3925
      %3958 = vst.msk [vmem:[%s325 + $0x98] sm:$0xff] %vm641, %v3926
      %3959 = vst.msk [vmem:[%s325 + $0xa0] sm:$0xff] %vm641, %v3927
      %3960 = vst.msk [vmem:[%s325 + $0xa8] sm:$0xff] %vm641, %v3928
      %3961 = vst.msk [vmem:[%s325 + $0xb0] sm:$0xff] %vm641, %v3929
      %3962 = vst.msk [vmem:[%s325 + $0xb8] sm:$0xff] %vm641, %v3930
      %3963 = vst.msk [vmem:[%s325 + $0xc0] sm:$0xff] %vm641, %v3931
      %3964 = vst.msk [vmem:[%s325 + $0xc8] sm:$0xff] %vm641, %v3932
      %3965 = vst.msk [vmem:[%s325 + $0xd0] sm:$0xff] %vm641, %v3933
      %3966 = vst.msk [vmem:[%s325 + $0xd8] sm:$0xff] %vm641, %v3934
      %3967 = vst.msk [vmem:[%s325 + $0xe0] sm:$0xff] %vm641, %v3935
      %3968 = vst.msk [vmem:[%s325 + $0xe8] sm:$0xff] %vm641, %v3936
      %3969 = vst.msk [vmem:[%s325 + $0xf0] sm:$0xff] %vm641, %v3937
      %3970 = vst.msk [vmem:[%s325 + $0xf8] sm:$0xff] %vm641, %v3938
      %p3971 = scmp.lt.s32.totalorder %s19, 1
      %s3972 = scalar_select %p3971, %s19, 1
      %s3973 = smul.addr %s3972, 32
      %s3974 = smul.addr %s3973, 8
      %s3975 = scalar_lea.vmem %s8, %s3974
      // Predicated region
      $region53: #{tpu_custom_call.1} parent=51 // pred_check
        %p3976 = pneg %p215
      $region54: #{tpu_custom_call.1} parent=51 // pred_check_branch
        %3978 = sbr.rel (%p3976) target = $region56
      $region55: #{tpu_custom_call.1} parent=51 // pred_region
        _
      $region56: #{tpu_custom_call.1} parent=51 // pred_fallthru
        _
    $region52: #{tpu_custom_call.1} parent=5 // pred_fallthru
      _
    %p3979 = scmp.le.s32.totalorder 2, %s14
    // Predicated region
    $region57: #{tpu_custom_call.1} parent=5 // pred_check
      %p3980 = pneg %p3979
    $region58: #{tpu_custom_call.1} parent=5 // pred_check_branch
      %3982 = sbr.rel (%p3980) target = $region60
    $region59: #{tpu_custom_call.1} parent=5 // pred_region
      %s3983 = ssub.s32 %s14, 2
      // Predicated region
      $region61: #{tpu_custom_call.1} parent=59 // pred_check
        %p3984 = pneg %p221
      $region62: #{tpu_custom_call.1} parent=59 // pred_check_branch
        %3986 = sbr.rel (%p3984) target = $region64
      $region63: #{tpu_custom_call.1} parent=59 // pred_region
        %p3987 = scmp.lt.s32.totalorder %s20, 1
        %s3988 = scalar_select %p3987, %s20, 1
        %s3989 = smul.addr %s3988, 32
        %s3990 = smul.addr %s3989, 8
        %s3991 = scalar_lea.vmem %s8, %s3990
      $region64: #{tpu_custom_call.1} parent=59 // pred_fallthru
        _
    $region60: #{tpu_custom_call.1} parent=5 // pred_fallthru
      _
  $region6: #{tpu_custom_call.1} parent=0 // loop_footer
    %s18 = sadd.s32 1, %s14
  $region7: #{tpu_custom_call.1} parent=0 // loop_footer_branch
    %13 = sbr.rel target = $region3
  $region8: #{tpu_custom_call.1} parent=0 // loop_exit
    _

</llo_original>
